<compile_context>
chip_gen: v6e
topology: v6e:2x2x1
jax: 0.10.0
libtpu: 0.0.40
codegen_flags: <defaults>
</compile_context>

<pallas_src>
import functools
import math

import numpy as np
import jax
import jax.numpy as jnp
from jax.experimental import pallas as pl
from jax.experimental.pallas import tpu as pltpu


# ----------------------------------------------------------------------------
# helpers
# ----------------------------------------------------------------------------

def _row_tile(m, max_rows=128):
    """Row-tile size: multiple of 8 dividing m, <= max_rows, and when possible
    >= 2 grid steps so both v7x TensorCores get work."""
    if m % 8 != 0:
        return m                      # fall back to a single full block
    best, t = 8, 8
    while t <= min(m, max_rows):
        if m % t == 0:
            best = t
        t += 8
    if best == m and m >= 16 and (m // 2) % 8 == 0:
        best = m // 2                 # ensure at least 2 grid steps
    return best


def _layernorm(h, gamma, beta, eps):
    mean = jnp.mean(h, axis=-1, keepdims=True)
    var = jnp.mean(jnp.square(h - mean), axis=-1, keepdims=True)
    return (h - mean) * jax.lax.rsqrt(var + eps) * gamma + beta


def _mha(q, k, v, bias, num_heads):
    """Multi-head attention core on (T,E) queries vs (S,E) keys/values.

    q is f32 and already scaled by 1/sqrt(dh); bias broadcasts to (T, S).
    All heads share one numerically-stable softmax over a stacked (H*T, S)
    score matrix; per-head matmuls hit the MXU in bf16 with f32 accumulation.
    """
    T, E = q.shape
    S = k.shape[0]
    dh = E // num_heads

    scores = []
    for h in range(num_heads):
        sl = slice(h * dh, (h + 1) * dh)
        qh = q[:, sl].astype(jnp.bfloat16)               # (T, dh)
        khT = k[:, sl].T.astype(jnp.bfloat16)            # (dh, S)
        scores.append(
            jnp.dot(qh, khT, preferred_element_type=jnp.float32) + bias)
    s_all = jnp.concatenate(scores, axis=0)              # (H*T, S) f32

    m = jnp.max(s_all, axis=-1, keepdims=True)
    p = jnp.exp(s_all - m)
    denom = jnp.sum(p, axis=-1, keepdims=True)
    p = p * pl.reciprocal(denom, approx=True)            # EUP approx reciprocal

    ctxs = []
    for h in range(num_heads):
        sl = slice(h * dh, (h + 1) * dh)
        ph = p[h * T:(h + 1) * T, :].astype(jnp.bfloat16)  # (T, S)
        vh = v[:, sl].astype(jnp.bfloat16)                 # (S, dh)
        ctxs.append(jnp.dot(ph, vh, preferred_element_type=jnp.float32))
    return jnp.concatenate(ctxs, axis=-1)                 # (T, E) f32


# ----------------------------------------------------------------------------
# Fully fused decoder block kernel (one batch element per grid step)
# ----------------------------------------------------------------------------

def _decoder_block_kernel(x_ref, enc_ref, sbias_ref, cbias_ref,
                          swqkv_ref, swo_ref, g1_ref, be1_ref,
                          cwqkv_ref, cwo_ref, g2_ref, be2_ref,
                          w1_ref, fb1_ref, w2_ref, fb2_ref, g3_ref, be3_ref,
                          o_ref, *, num_heads, scale, eps):
    x = x_ref[0]                                        # (T, E) f32
    enc = enc_ref[0]                                    # (S, E) f32
    T, E = x.shape

    # ---- self-attention + residual + LayerNorm1 (dropout = identity) ----
    xb = x.astype(jnp.bfloat16)
    qkv = jnp.dot(xb, swqkv_ref[...],
                  preferred_element_type=jnp.float32)   # (T, 3E) f32
    ctx = _mha(qkv[:, :E] * scale, qkv[:, E:2 * E], qkv[:, 2 * E:],
               sbias_ref[0], num_heads)
    y = jnp.dot(ctx.astype(jnp.bfloat16), swo_ref[...],
                preferred_element_type=jnp.float32)
    x = _layernorm(x + y, g1_ref[...], be1_ref[...], eps)

    # ---- cross-attention + residual + LayerNorm2 ----
    cwqkv = cwqkv_ref[...]                              # (E, 3E) bf16
    xb = x.astype(jnp.bfloat16)
    encb = enc.astype(jnp.bfloat16)
    q = jnp.dot(xb, cwqkv[:, :E],
                preferred_element_type=jnp.float32) * scale   # (T, E)
    kv = jnp.dot(encb, cwqkv[:, E:],
                 preferred_element_type=jnp.float32)          # (S, 2E)
    ctx = _mha(q, kv[:, :E], kv[:, E:], cbias_ref[0], num_heads)
    y = jnp.dot(ctx.astype(jnp.bfloat16), cwo_ref[...],
                preferred_element_type=jnp.float32)
    x = _layernorm(x + y, g2_ref[...], be2_ref[...], eps)

    # ---- feed-forward + residual + LayerNorm3 ----
    h = jnp.dot(x.astype(jnp.bfloat16), w1_ref[...],
                preferred_element_type=jnp.float32) + fb1_ref[...]
    h = jnp.maximum(h, 0.0)
    y = jnp.dot(h.astype(jnp.bfloat16), w2_ref[...],
                preferred_element_type=jnp.float32) + fb2_ref[...]
    o_ref[0] = _layernorm(x + y, g3_ref[...], be3_ref[...], eps).astype(o_ref.dtype)


def fused_decoder_block(x, enc, self_bias, cross_bias, p, num_heads, eps=1e-5):
    """x:(N,T,E); enc:(N,S,E); self_bias:(1,T,T); cross_bias:(N,1,S)."""
    N, T, E = x.shape
    S = enc.shape[1]
    F = p["ff_w1"].shape[1]
    dh = E // num_heads
    scale = 1.0 / math.sqrt(dh)
    kernel = functools.partial(_decoder_block_kernel, num_heads=num_heads,
                               scale=scale, eps=eps)

    full = lambda b: (0, 0)
    in_specs = [
        pl.BlockSpec((1, T, E), lambda b: (b, 0, 0)),   # x
        pl.BlockSpec((1, S, E), lambda b: (b, 0, 0)),   # encoder hidden states
        pl.BlockSpec((1, T, T), lambda b: (0, 0, 0)),   # shared causal bias
        pl.BlockSpec((1, 1, S), lambda b: (b, 0, 0)),   # per-batch padding bias
        pl.BlockSpec((E, 3 * E), full),                 # self-attn QKV
        pl.BlockSpec((E, E), full),                     # self-attn out proj
        pl.BlockSpec((1, E), full),                     # ln1 gamma
        pl.BlockSpec((1, E), full),                     # ln1 beta
        pl.BlockSpec((E, 3 * E), full),                 # cross-attn QKV
        pl.BlockSpec((E, E), full),                     # cross-attn out proj
        pl.BlockSpec((1, E), full),                     # ln2 gamma
        pl.BlockSpec((1, E), full),                     # ln2 beta
        pl.BlockSpec((E, F), full),                     # ff w1
        pl.BlockSpec((1, F), full),                     # ff b1
        pl.BlockSpec((F, E), full),                     # ff w2
        pl.BlockSpec((1, E), full),                     # ff b2
        pl.BlockSpec((1, E), full),                     # ln3 gamma
        pl.BlockSpec((1, E), full),                     # ln3 beta
    ]
    args = [
        x, enc, self_bias, cross_bias,
        p["self_wqkv"], p["self_wo"],
        p["ln1_g"].reshape(1, E), p["ln1_b"].reshape(1, E),
        p["cross_wqkv"], p["cross_wo"],
        p["ln2_g"].reshape(1, E), p["ln2_b"].reshape(1, E),
        p["ff_w1"], p["ff_b1"].reshape(1, F),
        p["ff_w2"], p["ff_b2"].reshape(1, E),
        p["ln3_g"].reshape(1, E), p["ln3_b"].reshape(1, E),
    ]

    return pl.pallas_call(
        kernel,
        out_shape=jax.ShapeDtypeStruct((N, T, E), jnp.float32),
        grid=(N,),
        in_specs=in_specs,
        out_specs=pl.BlockSpec((1, T, E), lambda b: (b, 0, 0)),
        compiler_params=pltpu.CompilerParams(dimension_semantics=("parallel",)),
    )(*args)


# ----------------------------------------------------------------------------
# Lane-dense tied output projection (vocab padded to a multiple of 128)
# ----------------------------------------------------------------------------

def _matmul_kernel(x_ref, w_ref, o_ref):
    o_ref[...] = jnp.dot(x_ref[...].astype(w_ref.dtype), w_ref[...],
                         preferred_element_type=jnp.float32).astype(o_ref.dtype)


def pallas_logits(x2d, w_out_padded, vocab_size):
    M, E = x2d.shape
    Vp = w_out_padded.shape[1]
    tm = _row_tile(M)
    out = pl.pallas_call(
        _matmul_kernel,
        out_shape=jax.ShapeDtypeStruct((M, Vp), jnp.float32),
        grid=(M // tm,),
        in_specs=[
            pl.BlockSpec((tm, E), lambda i: (i, 0)),
            pl.BlockSpec((E, Vp), lambda i: (0, 0)),
        ],
        out_specs=pl.BlockSpec((tm, Vp), lambda i: (i, 0)),
        compiler_params=pltpu.CompilerParams(dimension_semantics=("parallel",)),
    )(x2d, w_out_padded)
    return out[:, :vocab_size]


# ----------------------------------------------------------------------------
# Model glue
# ----------------------------------------------------------------------------

def sinusoid_encoding(max_len, hidden_dim):
    pos = np.arange(max_len, dtype=np.float32)[:, None]
    div = np.exp(np.arange(0, hidden_dim, 2, dtype=np.float32)
                 * (-math.log(10000.0) / hidden_dim))
    pe = np.zeros((max_len, hidden_dim), dtype=np.float32)
    pe[:, 0::2] = np.sin(pos * div)
    pe[:, 1::2] = np.cos(pos * div)
    return jnp.asarray(pe)


@functools.partial(jax.jit, static_argnames=("num_heads",))
def transformer_decoder(params, input_tokens, encoder_hidden_states,
                        src_padding_mask, future_mask, num_heads):
    N, T = input_tokens.shape
    V, E = params["embed"].shape

    # embedding * sqrt(E) + positional encoding; dropout = identity (inference)
    # TODO(synk): token gather stays in plain JAX (no blocked Pallas win at this size).
    x = params["embed"][input_tokens] * math.sqrt(E)
    x = x + params["pos_enc"][:T][None, :, :]

    # masks -> small additive biases, broadcast inside the attention kernels
    self_bias = jnp.where(future_mask, 0.0, -1e9).astype(jnp.float32)[None]           # (1,T,T)
    cross_bias = jnp.where(src_padding_mask, 0.0, -1e9).astype(jnp.float32)[:, None, :]  # (N,1,S)

    for layer in params["layers"]:
        x = fused_decoder_block(x, encoder_hidden_states, self_bias, cross_bias,
                                layer, num_heads)

    # output layer tied to embedding weight (no bias): logits = x @ embed^T,
    # vocab zero-padded to a multiple of 128 for unmasked (lane-dense) stores.
    Vp = ((V + 127) // 128) * 128
    w_out = jnp.zeros((E, Vp), jnp.bfloat16).at[:, :V].set(
        params["embed"].T.astype(jnp.bfloat16))
    logits = pallas_logits(x.reshape(N * T, E), w_out, V)
    return logits.reshape(N, T, V)


# ----------------------------------------------------------------------------
# Deterministic parameter init (xavier-uniform-like)
# ----------------------------------------------------------------------------

def _xavier(key, shape, dtype=jnp.float32):
    bound = math.sqrt(6.0 / (shape[0] + shape[1]))
    return jax.random.uniform(key, shape, jnp.float32, -bound, bound).astype(dtype)


def init_params(key, vocab_size, hidden_dim, ff_dim, num_layers, max_len):
    keys = jax.random.split(key, 1 + 6 * num_layers)
    params = {
        "embed": _xavier(keys[0], (vocab_size, hidden_dim)),   # f32 (lookup + tied out)
        "pos_enc": sinusoid_encoding(max_len, hidden_dim),
        "layers": [],
    }
    ki = 1
    bf = jnp.bfloat16
    for _ in range(num_layers):
        layer = {
            # matmul weights stored bf16 (MXU operands); accumulation stays f32
            "self_wqkv":  _xavier(keys[ki + 0], (hidden_dim, 3 * hidden_dim), bf),
            "self_wo":    _xavier(keys[ki + 1], (hidden_dim, hidden_dim), bf),
            "cross_wqkv": _xavier(keys[ki + 2], (hidden_dim, 3 * hidden_dim), bf),
            "cross_wo":   _xavier(keys[ki + 3], (hidden_dim, hidden_dim), bf),
            "ff_w1": _xavier(keys[ki + 4], (hidden_dim, ff_dim), bf),
            "ff_b1": jnp.zeros((ff_dim,), jnp.float32),
            "ff_w2": _xavier(keys[ki + 5], (ff_dim, hidden_dim), bf),
            "ff_b2": jnp.zeros((hidden_dim,), jnp.float32),
            "ln1_g": jnp.ones((hidden_dim,), jnp.float32),
            "ln1_b": jnp.zeros((hidden_dim,), jnp.float32),
            "ln2_g": jnp.ones((hidden_dim,), jnp.float32),
            "ln2_b": jnp.zeros((hidden_dim,), jnp.float32),
            "ln3_g": jnp.ones((hidden_dim,), jnp.float32),
            "ln3_b": jnp.zeros((hidden_dim,), jnp.float32),
        }
        params["layers"].append(layer)
        ki += 6
    return params


# ----------------------------------------------------------------------------
# Main
# ----------------------------------------------------------------------------

if __name__ == "__main__":
    N, T, S = 2, 8, 8
    E, H, F = 32, 4, 64
    V, L = 50, 2
    MAX_LEN = 64

    key = jax.random.PRNGKey(0)
    k_par, k_tok, k_enc = jax.random.split(key, 3)

    params = init_params(k_par, V, E, F, L, MAX_LEN)

    input_tokens = jax.random.randint(k_tok, (N, T), 0, V, dtype=jnp.int32)
    encoder_hidden_states = jax.random.normal(k_enc, (N, S, E), jnp.float32)

    # src padding mask: True = attend, False = pad (batch 1 has 2 pad tokens)
    src_padding_mask = jnp.ones((N, S), dtype=bool).at[1, -2:].set(False)
    # future mask: lower-triangular causal mask (T, T)
    future_mask = jnp.tril(jnp.ones((T, T), dtype=bool))

    logits = transformer_decoder(params, input_tokens, encoder_hidden_states,
                                 src_padding_mask, future_mask, num_heads=H)
    jax.block_until_ready(logits)
    assert logits.shape == (N, T, V)
    assert bool(jnp.all(jnp.isfinite(logits)))
    print("KERNEL_OK")
</pallas_src>

<mosaic_0001>
module attributes {stable_mosaic.version = 11 : i64} {
  func.func @_matmul_kernel(%arg0: i32, %arg1: memref<8x32xf32, #tpu.memory_space<vmem>>, %arg2: memref<32x128xbf16, #tpu.memory_space<vmem>>, %arg3: memref<8x128xf32, #tpu.memory_space<vmem>>) attributes {dimension_semantics = [#tpu.dimension_semantics<parallel>], iteration_bounds = array<i64: 2>, scalar_prefetch = 0 : i64, scratch_operands = 0 : i64, tpu.core_type = #tpu.core_type<tc>, window_params = [{transform_indices = @transform_0, window_bounds = array<i64: 8, 32>}, {pipeline_mode = #tpu.pipeline_mode<synchronous>, transform_indices = @transform_1, window_bounds = array<i64: 32, 128>}, {transform_indices = @transform_2, window_bounds = array<i64: 8, 128>}]} {
    %c0 = arith.constant 0 : index
    %c0_0 = arith.constant 0 : index
    %0 = vector.load %arg1[%c0, %c0_0] : memref<8x32xf32, #tpu.memory_space<vmem>>, vector<8x32xf32>
    %1 = arith.truncf %0 : vector<8x32xf32> to vector<8x32xbf16>
    %c0_1 = arith.constant 0 : index
    %c0_2 = arith.constant 0 : index
    %2 = vector.load %arg2[%c0_1, %c0_2] : memref<32x128xbf16, #tpu.memory_space<vmem>>, vector<32x128xbf16>
    %cst = arith.constant dense<0.000000e+00> : vector<8x128xf32>
    %3 = tpu.matmul %1, %2, %cst {dimension_numbers = #tpu.dot_dimension_numbers<[1], [0], [0], [1], [0, 0, 1, 1], [], []>} : vector<8x32xbf16>, vector<32x128xbf16>, vector<8x128xf32> -> vector<8x128xf32>
    %c0_3 = arith.constant 0 : index
    %c0_4 = arith.constant 0 : index
    %4 = vector.load %arg3[%c0_3, %c0_4] : memref<8x128xf32, #tpu.memory_space<vmem>>, vector<8x128xf32>
    tpu.vector_store %arg3[%c0_3, %c0_4], %3 {strides = array<i32>} : memref<8x128xf32, #tpu.memory_space<vmem>>, vector<8x128xf32>,
    return
  }
  func.func @transform_0(%arg0: i32) -> (i32, i32) {
    %c0_i32 = arith.constant 0 : i32
    %c0_i32_0 = arith.constant 0 : i32
    return %arg0, %c0_i32 : i32, i32
  }
  func.func @transform_1(%arg0: i32) -> (i32, i32) {
    %c0_i32 = arith.constant 0 : i32
    %c0_i32_0 = arith.constant 0 : i32
    %c0_i32_1 = arith.constant 0 : i32
    return %c0_i32, %c0_i32_0 : i32, i32
  }
  func.func @transform_2(%arg0: i32) -> (i32, i32) {
    %c0_i32 = arith.constant 0 : i32
    %c0_i32_0 = arith.constant 0 : i32
    return %arg0, %c0_i32 : i32, i32
  }
}

module attributes {stable_mosaic.version = 11 : i64} {
  func.func @_decoder_block_kernel(%arg0: i32, %arg1: memref<1x8x32xf32, #tpu.memory_space<vmem>>, %arg2: memref<1x8x32xf32, #tpu.memory_space<vmem>>, %arg3: memref<1x8x8xf32, #tpu.memory_space<vmem>>, %arg4: memref<1x1x8xf32, #tpu.memory_space<vmem>>, %arg5: memref<32x96xbf16, #tpu.memory_space<vmem>>, %arg6: memref<32x32xbf16, #tpu.memory_space<vmem>>, %arg7: memref<1x32xf32, #tpu.memory_space<vmem>>, %arg8: memref<1x32xf32, #tpu.memory_space<vmem>>, %arg9: memref<32x96xbf16, #tpu.memory_space<vmem>>, %arg10: memref<32x32xbf16, #tpu.memory_space<vmem>>, %arg11: memref<1x32xf32, #tpu.memory_space<vmem>>, %arg12: memref<1x32xf32, #tpu.memory_space<vmem>>, %arg13: memref<32x64xbf16, #tpu.memory_space<vmem>>, %arg14: memref<1x64xf32, #tpu.memory_space<vmem>>, %arg15: memref<64x32xbf16, #tpu.memory_space<vmem>>, %arg16: memref<1x32xf32, #tpu.memory_space<vmem>>, %arg17: memref<1x32xf32, #tpu.memory_space<vmem>>, %arg18: memref<1x32xf32, #tpu.memory_space<vmem>>, %arg19: memref<1x8x32xf32, #tpu.memory_space<vmem>>) attributes {dimension_semantics = [#tpu.dimension_semantics<parallel>], iteration_bounds = array<i64: 2>, scalar_prefetch = 0 : i64, scratch_operands = 0 : i64, tpu.core_type = #tpu.core_type<tc>, window_params = [{transform_indices = @transform_0, window_bounds = array<i64: 1, 8, 32>}, {transform_indices = @transform_1, window_bounds = array<i64: 1, 8, 32>}, {pipeline_mode = #tpu.pipeline_mode<synchronous>, transform_indices = @transform_2, window_bounds = array<i64: 1, 8, 8>}, {transform_indices = @transform_3, window_bounds = array<i64: 1, 1, 8>}, {pipeline_mode = #tpu.pipeline_mode<synchronous>, transform_indices = @transform_4, window_bounds = array<i64: 32, 96>}, {pipeline_mode = #tpu.pipeline_mode<synchronous>, transform_indices = @transform_5, window_bounds = array<i64: 32, 32>}, {pipeline_mode = #tpu.pipeline_mode<synchronous>, transform_indices = @transform_6, window_bounds = array<i64: 1, 32>}, {pipeline_mode = #tpu.pipeline_mode<synchronous>, transform_indices = @transform_7, window_bounds = array<i64: 1, 32>}, {pipeline_mode = #tpu.pipeline_mode<synchronous>, transform_indices = @transform_8, window_bounds = array<i64: 32, 96>}, {pipeline_mode = #tpu.pipeline_mode<synchronous>, transform_indices = @transform_9, window_bounds = array<i64: 32, 32>}, {pipeline_mode = #tpu.pipeline_mode<synchronous>, transform_indices = @transform_10, window_bounds = array<i64: 1, 32>}, {pipeline_mode = #tpu.pipeline_mode<synchronous>, transform_indices = @transform_11, window_bounds = array<i64: 1, 32>}, {pipeline_mode = #tpu.pipeline_mode<synchronous>, transform_indices = @transform_12, window_bounds = array<i64: 32, 64>}, {pipeline_mode = #tpu.pipeline_mode<synchronous>, transform_indices = @transform_13, window_bounds = array<i64: 1, 64>}, {pipeline_mode = #tpu.pipeline_mode<synchronous>, transform_indices = @transform_14, window_bounds = array<i64: 64, 32>}, {pipeline_mode = #tpu.pipeline_mode<synchronous>, transform_indices = @transform_15, window_bounds = array<i64: 1, 32>}, {pipeline_mode = #tpu.pipeline_mode<synchronous>, transform_indices = @transform_16, window_bounds = array<i64: 1, 32>}, {pipeline_mode = #tpu.pipeline_mode<synchronous>, transform_indices = @transform_17, window_bounds = array<i64: 1, 32>}, {transform_indices = @transform_18, window_bounds = array<i64: 1, 8, 32>}]} {
    %c0 = arith.constant 0 : index
    %c0_0 = arith.constant 0 : index
    %c0_1 = arith.constant 0 : index
    %0 = vector.load %arg1[%c0, %c0_0, %c0_1] : memref<1x8x32xf32, #tpu.memory_space<vmem>>, vector<1x8x32xf32>
    %1 = vector.shape_cast %0 : vector<1x8x32xf32> to vector<8x32xf32>
    %c0_2 = arith.constant 0 : index
    %c0_3 = arith.constant 0 : index
    %c0_4 = arith.constant 0 : index
    %2 = vector.load %arg2[%c0_2, %c0_3, %c0_4] : memref<1x8x32xf32, #tpu.memory_space<vmem>>, vector<1x8x32xf32>
    %3 = vector.shape_cast %2 : vector<1x8x32xf32> to vector<8x32xf32>
    %4 = arith.truncf %1 : vector<8x32xf32> to vector<8x32xbf16>
    %c0_5 = arith.constant 0 : index
    %c0_6 = arith.constant 0 : index
    %5 = vector.load %arg5[%c0_5, %c0_6] : memref<32x96xbf16, #tpu.memory_space<vmem>>, vector<32x96xbf16>
    %cst = arith.constant dense<0.000000e+00> : vector<8x96xf32>
    %6 = tpu.matmul %4, %5, %cst {dimension_numbers = #tpu.dot_dimension_numbers<[1], [0], [0], [1], [0, 0, 1, 1], [], []>} : vector<8x32xbf16>, vector<32x96xbf16>, vector<8x96xf32> -> vector<8x96xf32>
    %7 = vector.extract_strided_slice %6 {offsets = [0, 0], sizes = [8, 32], strides = [1, 1]} : vector<8x96xf32> to vector<8x32xf32>
    %cst_7 = arith.constant 0.353553385 : f32
    %8 = vector.broadcast %cst_7 : f32 to vector<8x32xf32>
    %9 = arith.mulf %7, %8 : vector<8x32xf32>
    %10 = vector.extract_strided_slice %6 {offsets = [0, 32], sizes = [8, 32], strides = [1, 1]} : vector<8x96xf32> to vector<8x32xf32>
    %11 = vector.extract_strided_slice %6 {offsets = [0, 64], sizes = [8, 32], strides = [1, 1]} : vector<8x96xf32> to vector<8x32xf32>
    %c0_8 = arith.constant 0 : index
    %c0_9 = arith.constant 0 : index
    %c0_10 = arith.constant 0 : index
    %12 = vector.load %arg3[%c0_8, %c0_9, %c0_10] : memref<1x8x8xf32, #tpu.memory_space<vmem>>, vector<1x8x8xf32>
    %13 = vector.shape_cast %12 : vector<1x8x8xf32> to vector<8x8xf32>
    %14 = vector.extract_strided_slice %9 {offsets = [0, 0], sizes = [8, 8], strides = [1, 1]} : vector<8x32xf32> to vector<8x8xf32>
    %15 = arith.truncf %14 : vector<8x8xf32> to vector<8x8xbf16>
    %16 = vector.extract_strided_slice %10 {offsets = [0, 0], sizes = [8, 8], strides = [1, 1]} : vector<8x32xf32> to vector<8x8xf32>
    %17 = tpu.transpose %16, [1, 0] : vector<8x8xf32> -> vector<8x8xf32>
    %18 = arith.truncf %17 : vector<8x8xf32> to vector<8x8xbf16>
    %cst_11 = arith.constant dense<0.000000e+00> : vector<8x8xf32>
    %19 = tpu.matmul %15, %18, %cst_11 {dimension_numbers = #tpu.dot_dimension_numbers<[1], [0], [0], [1], [0, 0, 1, 1], [], []>} : vector<8x8xbf16>, vector<8x8xbf16>, vector<8x8xf32> -> vector<8x8xf32>
    %20 = arith.addf %19, %13 : vector<8x8xf32>
    %21 = vector.extract_strided_slice %9 {offsets = [0, 8], sizes = [8, 8], strides = [1, 1]} : vector<8x32xf32> to vector<8x8xf32>
    %22 = arith.truncf %21 : vector<8x8xf32> to vector<8x8xbf16>
    %23 = vector.extract_strided_slice %10 {offsets = [0, 8], sizes = [8, 8], strides = [1, 1]} : vector<8x32xf32> to vector<8x8xf32>
    %24 = tpu.transpose %23, [1, 0] : vector<8x8xf32> -> vector<8x8xf32>
    %25 = arith.truncf %24 : vector<8x8xf32> to vector<8x8xbf16>
    %cst_12 = arith.constant dense<0.000000e+00> : vector<8x8xf32>
    %26 = tpu.matmul %22, %25, %cst_12 {dimension_numbers = #tpu.dot_dimension_numbers<[1], [0], [0], [1], [0, 0, 1, 1], [], []>} : vector<8x8xbf16>, vector<8x8xbf16>, vector<8x8xf32> -> vector<8x8xf32>
    %27 = arith.addf %26, %13 : vector<8x8xf32>
    %28 = vector.extract_strided_slice %9 {offsets = [0, 16], sizes = [8, 8], strides = [1, 1]} : vector<8x32xf32> to vector<8x8xf32>
    %29 = arith.truncf %28 : vector<8x8xf32> to vector<8x8xbf16>
    %30 = vector.extract_strided_slice %10 {offsets = [0, 16], sizes = [8, 8], strides = [1, 1]} : vector<8x32xf32> to vector<8x8xf32>
    %31 = tpu.transpose %30, [1, 0] : vector<8x8xf32> -> vector<8x8xf32>
    %32 = arith.truncf %31 : vector<8x8xf32> to vector<8x8xbf16>
    %cst_13 = arith.constant dense<0.000000e+00> : vector<8x8xf32>
    %33 = tpu.matmul %29, %32, %cst_13 {dimension_numbers = #tpu.dot_dimension_numbers<[1], [0], [0], [1], [0, 0, 1, 1], [], []>} : vector<8x8xbf16>, vector<8x8xbf16>, vector<8x8xf32> -> vector<8x8xf32>
    %34 = arith.addf %33, %13 : vector<8x8xf32>
    %35 = vector.extract_strided_slice %9 {offsets = [0, 24], sizes = [8, 8], strides = [1, 1]} : vector<8x32xf32> to vector<8x8xf32>
    %36 = arith.truncf %35 : vector<8x8xf32> to vector<8x8xbf16>
    %37 = vector.extract_strided_slice %10 {offsets = [0, 24], sizes = [8, 8], strides = [1, 1]} : vector<8x32xf32> to vector<8x8xf32>
    %38 = tpu.transpose %37, [1, 0] : vector<8x8xf32> -> vector<8x8xf32>
    %39 = arith.truncf %38 : vector<8x8xf32> to vector<8x8xbf16>
    %cst_14 = arith.constant dense<0.000000e+00> : vector<8x8xf32>
    %40 = tpu.matmul %36, %39, %cst_14 {dimension_numbers = #tpu.dot_dimension_numbers<[1], [0], [0], [1], [0, 0, 1, 1], [], []>} : vector<8x8xbf16>, vector<8x8xbf16>, vector<8x8xf32> -> vector<8x8xf32>
    %41 = arith.addf %40, %13 : vector<8x8xf32>
    %42 = tpu.concatenate %20, %27, %34, %41 in 0 : vector<8x8xf32>, vector<8x8xf32>, vector<8x8xf32>, vector<8x8xf32> -> vector<32x8xf32>
    %cst_15 = arith.constant dense<0xFF800000> : vector<32xf32>
    %43 = vector.multi_reduction <maximumf>, %42, %cst_15 [1] : vector<32x8xf32> to vector<32xf32>
    %44 = vector.shape_cast %43 : vector<32xf32> to vector<32x1xf32>
    %45 = vector.broadcast %44 : vector<32x1xf32> to vector<32x8xf32>
    %46 = arith.subf %42, %45 : vector<32x8xf32>
    %47 = math.exp %46 : vector<32x8xf32>
    %cst_16 = arith.constant dense<0.000000e+00> : vector<32xf32>
    %48 = vector.multi_reduction <add>, %47, %cst_16 [1] : vector<32x8xf32> to vector<32xf32>
    %49 = vector.shape_cast %48 : vector<32xf32> to vector<32x1xf32>
    %50 = tpu.reciprocal %49 {approx = true} : vector<32x1xf32> -> vector<32x1xf32>
    %51 = vector.broadcast %50 : vector<32x1xf32> to vector<32x8xf32>
    %52 = arith.mulf %47, %51 : vector<32x8xf32>
    %53 = vector.extract_strided_slice %52 {offsets = [0, 0], sizes = [8, 8], strides = [1, 1]} : vector<32x8xf32> to vector<8x8xf32>
    %54 = arith.truncf %53 : vector<8x8xf32> to vector<8x8xbf16>
    %55 = vector.extract_strided_slice %11 {offsets = [0, 0], sizes = [8, 8], strides = [1, 1]} : vector<8x32xf32> to vector<8x8xf32>
    %56 = arith.truncf %55 : vector<8x8xf32> to vector<8x8xbf16>
    %cst_17 = arith.constant dense<0.000000e+00> : vector<8x8xf32>
    %57 = tpu.matmul %54, %56, %cst_17 {dimension_numbers = #tpu.dot_dimension_numbers<[1], [0], [0], [1], [0, 0, 1, 1], [], []>} : vector<8x8xbf16>, vector<8x8xbf16>, vector<8x8xf32> -> vector<8x8xf32>
    %58 = vector.extract_strided_slice %52 {offsets = [8, 0], sizes = [8, 8], strides = [1, 1]} : vector<32x8xf32> to vector<8x8xf32>
    %59 = arith.truncf %58 : vector<8x8xf32> to vector<8x8xbf16>
    %60 = vector.extract_strided_slice %11 {offsets = [0, 8], sizes = [8, 8], strides = [1, 1]} : vector<8x32xf32> to vector<8x8xf32>
    %61 = arith.truncf %60 : vector<8x8xf32> to vector<8x8xbf16>
    %cst_18 = arith.constant dense<0.000000e+00> : vector<8x8xf32>
    %62 = tpu.matmul %59, %61, %cst_18 {dimension_numbers = #tpu.dot_dimension_numbers<[1], [0], [0], [1], [0, 0, 1, 1], [], []>} : vector<8x8xbf16>, vector<8x8xbf16>, vector<8x8xf32> -> vector<8x8xf32>
    %63 = vector.extract_strided_slice %52 {offsets = [16, 0], sizes = [8, 8], strides = [1, 1]} : vector<32x8xf32> to vector<8x8xf32>
    %64 = arith.truncf %63 : vector<8x8xf32> to vector<8x8xbf16>
    %65 = vector.extract_strided_slice %11 {offsets = [0, 16], sizes = [8, 8], strides = [1, 1]} : vector<8x32xf32> to vector<8x8xf32>
    %66 = arith.truncf %65 : vector<8x8xf32> to vector<8x8xbf16>
    %cst_19 = arith.constant dense<0.000000e+00> : vector<8x8xf32>
    %67 = tpu.matmul %64, %66, %cst_19 {dimension_numbers = #tpu.dot_dimension_numbers<[1], [0], [0], [1], [0, 0, 1, 1], [], []>} : vector<8x8xbf16>, vector<8x8xbf16>, vector<8x8xf32> -> vector<8x8xf32>
    %68 = vector.extract_strided_slice %52 {offsets = [24, 0], sizes = [8, 8], strides = [1, 1]} : vector<32x8xf32> to vector<8x8xf32>
    %69 = arith.truncf %68 : vector<8x8xf32> to vector<8x8xbf16>
    %70 = vector.extract_strided_slice %11 {offsets = [0, 24], sizes = [8, 8], strides = [1, 1]} : vector<8x32xf32> to vector<8x8xf32>
    %71 = arith.truncf %70 : vector<8x8xf32> to vector<8x8xbf16>
    %cst_20 = arith.constant dense<0.000000e+00> : vector<8x8xf32>
    %72 = tpu.matmul %69, %71, %cst_20 {dimension_numbers = #tpu.dot_dimension_numbers<[1], [0], [0], [1], [0, 0, 1, 1], [], []>} : vector<8x8xbf16>, vector<8x8xbf16>, vector<8x8xf32> -> vector<8x8xf32>
    %73 = tpu.concatenate %57, %62, %67, %72 in 1 : vector<8x8xf32>, vector<8x8xf32>, vector<8x8xf32>, vector<8x8xf32> -> vector<8x32xf32>
    %74 = arith.truncf %73 : vector<8x32xf32> to vector<8x32xbf16>
    %c0_21 = arith.constant 0 : index
    %c0_22 = arith.constant 0 : index
    %75 = vector.load %arg6[%c0_21, %c0_22] : memref<32x32xbf16, #tpu.memory_space<vmem>>, vector<32x32xbf16>
    %cst_23 = arith.constant dense<0.000000e+00> : vector<8x32xf32>
    %76 = tpu.matmul %74, %75, %cst_23 {dimension_numbers = #tpu.dot_dimension_numbers<[1], [0], [0], [1], [0, 0, 1, 1], [], []>} : vector<8x32xbf16>, vector<32x32xbf16>, vector<8x32xf32> -> vector<8x32xf32>
    %77 = arith.addf %1, %76 : vector<8x32xf32>
    %c0_24 = arith.constant 0 : index
    %c0_25 = arith.constant 0 : index
    %78 = vector.load %arg7[%c0_24, %c0_25] : memref<1x32xf32, #tpu.memory_space<vmem>>, vector<1x32xf32>
    %c0_26 = arith.constant 0 : index
    %c0_27 = arith.constant 0 : index
    %79 = vector.load %arg8[%c0_26, %c0_27] : memref<1x32xf32, #tpu.memory_space<vmem>>, vector<1x32xf32>
    %cst_28 = arith.constant dense<0.000000e+00> : vector<8xf32>
    %80 = vector.multi_reduction <add>, %77, %cst_28 [1] : vector<8x32xf32> to vector<8xf32>
    %81 = vector.shape_cast %80 : vector<8xf32> to vector<8x1xf32>
    %cst_29 = arith.constant 3.200000e+01 : f32
    %82 = vector.broadcast %cst_29 : f32 to vector<8x1xf32>
    %83 = arith.divf %81, %82 : vector<8x1xf32>
    %84 = vector.broadcast %83 : vector<8x1xf32> to vector<8x32xf32>
    %85 = arith.subf %77, %84 : vector<8x32xf32>
    %86 = arith.mulf %85, %85 : vector<8x32xf32>
    %cst_30 = arith.constant dense<0.000000e+00> : vector<8xf32>
    %87 = vector.multi_reduction <add>, %86, %cst_30 [1] : vector<8x32xf32> to vector<8xf32>
    %88 = vector.shape_cast %87 : vector<8xf32> to vector<8x1xf32>
    %cst_31 = arith.constant 3.200000e+01 : f32
    %89 = vector.broadcast %cst_31 : f32 to vector<8x1xf32>
    %90 = arith.divf %88, %89 : vector<8x1xf32>
    %91 = vector.broadcast %83 : vector<8x1xf32> to vector<8x32xf32>
    %92 = arith.subf %77, %91 : vector<8x32xf32>
    %cst_32 = arith.constant 9.99999974E-6 : f32
    %93 = vector.broadcast %cst_32 : f32 to vector<8x1xf32>
    %94 = arith.addf %90, %93 : vector<8x1xf32>
    %95 = math.rsqrt %94 : vector<8x1xf32>
    %96 = vector.broadcast %95 : vector<8x1xf32> to vector<8x32xf32>
    %97 = arith.mulf %92, %96 : vector<8x32xf32>
    %98 = vector.broadcast %78 : vector<1x32xf32> to vector<8x32xf32>
    %99 = arith.mulf %97, %98 : vector<8x32xf32>
    %100 = vector.broadcast %79 : vector<1x32xf32> to vector<8x32xf32>
    %101 = arith.addf %99, %100 : vector<8x32xf32>
    %c0_33 = arith.constant 0 : index
    %c0_34 = arith.constant 0 : index
    %102 = vector.load %arg9[%c0_33, %c0_34] : memref<32x96xbf16, #tpu.memory_space<vmem>>, vector<32x96xbf16>
    %103 = arith.truncf %101 : vector<8x32xf32> to vector<8x32xbf16>
    %104 = arith.truncf %3 : vector<8x32xf32> to vector<8x32xbf16>
    %105 = vector.extract_strided_slice %102 {offsets = [0, 0], sizes = [32, 32], strides = [1, 1]} : vector<32x96xbf16> to vector<32x32xbf16>
    %cst_35 = arith.constant dense<0.000000e+00> : vector<8x32xf32>
    %106 = tpu.matmul %103, %105, %cst_35 {dimension_numbers = #tpu.dot_dimension_numbers<[1], [0], [0], [1], [0, 0, 1, 1], [], []>} : vector<8x32xbf16>, vector<32x32xbf16>, vector<8x32xf32> -> vector<8x32xf32>
    %cst_36 = arith.constant 0.353553385 : f32
    %107 = vector.broadcast %cst_36 : f32 to vector<8x32xf32>
    %108 = arith.mulf %106, %107 : vector<8x32xf32>
    %109 = vector.extract_strided_slice %102 {offsets = [0, 32], sizes = [32, 64], strides = [1, 1]} : vector<32x96xbf16> to vector<32x64xbf16>
    %cst_37 = arith.constant dense<0.000000e+00> : vector<8x64xf32>
    %110 = tpu.matmul %104, %109, %cst_37 {dimension_numbers = #tpu.dot_dimension_numbers<[1], [0], [0], [1], [0, 0, 1, 1], [], []>} : vector<8x32xbf16>, vector<32x64xbf16>, vector<8x64xf32> -> vector<8x64xf32>
    %111 = vector.extract_strided_slice %110 {offsets = [0, 0], sizes = [8, 32], strides = [1, 1]} : vector<8x64xf32> to vector<8x32xf32>
    %112 = vector.extract_strided_slice %110 {offsets = [0, 32], sizes = [8, 32], strides = [1, 1]} : vector<8x64xf32> to vector<8x32xf32>
    %c0_38 = arith.constant 0 : index
    %c0_39 = arith.constant 0 : index
    %c0_40 = arith.constant 0 : index
    %113 = vector.load %arg4[%c0_38, %c0_39, %c0_40] : memref<1x1x8xf32, #tpu.memory_space<vmem>>, vector<1x1x8xf32>
    %114 = vector.shape_cast %113 : vector<1x1x8xf32> to vector<1x8xf32>
    %115 = vector.extract_strided_slice %108 {offsets = [0, 0], sizes = [8, 8], strides = [1, 1]} : vector<8x32xf32> to vector<8x8xf32>
    %116 = arith.truncf %115 : vector<8x8xf32> to vector<8x8xbf16>
    %117 = vector.extract_strided_slice %111 {offsets = [0, 0], sizes = [8, 8], strides = [1, 1]} : vector<8x32xf32> to vector<8x8xf32>
    %118 = tpu.transpose %117, [1, 0] : vector<8x8xf32> -> vector<8x8xf32>
    %119 = arith.truncf %118 : vector<8x8xf32> to vector<8x8xbf16>
    %cst_41 = arith.constant dense<0.000000e+00> : vector<8x8xf32>
    %120 = tpu.matmul %116, %119, %cst_41 {dimension_numbers = #tpu.dot_dimension_numbers<[1], [0], [0], [1], [0, 0, 1, 1], [], []>} : vector<8x8xbf16>, vector<8x8xbf16>, vector<8x8xf32> -> vector<8x8xf32>
    %121 = vector.broadcast %114 : vector<1x8xf32> to vector<8x8xf32>
    %122 = arith.addf %120, %121 : vector<8x8xf32>
    %123 = vector.extract_strided_slice %108 {offsets = [0, 8], sizes = [8, 8], strides = [1, 1]} : vector<8x32xf32> to vector<8x8xf32>
    %124 = arith.truncf %123 : vector<8x8xf32> to vector<8x8xbf16>
    %125 = vector.extract_strided_slice %111 {offsets = [0, 8], sizes = [8, 8], strides = [1, 1]} : vector<8x32xf32> to vector<8x8xf32>
    %126 = tpu.transpose %125, [1, 0] : vector<8x8xf32> -> vector<8x8xf32>
    %127 = arith.truncf %126 : vector<8x8xf32> to vector<8x8xbf16>
    %cst_42 = arith.constant dense<0.000000e+00> : vector<8x8xf32>
    %128 = tpu.matmul %124, %127, %cst_42 {dimension_numbers = #tpu.dot_dimension_numbers<[1], [0], [0], [1], [0, 0, 1, 1], [], []>} : vector<8x8xbf16>, vector<8x8xbf16>, vector<8x8xf32> -> vector<8x8xf32>
    %129 = vector.broadcast %114 : vector<1x8xf32> to vector<8x8xf32>
    %130 = arith.addf %128, %129 : vector<8x8xf32>
    %131 = vector.extract_strided_slice %108 {offsets = [0, 16], sizes = [8, 8], strides = [1, 1]} : vector<8x32xf32> to vector<8x8xf32>
    %132 = arith.truncf %131 : vector<8x8xf32> to vector<8x8xbf16>
    %133 = vector.extract_strided_slice %111 {offsets = [0, 16], sizes = [8, 8], strides = [1, 1]} : vector<8x32xf32> to vector<8x8xf32>
    %134 = tpu.transpose %133, [1, 0] : vector<8x8xf32> -> vector<8x8xf32>
    %135 = arith.truncf %134 : vector<8x8xf32> to vector<8x8xbf16>
    %cst_43 = arith.constant dense<0.000000e+00> : vector<8x8xf32>
    %136 = tpu.matmul %132, %135, %cst_43 {dimension_numbers = #tpu.dot_dimension_numbers<[1], [0], [0], [1], [0, 0, 1, 1], [], []>} : vector<8x8xbf16>, vector<8x8xbf16>, vector<8x8xf32> -> vector<8x8xf32>
    %137 = vector.broadcast %114 : vector<1x8xf32> to vector<8x8xf32>
    %138 = arith.addf %136, %137 : vector<8x8xf32>
    %139 = vector.extract_strided_slice %108 {offsets = [0, 24], sizes = [8, 8], strides = [1, 1]} : vector<8x32xf32> to vector<8x8xf32>
    %140 = arith.truncf %139 : vector<8x8xf32> to vector<8x8xbf16>
    %141 = vector.extract_strided_slice %111 {offsets = [0, 24], sizes = [8, 8], strides = [1, 1]} : vector<8x32xf32> to vector<8x8xf32>
    %142 = tpu.transpose %141, [1, 0] : vector<8x8xf32> -> vector<8x8xf32>
    %143 = arith.truncf %142 : vector<8x8xf32> to vector<8x8xbf16>
    %cst_44 = arith.constant dense<0.000000e+00> : vector<8x8xf32>
    %144 = tpu.matmul %140, %143, %cst_44 {dimension_numbers = #tpu.dot_dimension_numbers<[1], [0], [0], [1], [0, 0, 1, 1], [], []>} : vector<8x8xbf16>, vector<8x8xbf16>, vector<8x8xf32> -> vector<8x8xf32>
    %145 = vector.broadcast %114 : vector<1x8xf32> to vector<8x8xf32>
    %146 = arith.addf %144, %145 : vector<8x8xf32>
    %147 = tpu.concatenate %122, %130, %138, %146 in 0 : vector<8x8xf32>, vector<8x8xf32>, vector<8x8xf32>, vector<8x8xf32> -> vector<32x8xf32>
    %cst_45 = arith.constant dense<0xFF800000> : vector<32xf32>
    %148 = vector.multi_reduction <maximumf>, %147, %cst_45 [1] : vector<32x8xf32> to vector<32xf32>
    %149 = vector.shape_cast %148 : vector<32xf32> to vector<32x1xf32>
    %150 = vector.broadcast %149 : vector<32x1xf32> to vector<32x8xf32>
    %151 = arith.subf %147, %150 : vector<32x8xf32>
    %152 = math.exp %151 : vector<32x8xf32>
    %cst_46 = arith.constant dense<0.000000e+00> : vector<32xf32>
    %153 = vector.multi_reduction <add>, %152, %cst_46 [1] : vector<32x8xf32> to vector<32xf32>
    %154 = vector.shape_cast %153 : vector<32xf32> to vector<32x1xf32>
    %155 = tpu.reciprocal %154 {approx = true} : vector<32x1xf32> -> vector<32x1xf32>
    %156 = vector.broadcast %155 : vector<32x1xf32> to vector<32x8xf32>
    %157 = arith.mulf %152, %156 : vector<32x8xf32>
    %158 = vector.extract_strided_slice %157 {offsets = [0, 0], sizes = [8, 8], strides = [1, 1]} : vector<32x8xf32> to vector<8x8xf32>
    %159 = arith.truncf %158 : vector<8x8xf32> to vector<8x8xbf16>
    %160 = vector.extract_strided_slice %112 {offsets = [0, 0], sizes = [8, 8], strides = [1, 1]} : vector<8x32xf32> to vector<8x8xf32>
    %161 = arith.truncf %160 : vector<8x8xf32> to vector<8x8xbf16>
    %cst_47 = arith.constant dense<0.000000e+00> : vector<8x8xf32>
    %162 = tpu.matmul %159, %161, %cst_47 {dimension_numbers = #tpu.dot_dimension_numbers<[1], [0], [0], [1], [0, 0, 1, 1], [], []>} : vector<8x8xbf16>, vector<8x8xbf16>, vector<8x8xf32> -> vector<8x8xf32>
    %163 = vector.extract_strided_slice %157 {offsets = [8, 0], sizes = [8, 8], strides = [1, 1]} : vector<32x8xf32> to vector<8x8xf32>
    %164 = arith.truncf %163 : vector<8x8xf32> to vector<8x8xbf16>
    %165 = vector.extract_strided_slice %112 {offsets = [0, 8], sizes = [8, 8], strides = [1, 1]} : vector<8x32xf32> to vector<8x8xf32>
    %166 = arith.truncf %165 : vector<8x8xf32> to vector<8x8xbf16>
    %cst_48 = arith.constant dense<0.000000e+00> : vector<8x8xf32>
    %167 = tpu.matmul %164, %166, %cst_48 {dimension_numbers = #tpu.dot_dimension_numbers<[1], [0], [0], [1], [0, 0, 1, 1], [], []>} : vector<8x8xbf16>, vector<8x8xbf16>, vector<8x8xf32> -> vector<8x8xf32>
    %168 = vector.extract_strided_slice %157 {offsets = [16, 0], sizes = [8, 8], strides = [1, 1]} : vector<32x8xf32> to vector<8x8xf32>
    %169 = arith.truncf %168 : vector<8x8xf32> to vector<8x8xbf16>
    %170 = vector.extract_strided_slice %112 {offsets = [0, 16], sizes = [8, 8], strides = [1, 1]} : vector<8x32xf32> to vector<8x8xf32>
    %171 = arith.truncf %170 : vector<8x8xf32> to vector<8x8xbf16>
    %cst_49 = arith.constant dense<0.000000e+00> : vector<8x8xf32>
    %172 = tpu.matmul %169, %171, %cst_49 {dimension_numbers = #tpu.dot_dimension_numbers<[1], [0], [0], [1], [0, 0, 1, 1], [], []>} : vector<8x8xbf16>, vector<8x8xbf16>, vector<8x8xf32> -> vector<8x8xf32>
    %173 = vector.extract_strided_slice %157 {offsets = [24, 0], sizes = [8, 8], strides = [1, 1]} : vector<32x8xf32> to vector<8x8xf32>
    %174 = arith.truncf %173 : vector<8x8xf32> to vector<8x8xbf16>
    %175 = vector.extract_strided_slice %112 {offsets = [0, 24], sizes = [8, 8], strides = [1, 1]} : vector<8x32xf32> to vector<8x8xf32>
    %176 = arith.truncf %175 : vector<8x8xf32> to vector<8x8xbf16>
    %cst_50 = arith.constant dense<0.000000e+00> : vector<8x8xf32>
    %177 = tpu.matmul %174, %176, %cst_50 {dimension_numbers = #tpu.dot_dimension_numbers<[1], [0], [0], [1], [0, 0, 1, 1], [], []>} : vector<8x8xbf16>, vector<8x8xbf16>, vector<8x8xf32> -> vector<8x8xf32>
    %178 = tpu.concatenate %162, %167, %172, %177 in 1 : vector<8x8xf32>, vector<8x8xf32>, vector<8x8xf32>, vector<8x8xf32> -> vector<8x32xf32>
    %179 = arith.truncf %178 : vector<8x32xf32> to vector<8x32xbf16>
    %c0_51 = arith.constant 0 : index
    %c0_52 = arith.constant 0 : index
    %180 = vector.load %arg10[%c0_51, %c0_52] : memref<32x32xbf16, #tpu.memory_space<vmem>>, vector<32x32xbf16>
    %cst_53 = arith.constant dense<0.000000e+00> : vector<8x32xf32>
    %181 = tpu.matmul %179, %180, %cst_53 {dimension_numbers = #tpu.dot_dimension_numbers<[1], [0], [0], [1], [0, 0, 1, 1], [], []>} : vector<8x32xbf16>, vector<32x32xbf16>, vector<8x32xf32> -> vector<8x32xf32>
    %182 = arith.addf %101, %181 : vector<8x32xf32>
    %c0_54 = arith.constant 0 : index
    %c0_55 = arith.constant 0 : index
    %183 = vector.load %arg11[%c0_54, %c0_55] : memref<1x32xf32, #tpu.memory_space<vmem>>, vector<1x32xf32>
    %c0_56 = arith.constant 0 : index
    %c0_57 = arith.constant 0 : index
    %184 = vector.load %arg12[%c0_56, %c0_57] : memref<1x32xf32, #tpu.memory_space<vmem>>, vector<1x32xf32>
    %cst_58 = arith.constant dense<0.000000e+00> : vector<8xf32>
    %185 = vector.multi_reduction <add>, %182, %cst_58 [1] : vector<8x32xf32> to vector<8xf32>
    %186 = vector.shape_cast %185 : vector<8xf32> to vector<8x1xf32>
    %cst_59 = arith.constant 3.200000e+01 : f32
    %187 = vector.broadcast %cst_59 : f32 to vector<8x1xf32>
    %188 = arith.divf %186, %187 : vector<8x1xf32>
    %189 = vector.broadcast %188 : vector<8x1xf32> to vector<8x32xf32>
    %190 = arith.subf %182, %189 : vector<8x32xf32>
    %191 = arith.mulf %190, %190 : vector<8x32xf32>
    %cst_60 = arith.constant dense<0.000000e+00> : vector<8xf32>
    %192 = vector.multi_reduction <add>, %191, %cst_60 [1] : vector<8x32xf32> to vector<8xf32>
    %193 = vector.shape_cast %192 : vector<8xf32> to vector<8x1xf32>
    %cst_61 = arith.constant 3.200000e+01 : f32
    %194 = vector.broadcast %cst_61 : f32 to vector<8x1xf32>
    %195 = arith.divf %193, %194 : vector<8x1xf32>
    %196 = vector.broadcast %188 : vector<8x1xf32> to vector<8x32xf32>
    %197 = arith.subf %182, %196 : vector<8x32xf32>
    %cst_62 = arith.constant 9.99999974E-6 : f32
    %198 = vector.broadcast %cst_62 : f32 to vector<8x1xf32>
    %199 = arith.addf %195, %198 : vector<8x1xf32>
    %200 = math.rsqrt %199 : vector<8x1xf32>
    %201 = vector.broadcast %200 : vector<8x1xf32> to vector<8x32xf32>
    %202 = arith.mulf %197, %201 : vector<8x32xf32>
    %203 = vector.broadcast %183 : vector<1x32xf32> to vector<8x32xf32>
    %204 = arith.mulf %202, %203 : vector<8x32xf32>
    %205 = vector.broadcast %184 : vector<1x32xf32> to vector<8x32xf32>
    %206 = arith.addf %204, %205 : vector<8x32xf32>
    %207 = arith.truncf %206 : vector<8x32xf32> to vector<8x32xbf16>
    %c0_63 = arith.constant 0 : index
    %c0_64 = arith.constant 0 : index
    %208 = vector.load %arg13[%c0_63, %c0_64] : memref<32x64xbf16, #tpu.memory_space<vmem>>, vector<32x64xbf16>
    %cst_65 = arith.constant dense<0.000000e+00> : vector<8x64xf32>
    %209 = tpu.matmul %207, %208, %cst_65 {dimension_numbers = #tpu.dot_dimension_numbers<[1], [0], [0], [1], [0, 0, 1, 1], [], []>} : vector<8x32xbf16>, vector<32x64xbf16>, vector<8x64xf32> -> vector<8x64xf32>
    %c0_66 = arith.constant 0 : index
    %c0_67 = arith.constant 0 : index
    %210 = vector.load %arg14[%c0_66, %c0_67] : memref<1x64xf32, #tpu.memory_space<vmem>>, vector<1x64xf32>
    %211 = vector.broadcast %210 : vector<1x64xf32> to vector<8x64xf32>
    %212 = arith.addf %209, %211 : vector<8x64xf32>
    %cst_68 = arith.constant 0.000000e+00 : f32
    %213 = vector.broadcast %cst_68 : f32 to vector<8x64xf32>
    %214 = arith.maximumf %212, %213 : vector<8x64xf32>
    %215 = arith.truncf %214 : vector<8x64xf32> to vector<8x64xbf16>
    %c0_69 = arith.constant 0 : index
    %c0_70 = arith.constant 0 : index
    %216 = vector.load %arg15[%c0_69, %c0_70] : memref<64x32xbf16, #tpu.memory_space<vmem>>, vector<64x32xbf16>
    %cst_71 = arith.constant dense<0.000000e+00> : vector<8x32xf32>
    %217 = tpu.matmul %215, %216, %cst_71 {dimension_numbers = #tpu.dot_dimension_numbers<[1], [0], [0], [1], [0, 0, 1, 1], [], []>} : vector<8x64xbf16>, vector<64x32xbf16>, vector<8x32xf32> -> vector<8x32xf32>
    %c0_72 = arith.constant 0 : index
    %c0_73 = arith.constant 0 : index
    %218 = vector.load %arg16[%c0_72, %c0_73] : memref<1x32xf32, #tpu.memory_space<vmem>>, vector<1x32xf32>
    %219 = vector.broadcast %218 : vector<1x32xf32> to vector<8x32xf32>
    %220 = arith.addf %217, %219 : vector<8x32xf32>
    %221 = arith.addf %206, %220 : vector<8x32xf32>
    %c0_74 = arith.constant 0 : index
    %c0_75 = arith.constant 0 : index
    %222 = vector.load %arg17[%c0_74, %c0_75] : memref<1x32xf32, #tpu.memory_space<vmem>>, vector<1x32xf32>
    %c0_76 = arith.constant 0 : index
    %c0_77 = arith.constant 0 : index
    %223 = vector.load %arg18[%c0_76, %c0_77] : memref<1x32xf32, #tpu.memory_space<vmem>>, vector<1x32xf32>
    %cst_78 = arith.constant dense<0.000000e+00> : vector<8xf32>
    %224 = vector.multi_reduction <add>, %221, %cst_78 [1] : vector<8x32xf32> to vector<8xf32>
    %225 = vector.shape_cast %224 : vector<8xf32> to vector<8x1xf32>
    %cst_79 = arith.constant 3.200000e+01 : f32
    %226 = vector.broadcast %cst_79 : f32 to vector<8x1xf32>
    %227 = arith.divf %225, %226 : vector<8x1xf32>
    %228 = vector.broadcast %227 : vector<8x1xf32> to vector<8x32xf32>
    %229 = arith.subf %221, %228 : vector<8x32xf32>
    %230 = arith.mulf %229, %229 : vector<8x32xf32>
    %cst_80 = arith.constant dense<0.000000e+00> : vector<8xf32>
    %231 = vector.multi_reduction <add>, %230, %cst_80 [1] : vector<8x32xf32> to vector<8xf32>
    %232 = vector.shape_cast %231 : vector<8xf32> to vector<8x1xf32>
    %cst_81 = arith.constant 3.200000e+01 : f32
    %233 = vector.broadcast %cst_81 : f32 to vector<8x1xf32>
    %234 = arith.divf %232, %233 : vector<8x1xf32>
    %235 = vector.broadcast %227 : vector<8x1xf32> to vector<8x32xf32>
    %236 = arith.subf %221, %235 : vector<8x32xf32>
    %cst_82 = arith.constant 9.99999974E-6 : f32
    %237 = vector.broadcast %cst_82 : f32 to vector<8x1xf32>
    %238 = arith.addf %234, %237 : vector<8x1xf32>
    %239 = math.rsqrt %238 : vector<8x1xf32>
    %240 = vector.broadcast %239 : vector<8x1xf32> to vector<8x32xf32>
    %241 = arith.mulf %236, %240 : vector<8x32xf32>
    %242 = vector.broadcast %222 : vector<1x32xf32> to vector<8x32xf32>
    %243 = arith.mulf %241, %242 : vector<8x32xf32>
    %244 = vector.broadcast %223 : vector<1x32xf32> to vector<8x32xf32>
    %245 = arith.addf %243, %244 : vector<8x32xf32>
    %c0_83 = arith.constant 0 : index
    %c0_84 = arith.constant 0 : index
    %c0_85 = arith.constant 0 : index
    %246 = vector.load %arg19[%c0_83, %c0_84, %c0_85] : memref<1x8x32xf32, #tpu.memory_space<vmem>>, vector<1x8x32xf32>
    %247 = vector.shape_cast %246 : vector<1x8x32xf32> to vector<8x32xf32>
    %248 = vector.shape_cast %245 : vector<8x32xf32> to vector<1x8x32xf32>
    tpu.vector_store %arg19[%c0_83, %c0_84, %c0_85], %248 {strides = array<i32>} : memref<1x8x32xf32, #tpu.memory_space<vmem>>, vector<1x8x32xf32>,
    return
  }
  func.func @transform_0(%arg0: i32) -> (i32, i32, i32) {
    %c0_i32 = arith.constant 0 : i32
    %c0_i32_0 = arith.constant 0 : i32
    %c0_i32_1 = arith.constant 0 : i32
    return %arg0, %c0_i32, %c0_i32_0 : i32, i32, i32
  }
  func.func @transform_1(%arg0: i32) -> (i32, i32, i32) {
    %c0_i32 = arith.constant 0 : i32
    %c0_i32_0 = arith.constant 0 : i32
    %c0_i32_1 = arith.constant 0 : i32
    return %arg0, %c0_i32, %c0_i32_0 : i32, i32, i32
  }
  func.func @transform_2(%arg0: i32) -> (i32, i32, i32) {
    %c0_i32 = arith.constant 0 : i32
    %c0_i32_0 = arith.constant 0 : i32
    %c0_i32_1 = arith.constant 0 : i32
    %c0_i32_2 = arith.constant 0 : i32
    return %c0_i32, %c0_i32_0, %c0_i32_1 : i32, i32, i32
  }
  func.func @transform_3(%arg0: i32) -> (i32, i32, i32) {
    %c0_i32 = arith.constant 0 : i32
    %c0_i32_0 = arith.constant 0 : i32
    %c0_i32_1 = arith.constant 0 : i32
    return %arg0, %c0_i32, %c0_i32_0 : i32, i32, i32
  }
  func.func @transform_4(%arg0: i32) -> (i32, i32) {
    %c0_i32 = arith.constant 0 : i32
    %c0_i32_0 = arith.constant 0 : i32
    %c0_i32_1 = arith.constant 0 : i32
    return %c0_i32, %c0_i32_0 : i32, i32
  }
  func.func @transform_5(%arg0: i32) -> (i32, i32) {
    %c0_i32 = arith.constant 0 : i32
    %c0_i32_0 = arith.constant 0 : i32
    %c0_i32_1 = arith.constant 0 : i32
    return %c0_i32, %c0_i32_0 : i32, i32
  }
  func.func @transform_6(%arg0: i32) -> (i32, i32) {
    %c0_i32 = arith.constant 0 : i32
    %c0_i32_0 = arith.constant 0 : i32
    %c0_i32_1 = arith.constant 0 : i32
    return %c0_i32, %c0_i32_0 : i32, i32
  }
  func.func @transform_7(%arg0: i32) -> (i32, i32) {
    %c0_i32 = arith.constant 0 : i32
    %c0_i32_0 = arith.constant 0 : i32
    %c0_i32_1 = arith.constant 0 : i32
    return %c0_i32, %c0_i32_0 : i32, i32
  }
  func.func @transform_8(%arg0: i32) -> (i32, i32) {
    %c0_i32 = arith.constant 0 : i32
    %c0_i32_0 = arith.constant 0 : i32
    %c0_i32_1 = arith.constant 0 : i32
    return %c0_i32, %c0_i32_0 : i32, i32
  }
  func.func @transform_9(%arg0: i32) -> (i32, i32) {
    %c0_i32 = arith.constant 0 : i32
    %c0_i32_0 = arith.constant 0 : i32
    %c0_i32_1 = arith.constant 0 : i32
    return %c0_i32, %c0_i32_0 : i32, i32
  }
  func.func @transform_10(%arg0: i32) -> (i32, i32) {
    %c0_i32 = arith.constant 0 : i32
    %c0_i32_0 = arith.constant 0 : i32
    %c0_i32_1 = arith.constant 0 : i32
    return %c0_i32, %c0_i32_0 : i32, i32
  }
  func.func @transform_11(%arg0: i32) -> (i32, i32) {
    %c0_i32 = arith.constant 0 : i32
    %c0_i32_0 = arith.constant 0 : i32
    %c0_i32_1 = arith.constant 0 : i32
    return %c0_i32, %c0_i32_0 : i32, i32
  }
  func.func @transform_12(%arg0: i32) -> (i32, i32) {
    %c0_i32 = arith.constant 0 : i32
    %c0_i32_0 = arith.constant 0 : i32
    %c0_i32_1 = arith.constant 0 : i32
    return %c0_i32, %c0_i32_0 : i32, i32
  }
  func.func @transform_13(%arg0: i32) -> (i32, i32) {
    %c0_i32 = arith.constant 0 : i32
    %c0_i32_0 = arith.constant 0 : i32
    %c0_i32_1 = arith.constant 0 : i32
    return %c0_i32, %c0_i32_0 : i32, i32
  }
  func.func @transform_14(%arg0: i32) -> (i32, i32) {
    %c0_i32 = arith.constant 0 : i32
    %c0_i32_0 = arith.constant 0 : i32
    %c0_i32_1 = arith.constant 0 : i32
    return %c0_i32, %c0_i32_0 : i32, i32
  }
  func.func @transform_15(%arg0: i32) -> (i32, i32) {
    %c0_i32 = arith.constant 0 : i32
    %c0_i32_0 = arith.constant 0 : i32
    %c0_i32_1 = arith.constant 0 : i32
    return %c0_i32, %c0_i32_0 : i32, i32
  }
  func.func @transform_16(%arg0: i32) -> (i32, i32) {
    %c0_i32 = arith.constant 0 : i32
    %c0_i32_0 = arith.constant 0 : i32
    %c0_i32_1 = arith.constant 0 : i32
    return %c0_i32, %c0_i32_0 : i32, i32
  }
  func.func @transform_17(%arg0: i32) -> (i32, i32) {
    %c0_i32 = arith.constant 0 : i32
    %c0_i32_0 = arith.constant 0 : i32
    %c0_i32_1 = arith.constant 0 : i32
    return %c0_i32, %c0_i32_0 : i32, i32
  }
  func.func @transform_18(%arg0: i32) -> (i32, i32, i32) {
    %c0_i32 = arith.constant 0 : i32
    %c0_i32_0 = arith.constant 0 : i32
    %c0_i32_1 = arith.constant 0 : i32
    return %arg0, %c0_i32, %c0_i32_0 : i32, i32, i32
  }
}

</mosaic_0001>

<llo_original>
// kernel: transformer_decoder.5
$region0: #{transformer_decoder.5}
  #allocation0 [shape = 'u32[]', space=smem, size = 0x4, offset = 0x4, fixed_abs, tag = 'smem constant byte address 0x4 - core index']
  #allocation1 [shape = 'u32[144,128]{1,0:T(1,128)}', space=vmem, size = 0x12000, scoped, tag = 'internal scratch']
  %s0 = inlined_call_operand.vmem [shape: f32[16,32], index: 0, kind: input, shape index: {}]
  %s1 = inlined_call_operand.vmem [shape: bf16[32,128], index: 1, kind: input, shape index: {}]
  %s2 = inlined_call_operand.vmem [shape: f32[16,128], index: 2, kind: output, shape index: {}]
  %s3 = sld [smem:[#allocation0]]
  $region41: #{transformer_decoder.5} parent=0
    _
  %s5 = ssub.s32 1, %s3
  %s6 = scalar_select 0, %s5, %s3
  loop: start=0, step=1, limit=4
  $region2: #{transformer_decoder.5} parent=0 // loop_pre_header
    _
  $region3: #{transformer_decoder.5} parent=0 // loop_header
    %s8 = sphi 0, %s12
    %p9 = scmp.ge.s32.totalorder %s8, 4
    %s18 = sphi 0, %s20
    %s21 = sphi 0, %s18
    %s22 = sphi 0, %s21
    %s38 = sphi 0, %s22
    %s42 = sphi 0, %s42
    %s44 = sphi 0, %s42
    %s45 = sphi 0, %s44
    %s59 = sphi 0, %s45
    %s65 = sphi 0, %s67
    %s68 = sphi 0, %s65
    %s69 = sphi 0, %s68
    %s85 = sphi 0, %s69
  $region4: #{transformer_decoder.5} parent=0 // loop_header_branch
    %11 = sbr.rel (%p9) target = $region8
  $region5: #{transformer_decoder.5} parent=0 // loop_body
    %s13 = ssub.s32 %s8, 1
    %s14 = ssub.s32 %s8, 2
    %s15 = sadd.s32 %s8, 1
    %s16 = ssub.s32 %s8, %s15
    %p17 = scmp.eq.s32.totalorder %s16, 0
    %s19 = sadd.s32 %s18, 1
    %s20 = scalar_select %p17, %s18, %s19
    %p23 = pneg %p17
    %p24 = scmp.eq.s32.totalorder %s8, 1
    %p25 = por %p23, %p24
    %p26 = scmp.ne.s32.totalorder %s18, %s21
    %p27 = scmp.eq.s32.totalorder %s8, 0
    %p28 = por %p26, %p27
    %p29 = scmp.ne.s32.totalorder %s18, %s21
    %p30 = scmp.eq.s32.totalorder %s13, 1
    %p31 = por %p29, %p30
    %p32 = scmp.ne.s32.totalorder %s21, %s22
    %p33 = scmp.eq.s32.totalorder %s13, 0
    %p34 = por %p32, %p33
    %p35 = scmp.ne.s32.totalorder %s21, %s22
    %p36 = scmp.eq.s32.totalorder %s14, 1
    %p37 = por %p35, %p36
    %p39 = scmp.ne.s32.totalorder %s22, %s38
    %p40 = scmp.eq.s32.totalorder %s14, 0
    %p41 = por %p39, %p40
    %s43 = sadd.s32 %s42, 1
    %p46 = scmp.eq.s32.totalorder %s8, 1
    %p47 = scmp.ne.s32.totalorder %s42, %s44
    %p48 = scmp.eq.s32.totalorder %s8, 0
    %p49 = por %p47, %p48
    %p50 = scmp.ne.s32.totalorder %s42, %s44
    %p51 = scmp.eq.s32.totalorder %s13, 1
    %p52 = por %p50, %p51
    %p53 = scmp.ne.s32.totalorder %s44, %s45
    %p54 = scmp.eq.s32.totalorder %s13, 0
    %p55 = por %p53, %p54
    %p56 = scmp.ne.s32.totalorder %s44, %s45
    %p57 = scmp.eq.s32.totalorder %s14, 1
    %p58 = por %p56, %p57
    %p60 = scmp.ne.s32.totalorder %s45, %s59
    %p61 = scmp.eq.s32.totalorder %s14, 0
    %p62 = por %p60, %p61
    %s63 = ssub.s32 %s8, %s15
    %p64 = scmp.eq.s32.totalorder %s63, 0
    %s66 = sadd.s32 %s65, 1
    %s67 = scalar_select %p64, %s65, %s66
    %p70 = pneg %p64
    %p71 = scmp.eq.s32.totalorder %s8, 1
    %p72 = por %p70, %p71
    %p73 = scmp.ne.s32.totalorder %s65, %s68
    %p74 = scmp.eq.s32.totalorder %s8, 0
    %p75 = por %p73, %p74
    %p76 = scmp.ne.s32.totalorder %s65, %s68
    %p77 = scmp.eq.s32.totalorder %s13, 1
    %p78 = por %p76, %p77
    %p79 = scmp.ne.s32.totalorder %s68, %s69
    %p80 = scmp.eq.s32.totalorder %s13, 0
    %p81 = por %p79, %p80
    %p82 = scmp.ne.s32.totalorder %s68, %s69
    %p83 = scmp.eq.s32.totalorder %s14, 1
    %p84 = por %p82, %p83
    %p86 = scmp.ne.s32.totalorder %s69, %s85
    %p87 = scmp.eq.s32.totalorder %s14, 0
    %p88 = por %p86, %p87
    %p89 = scmp.le.s32.totalorder 1, %s8
    %p90 = scmp.lt.s32.totalorder %s8, 3
    %p91 = pnand %p89, %p90
    %p92 = pneg %p91
    // Predicated region
    $region9: #{transformer_decoder.5} parent=5 // pred_check
      _
    $region10: #{transformer_decoder.5} parent=5 // pred_check_branch
      %94 = sbr.rel (%p91) target = $region12
    $region11: #{transformer_decoder.5} parent=5 // pred_region
      %s95 = ssub.s32 %s8, 1
      // Predicated region
      $region13: #{transformer_decoder.5} parent=11 // pred_check
        %p96 = pneg %p55
      $region14: #{transformer_decoder.5} parent=11 // pred_check_branch
        %98 = sbr.rel (%p96) target = $region16
      $region15: #{transformer_decoder.5} parent=11 // pred_region
        _
      $region16: #{transformer_decoder.5} parent=11 // pred_fallthru
        _
    $region12: #{transformer_decoder.5} parent=5 // pred_fallthru
      _
    %p99 = scmp.lt.s32.totalorder %s8, 2
    // Predicated region
    $region17: #{transformer_decoder.5} parent=5 // pred_check
      %p100 = pneg %p99
    $region18: #{transformer_decoder.5} parent=5 // pred_check_branch
      %102 = sbr.rel (%p100) target = $region20
    $region19: #{transformer_decoder.5} parent=5 // pred_region
      // Predicated region
      $region21: #{transformer_decoder.5} parent=19 // pred_check
        %p103 = pneg %p28
      $region22: #{transformer_decoder.5} parent=19 // pred_check_branch
        %105 = sbr.rel (%p103) target = $region24
      $region23: #{transformer_decoder.5} parent=19 // pred_region
        %p106 = scmp.lt.s32.totalorder %s8, 1
        %s107 = scalar_select %p106, %s8, 1
        %s108 = smul.addr %s107, 8
        %s109 = scalar_lea.vmem %s0, %s108
      $region24: #{transformer_decoder.5} parent=19 // pred_fallthru
        _
    $region20: #{transformer_decoder.5} parent=5 // pred_fallthru
      _
    %p110 = scmp.le.s32.totalorder 1, %s8
    %p111 = scmp.lt.s32.totalorder %s8, 3
    %p112 = pnand %p110, %p111
    %p113 = pneg %p112
    // Predicated region
    $region25: #{transformer_decoder.5} parent=5 // pred_check
      _
    $region26: #{transformer_decoder.5} parent=5 // pred_check_branch
      %115 = sbr.rel (%p112) target = $region28
    $region27: #{transformer_decoder.5} parent=5 // pred_region
      %s116 = ssub.s32 %s8, 1
      %p117 = scmp.lt.s32.totalorder %s13, 1
      %s118 = scalar_select %p117, %s13, 1
      %s119 = smul.addr %s118, 8
      %s120 = scalar_lea.vmem %s0, %s119
      %p121 = pneg %p34
      %p122 = pneg %p31
      %p123 = pneg %p55
      %p124 = pneg %p52
      %p125 = pneg %p81
      %p126 = pneg %p78
      %p127 = scmp.lt.s32.totalorder %s13, 1
      %s128 = scalar_select %p127, %s13, 1
      %s129 = smul.addr %s128, 8
      %s130 = scalar_lea.vmem %s2, %s129
      %p131 = scmp.lt.s32.totalorder %s13, 1
      %s132 = scalar_select %p131, %s13, 1
      %s133 = smul.addr %s132, 8
      %s134 = scalar_lea.vmem %s0, %s133
      %p135 = scmp.lt.s32.totalorder %s13, 1
      %s136 = scalar_select %p135, %s13, 1
      %s137 = smul.addr %s136, 8
      %s138 = scalar_lea.vmem %s2, %s137
      %v140 = vld [vmem:[%s134] sm:$0xff]
      %v141 = vpack.c.bf16 %v140, %v140
      %v142 = vld [vmem:[%s1] sm:$0xf]
      %v143 = vld [vmem:[%s1 + $0x4] sm:$0xf]
      %v144 = vld [vmem:[%s1 + $0x8] sm:$0xf]
      %v145 = vld [vmem:[%s1 + $0xc] sm:$0xf]
      %v150 = vunpack.c.l.b16 %v142
      %v151 = vunpack.c.l.b16 %v143
      %v152 = vunpack.c.l.b16 %v144
      %v153 = vunpack.c.l.b16 %v145
      %v154 = vpack.c.b16 %v151, %v150
      %v155 = vpack.c.b16 %v153, %v152
      %vm158 = vcmask 261120
      %v160 = vsel %vm158, %v141, 0
      %162 = vmatprep.subr.bf16.mxu0 0
      %163 = vmatpush1.bf16.msra.mxu0 0
      %164 = vmatprep.subr.bf16.mxu0 0
      %165 = vmatpush1.bf16.msra.mxu0 0
      %166 = vmatprep.subr.bf16.mxu0 0
      %167 = vmatpush1.bf16.msra.mxu0 0
      %168 = vmatprep.subr.bf16.mxu0 0
      %169 = vmatpush1.bf16.msra.mxu0 0
      %170 = vmatprep.subr.bf16.mxu0 0
      %171 = vmatpush1.bf16.msra.mxu0 0
      %172 = vmatprep.subr.bf16.mxu0 0
      %173 = vmatpush1.bf16.msra.mxu0 0
      %174 = vmatprep.subr.bf16.mxu0 0
      %175 = vmatpush1.bf16.msra.mxu0 %v155
      %176 = vmatprep.subr.bf16.mxu0 0
      %177 = vmatpush1.bf16.msra.mxu0 %v154
      %178 = vmatprep.subr.bf16.mxu0 0
      %179 = vmatpush2.bf16.msra.mxu0 0
      %180 = vmatprep.subr.bf16.mxu0 0
      %181 = vmatpush2.bf16.msra.mxu0 0
      %182 = vmatprep.subr.bf16.mxu0 0
      %183 = vmatpush2.bf16.msra.mxu0 0
      %184 = vmatprep.subr.bf16.mxu0 0
      %185 = vmatpush2.bf16.msra.mxu0 0
      %186 = vmatprep.subr.bf16.mxu0 0
      %187 = vmatpush2.bf16.msra.mxu0 0
      %188 = vmatprep.subr.bf16.mxu0 0
      %189 = vmatpush2.bf16.msra.mxu0 0
      %190 = vmatprep.subr.bf16.mxu0 0
      %191 = vmatpush2.bf16.msra.mxu0 0
      %192 = vmatprep.subr.bf16.mxu0 0
      %193 = vmatpush2.bf16.msra.mxu0 0
      %194 = vmatprep.mubr.bf16.mxu0 0
      %195 = vmatmul.mubr.bf16.gmra.mxu0 %v160
      %v196 = vpop.f32.mrf.mxu0
      %v197 = vadd.f32 0.0, %v196
      %v198 = vpop.f32.mrf.mxu0
      %v199 = vpop.f32.mrf.mxu0
      %v200 = vpop.f32.mrf.mxu0
      %201 = vdwg.mxu0
      %202 = vst [vmem:[%s138] sm:$0xff] %v197
      %p203 = scmp.lt.s32.totalorder %s13, 1
      %s204 = scalar_select %p203, %s13, 1
      %s205 = smul.addr %s204, 8
      %s206 = scalar_lea.vmem %s2, %s205
      // Predicated region
      $region29: #{transformer_decoder.5} parent=27 // pred_check
        %p207 = pneg %p78
      $region30: #{transformer_decoder.5} parent=27 // pred_check_branch
        %209 = sbr.rel (%p207) target = $region32
      $region31: #{transformer_decoder.5} parent=27 // pred_region
        _
      $region32: #{transformer_decoder.5} parent=27 // pred_fallthru
        _
    $region28: #{transformer_decoder.5} parent=5 // pred_fallthru
      _
    %p210 = scmp.le.s32.totalorder 2, %s8
    // Predicated region
    $region33: #{transformer_decoder.5} parent=5 // pred_check
      %p211 = pneg %p210
    $region34: #{transformer_decoder.5} parent=5 // pred_check_branch
      %213 = sbr.rel (%p211) target = $region36
    $region35: #{transformer_decoder.5} parent=5 // pred_region
      %s214 = ssub.s32 %s8, 2
      // Predicated region
      $region37: #{transformer_decoder.5} parent=35 // pred_check
        %p215 = pneg %p84
      $region38: #{transformer_decoder.5} parent=35 // pred_check_branch
        %217 = sbr.rel (%p215) target = $region40
      $region39: #{transformer_decoder.5} parent=35 // pred_region
        %p218 = scmp.lt.s32.totalorder %s14, 1
        %s219 = scalar_select %p218, %s14, 1
        %s220 = smul.addr %s219, 8
        %s221 = scalar_lea.vmem %s2, %s220
      $region40: #{transformer_decoder.5} parent=35 // pred_fallthru
        _
    $region36: #{transformer_decoder.5} parent=5 // pred_fallthru
      _
  $region6: #{transformer_decoder.5} parent=0 // loop_footer
    %s12 = sadd.s32 1, %s8
  $region7: #{transformer_decoder.5} parent=0 // loop_footer_branch
    %7 = sbr.rel target = $region3
  $region8: #{transformer_decoder.5} parent=0 // loop_exit
    _

// kernel: transformer_decoder.3
$region0: #{transformer_decoder.3}
  #allocation0 [shape = 'u32[]', space=smem, size = 0x4, offset = 0x4, fixed_abs, tag = 'smem constant byte address 0x4 - core index']
  #allocation1 [shape = 'u32[144,128]{1,0:T(1,128)}', space=vmem, size = 0x12000, scoped, tag = 'internal scratch']
  %s0 = inlined_call_operand.vmem [shape: f32[2,8,32], index: 0, kind: input, shape index: {}]
  %s1 = inlined_call_operand.vmem [shape: f32[2,8,32], index: 1, kind: input, shape index: {}]
  %s2 = inlined_call_operand.vmem [shape: f32[1,8,8], index: 2, kind: input, shape index: {}]
  %s3 = inlined_call_operand.vmem [shape: f32[2,1,8], index: 3, kind: input, shape index: {}]
  %s4 = inlined_call_operand.vmem [shape: bf16[32,96], index: 4, kind: input, shape index: {}]
  %s5 = inlined_call_operand.vmem [shape: bf16[32,32], index: 5, kind: input, shape index: {}]
  %s6 = inlined_call_operand.vmem [shape: f32[1,32], index: 6, kind: input, shape index: {}]
  %s7 = inlined_call_operand.vmem [shape: f32[1,32], index: 7, kind: input, shape index: {}]
  %s8 = inlined_call_operand.vmem [shape: bf16[32,96], index: 8, kind: input, shape index: {}]
  %s9 = inlined_call_operand.vmem [shape: bf16[32,32], index: 9, kind: input, shape index: {}]
  %s10 = inlined_call_operand.vmem [shape: f32[1,32], index: 10, kind: input, shape index: {}]
  %s11 = inlined_call_operand.vmem [shape: f32[1,32], index: 11, kind: input, shape index: {}]
  %s12 = inlined_call_operand.vmem [shape: bf16[32,64], index: 12, kind: input, shape index: {}]
  %s13 = inlined_call_operand.vmem [shape: f32[1,64], index: 13, kind: input, shape index: {}]
  %s14 = inlined_call_operand.vmem [shape: bf16[64,32], index: 14, kind: input, shape index: {}]
  %s15 = inlined_call_operand.vmem [shape: f32[1,32], index: 15, kind: input, shape index: {}]
  %s16 = inlined_call_operand.vmem [shape: f32[1,32], index: 16, kind: input, shape index: {}]
  %s17 = inlined_call_operand.vmem [shape: f32[1,32], index: 17, kind: input, shape index: {}]
  %s18 = inlined_call_operand.vmem [shape: f32[2,8,32], index: 18, kind: output, shape index: {}]
  %s19 = sld [smem:[#allocation0]]
  $region105: #{transformer_decoder.3} parent=0
    _
  %s21 = ssub.s32 1, %s19
  %s22 = scalar_select 0, %s21, %s19
  loop: start=0, step=1, limit=4
  $region2: #{transformer_decoder.3} parent=0 // loop_pre_header
    _
  $region3: #{transformer_decoder.3} parent=0 // loop_header
    %s24 = sphi 0, %s28
    %p25 = scmp.ge.s32.totalorder %s24, 4
    %s34 = sphi 0, %s36
    %s37 = sphi 0, %s34
    %s38 = sphi 0, %s37
    %s54 = sphi 0, %s38
    %s60 = sphi 0, %s62
    %s63 = sphi 0, %s60
    %s64 = sphi 0, %s63
    %s80 = sphi 0, %s64
    %s84 = sphi 0, %s84
    %s86 = sphi 0, %s84
    %s87 = sphi 0, %s86
    %s101 = sphi 0, %s87
    %s107 = sphi 0, %s109
    %s110 = sphi 0, %s107
    %s111 = sphi 0, %s110
    %s127 = sphi 0, %s111
    %s131 = sphi 0, %s131
    %s133 = sphi 0, %s131
    %s134 = sphi 0, %s133
    %s148 = sphi 0, %s134
    %s152 = sphi 0, %s152
    %s154 = sphi 0, %s152
    %s155 = sphi 0, %s154
    %s169 = sphi 0, %s155
    %s173 = sphi 0, %s173
    %s175 = sphi 0, %s173
    %s176 = sphi 0, %s175
    %s190 = sphi 0, %s176
    %s194 = sphi 0, %s194
    %s196 = sphi 0, %s194
    %s197 = sphi 0, %s196
    %s211 = sphi 0, %s197
    %s215 = sphi 0, %s215
    %s217 = sphi 0, %s215
    %s218 = sphi 0, %s217
    %s232 = sphi 0, %s218
    %s236 = sphi 0, %s236
    %s238 = sphi 0, %s236
    %s239 = sphi 0, %s238
    %s253 = sphi 0, %s239
    %s257 = sphi 0, %s257
    %s259 = sphi 0, %s257
    %s260 = sphi 0, %s259
    %s274 = sphi 0, %s260
    %s278 = sphi 0, %s278
    %s280 = sphi 0, %s278
    %s281 = sphi 0, %s280
    %s295 = sphi 0, %s281
    %s299 = sphi 0, %s299
    %s301 = sphi 0, %s299
    %s302 = sphi 0, %s301
    %s316 = sphi 0, %s302
    %s320 = sphi 0, %s320
    %s322 = sphi 0, %s320
    %s323 = sphi 0, %s322
    %s337 = sphi 0, %s323
    %s341 = sphi 0, %s341
    %s343 = sphi 0, %s341
    %s344 = sphi 0, %s343
    %s358 = sphi 0, %s344
    %s362 = sphi 0, %s362
    %s364 = sphi 0, %s362
    %s365 = sphi 0, %s364
    %s379 = sphi 0, %s365
    %s383 = sphi 0, %s383
    %s385 = sphi 0, %s383
    %s386 = sphi 0, %s385
    %s400 = sphi 0, %s386
    %s404 = sphi 0, %s404
    %s406 = sphi 0, %s404
    %s407 = sphi 0, %s406
    %s421 = sphi 0, %s407
    %s427 = sphi 0, %s429
    %s430 = sphi 0, %s427
    %s431 = sphi 0, %s430
    %s447 = sphi 0, %s431
  $region4: #{transformer_decoder.3} parent=0 // loop_header_branch
    %27 = sbr.rel (%p25) target = $region8
  $region5: #{transformer_decoder.3} parent=0 // loop_body
    %s29 = ssub.s32 %s24, 1
    %s30 = ssub.s32 %s24, 2
    %s31 = sadd.s32 %s24, 1
    %s32 = ssub.s32 %s24, %s31
    %p33 = scmp.eq.s32.totalorder %s32, 0
    %s35 = sadd.s32 %s34, 1
    %s36 = scalar_select %p33, %s34, %s35
    %p39 = pneg %p33
    %p40 = scmp.eq.s32.totalorder %s24, 1
    %p41 = por %p39, %p40
    %p42 = scmp.ne.s32.totalorder %s34, %s37
    %p43 = scmp.eq.s32.totalorder %s24, 0
    %p44 = por %p42, %p43
    %p45 = scmp.ne.s32.totalorder %s34, %s37
    %p46 = scmp.eq.s32.totalorder %s29, 1
    %p47 = por %p45, %p46
    %p48 = scmp.ne.s32.totalorder %s37, %s38
    %p49 = scmp.eq.s32.totalorder %s29, 0
    %p50 = por %p48, %p49
    %p51 = scmp.ne.s32.totalorder %s37, %s38
    %p52 = scmp.eq.s32.totalorder %s30, 1
    %p53 = por %p51, %p52
    %p55 = scmp.ne.s32.totalorder %s38, %s54
    %p56 = scmp.eq.s32.totalorder %s30, 0
    %p57 = por %p55, %p56
    %s58 = ssub.s32 %s24, %s31
    %p59 = scmp.eq.s32.totalorder %s58, 0
    %s61 = sadd.s32 %s60, 1
    %s62 = scalar_select %p59, %s60, %s61
    %p65 = pneg %p59
    %p66 = scmp.eq.s32.totalorder %s24, 1
    %p67 = por %p65, %p66
    %p68 = scmp.ne.s32.totalorder %s60, %s63
    %p69 = scmp.eq.s32.totalorder %s24, 0
    %p70 = por %p68, %p69
    %p71 = scmp.ne.s32.totalorder %s60, %s63
    %p72 = scmp.eq.s32.totalorder %s29, 1
    %p73 = por %p71, %p72
    %p74 = scmp.ne.s32.totalorder %s63, %s64
    %p75 = scmp.eq.s32.totalorder %s29, 0
    %p76 = por %p74, %p75
    %p77 = scmp.ne.s32.totalorder %s63, %s64
    %p78 = scmp.eq.s32.totalorder %s30, 1
    %p79 = por %p77, %p78
    %p81 = scmp.ne.s32.totalorder %s64, %s80
    %p82 = scmp.eq.s32.totalorder %s30, 0
    %p83 = por %p81, %p82
    %s85 = sadd.s32 %s84, 1
    %p88 = scmp.eq.s32.totalorder %s24, 1
    %p89 = scmp.ne.s32.totalorder %s84, %s86
    %p90 = scmp.eq.s32.totalorder %s24, 0
    %p91 = por %p89, %p90
    %p92 = scmp.ne.s32.totalorder %s84, %s86
    %p93 = scmp.eq.s32.totalorder %s29, 1
    %p94 = por %p92, %p93
    %p95 = scmp.ne.s32.totalorder %s86, %s87
    %p96 = scmp.eq.s32.totalorder %s29, 0
    %p97 = por %p95, %p96
    %p98 = scmp.ne.s32.totalorder %s86, %s87
    %p99 = scmp.eq.s32.totalorder %s30, 1
    %p100 = por %p98, %p99
    %p102 = scmp.ne.s32.totalorder %s87, %s101
    %p103 = scmp.eq.s32.totalorder %s30, 0
    %p104 = por %p102, %p103
    %s105 = ssub.s32 %s24, %s31
    %p106 = scmp.eq.s32.totalorder %s105, 0
    %s108 = sadd.s32 %s107, 1
    %s109 = scalar_select %p106, %s107, %s108
    %p112 = pneg %p106
    %p113 = scmp.eq.s32.totalorder %s24, 1
    %p114 = por %p112, %p113
    %p115 = scmp.ne.s32.totalorder %s107, %s110
    %p116 = scmp.eq.s32.totalorder %s24, 0
    %p117 = por %p115, %p116
    %p118 = scmp.ne.s32.totalorder %s107, %s110
    %p119 = scmp.eq.s32.totalorder %s29, 1
    %p120 = por %p118, %p119
    %p121 = scmp.ne.s32.totalorder %s110, %s111
    %p122 = scmp.eq.s32.totalorder %s29, 0
    %p123 = por %p121, %p122
    %p124 = scmp.ne.s32.totalorder %s110, %s111
    %p125 = scmp.eq.s32.totalorder %s30, 1
    %p126 = por %p124, %p125
    %p128 = scmp.ne.s32.totalorder %s111, %s127
    %p129 = scmp.eq.s32.totalorder %s30, 0
    %p130 = por %p128, %p129
    %s132 = sadd.s32 %s131, 1
    %p135 = scmp.eq.s32.totalorder %s24, 1
    %p136 = scmp.ne.s32.totalorder %s131, %s133
    %p137 = scmp.eq.s32.totalorder %s24, 0
    %p138 = por %p136, %p137
    %p139 = scmp.ne.s32.totalorder %s131, %s133
    %p140 = scmp.eq.s32.totalorder %s29, 1
    %p141 = por %p139, %p140
    %p142 = scmp.ne.s32.totalorder %s133, %s134
    %p143 = scmp.eq.s32.totalorder %s29, 0
    %p144 = por %p142, %p143
    %p145 = scmp.ne.s32.totalorder %s133, %s134
    %p146 = scmp.eq.s32.totalorder %s30, 1
    %p147 = por %p145, %p146
    %p149 = scmp.ne.s32.totalorder %s134, %s148
    %p150 = scmp.eq.s32.totalorder %s30, 0
    %p151 = por %p149, %p150
    %s153 = sadd.s32 %s152, 1
    %p156 = scmp.eq.s32.totalorder %s24, 1
    %p157 = scmp.ne.s32.totalorder %s152, %s154
    %p158 = scmp.eq.s32.totalorder %s24, 0
    %p159 = por %p157, %p158
    %p160 = scmp.ne.s32.totalorder %s152, %s154
    %p161 = scmp.eq.s32.totalorder %s29, 1
    %p162 = por %p160, %p161
    %p163 = scmp.ne.s32.totalorder %s154, %s155
    %p164 = scmp.eq.s32.totalorder %s29, 0
    %p165 = por %p163, %p164
    %p166 = scmp.ne.s32.totalorder %s154, %s155
    %p167 = scmp.eq.s32.totalorder %s30, 1
    %p168 = por %p166, %p167
    %p170 = scmp.ne.s32.totalorder %s155, %s169
    %p171 = scmp.eq.s32.totalorder %s30, 0
    %p172 = por %p170, %p171
    %s174 = sadd.s32 %s173, 1
    %p177 = scmp.eq.s32.totalorder %s24, 1
    %p178 = scmp.ne.s32.totalorder %s173, %s175
    %p179 = scmp.eq.s32.totalorder %s24, 0
    %p180 = por %p178, %p179
    %p181 = scmp.ne.s32.totalorder %s173, %s175
    %p182 = scmp.eq.s32.totalorder %s29, 1
    %p183 = por %p181, %p182
    %p184 = scmp.ne.s32.totalorder %s175, %s176
    %p185 = scmp.eq.s32.totalorder %s29, 0
    %p186 = por %p184, %p185
    %p187 = scmp.ne.s32.totalorder %s175, %s176
    %p188 = scmp.eq.s32.totalorder %s30, 1
    %p189 = por %p187, %p188
    %p191 = scmp.ne.s32.totalorder %s176, %s190
    %p192 = scmp.eq.s32.totalorder %s30, 0
    %p193 = por %p191, %p192
    %s195 = sadd.s32 %s194, 1
    %p198 = scmp.eq.s32.totalorder %s24, 1
    %p199 = scmp.ne.s32.totalorder %s194, %s196
    %p200 = scmp.eq.s32.totalorder %s24, 0
    %p201 = por %p199, %p200
    %p202 = scmp.ne.s32.totalorder %s194, %s196
    %p203 = scmp.eq.s32.totalorder %s29, 1
    %p204 = por %p202, %p203
    %p205 = scmp.ne.s32.totalorder %s196, %s197
    %p206 = scmp.eq.s32.totalorder %s29, 0
    %p207 = por %p205, %p206
    %p208 = scmp.ne.s32.totalorder %s196, %s197
    %p209 = scmp.eq.s32.totalorder %s30, 1
    %p210 = por %p208, %p209
    %p212 = scmp.ne.s32.totalorder %s197, %s211
    %p213 = scmp.eq.s32.totalorder %s30, 0
    %p214 = por %p212, %p213
    %s216 = sadd.s32 %s215, 1
    %p219 = scmp.eq.s32.totalorder %s24, 1
    %p220 = scmp.ne.s32.totalorder %s215, %s217
    %p221 = scmp.eq.s32.totalorder %s24, 0
    %p222 = por %p220, %p221
    %p223 = scmp.ne.s32.totalorder %s215, %s217
    %p224 = scmp.eq.s32.totalorder %s29, 1
    %p225 = por %p223, %p224
    %p226 = scmp.ne.s32.totalorder %s217, %s218
    %p227 = scmp.eq.s32.totalorder %s29, 0
    %p228 = por %p226, %p227
    %p229 = scmp.ne.s32.totalorder %s217, %s218
    %p230 = scmp.eq.s32.totalorder %s30, 1
    %p231 = por %p229, %p230
    %p233 = scmp.ne.s32.totalorder %s218, %s232
    %p234 = scmp.eq.s32.totalorder %s30, 0
    %p235 = por %p233, %p234
    %s237 = sadd.s32 %s236, 1
    %p240 = scmp.eq.s32.totalorder %s24, 1
    %p241 = scmp.ne.s32.totalorder %s236, %s238
    %p242 = scmp.eq.s32.totalorder %s24, 0
    %p243 = por %p241, %p242
    %p244 = scmp.ne.s32.totalorder %s236, %s238
    %p245 = scmp.eq.s32.totalorder %s29, 1
    %p246 = por %p244, %p245
    %p247 = scmp.ne.s32.totalorder %s238, %s239
    %p248 = scmp.eq.s32.totalorder %s29, 0
    %p249 = por %p247, %p248
    %p250 = scmp.ne.s32.totalorder %s238, %s239
    %p251 = scmp.eq.s32.totalorder %s30, 1
    %p252 = por %p250, %p251
    %p254 = scmp.ne.s32.totalorder %s239, %s253
    %p255 = scmp.eq.s32.totalorder %s30, 0
    %p256 = por %p254, %p255
    %s258 = sadd.s32 %s257, 1
    %p261 = scmp.eq.s32.totalorder %s24, 1
    %p262 = scmp.ne.s32.totalorder %s257, %s259
    %p263 = scmp.eq.s32.totalorder %s24, 0
    %p264 = por %p262, %p263
    %p265 = scmp.ne.s32.totalorder %s257, %s259
    %p266 = scmp.eq.s32.totalorder %s29, 1
    %p267 = por %p265, %p266
    %p268 = scmp.ne.s32.totalorder %s259, %s260
    %p269 = scmp.eq.s32.totalorder %s29, 0
    %p270 = por %p268, %p269
    %p271 = scmp.ne.s32.totalorder %s259, %s260
    %p272 = scmp.eq.s32.totalorder %s30, 1
    %p273 = por %p271, %p272
    %p275 = scmp.ne.s32.totalorder %s260, %s274
    %p276 = scmp.eq.s32.totalorder %s30, 0
    %p277 = por %p275, %p276
    %s279 = sadd.s32 %s278, 1
    %p282 = scmp.eq.s32.totalorder %s24, 1
    %p283 = scmp.ne.s32.totalorder %s278, %s280
    %p284 = scmp.eq.s32.totalorder %s24, 0
    %p285 = por %p283, %p284
    %p286 = scmp.ne.s32.totalorder %s278, %s280
    %p287 = scmp.eq.s32.totalorder %s29, 1
    %p288 = por %p286, %p287
    %p289 = scmp.ne.s32.totalorder %s280, %s281
    %p290 = scmp.eq.s32.totalorder %s29, 0
    %p291 = por %p289, %p290
    %p292 = scmp.ne.s32.totalorder %s280, %s281
    %p293 = scmp.eq.s32.totalorder %s30, 1
    %p294 = por %p292, %p293
    %p296 = scmp.ne.s32.totalorder %s281, %s295
    %p297 = scmp.eq.s32.totalorder %s30, 0
    %p298 = por %p296, %p297
    %s300 = sadd.s32 %s299, 1
    %p303 = scmp.eq.s32.totalorder %s24, 1
    %p304 = scmp.ne.s32.totalorder %s299, %s301
    %p305 = scmp.eq.s32.totalorder %s24, 0
    %p306 = por %p304, %p305
    %p307 = scmp.ne.s32.totalorder %s299, %s301
    %p308 = scmp.eq.s32.totalorder %s29, 1
    %p309 = por %p307, %p308
    %p310 = scmp.ne.s32.totalorder %s301, %s302
    %p311 = scmp.eq.s32.totalorder %s29, 0
    %p312 = por %p310, %p311
    %p313 = scmp.ne.s32.totalorder %s301, %s302
    %p314 = scmp.eq.s32.totalorder %s30, 1
    %p315 = por %p313, %p314
    %p317 = scmp.ne.s32.totalorder %s302, %s316
    %p318 = scmp.eq.s32.totalorder %s30, 0
    %p319 = por %p317, %p318
    %s321 = sadd.s32 %s320, 1
    %p324 = scmp.eq.s32.totalorder %s24, 1
    %p325 = scmp.ne.s32.totalorder %s320, %s322
    %p326 = scmp.eq.s32.totalorder %s24, 0
    %p327 = por %p325, %p326
    %p328 = scmp.ne.s32.totalorder %s320, %s322
    %p329 = scmp.eq.s32.totalorder %s29, 1
    %p330 = por %p328, %p329
    %p331 = scmp.ne.s32.totalorder %s322, %s323
    %p332 = scmp.eq.s32.totalorder %s29, 0
    %p333 = por %p331, %p332
    %p334 = scmp.ne.s32.totalorder %s322, %s323
    %p335 = scmp.eq.s32.totalorder %s30, 1
    %p336 = por %p334, %p335
    %p338 = scmp.ne.s32.totalorder %s323, %s337
    %p339 = scmp.eq.s32.totalorder %s30, 0
    %p340 = por %p338, %p339
    %s342 = sadd.s32 %s341, 1
    %p345 = scmp.eq.s32.totalorder %s24, 1
    %p346 = scmp.ne.s32.totalorder %s341, %s343
    %p347 = scmp.eq.s32.totalorder %s24, 0
    %p348 = por %p346, %p347
    %p349 = scmp.ne.s32.totalorder %s341, %s343
    %p350 = scmp.eq.s32.totalorder %s29, 1
    %p351 = por %p349, %p350
    %p352 = scmp.ne.s32.totalorder %s343, %s344
    %p353 = scmp.eq.s32.totalorder %s29, 0
    %p354 = por %p352, %p353
    %p355 = scmp.ne.s32.totalorder %s343, %s344
    %p356 = scmp.eq.s32.totalorder %s30, 1
    %p357 = por %p355, %p356
    %p359 = scmp.ne.s32.totalorder %s344, %s358
    %p360 = scmp.eq.s32.totalorder %s30, 0
    %p361 = por %p359, %p360
    %s363 = sadd.s32 %s362, 1
    %p366 = scmp.eq.s32.totalorder %s24, 1
    %p367 = scmp.ne.s32.totalorder %s362, %s364
    %p368 = scmp.eq.s32.totalorder %s24, 0
    %p369 = por %p367, %p368
    %p370 = scmp.ne.s32.totalorder %s362, %s364
    %p371 = scmp.eq.s32.totalorder %s29, 1
    %p372 = por %p370, %p371
    %p373 = scmp.ne.s32.totalorder %s364, %s365
    %p374 = scmp.eq.s32.totalorder %s29, 0
    %p375 = por %p373, %p374
    %p376 = scmp.ne.s32.totalorder %s364, %s365
    %p377 = scmp.eq.s32.totalorder %s30, 1
    %p378 = por %p376, %p377
    %p380 = scmp.ne.s32.totalorder %s365, %s379
    %p381 = scmp.eq.s32.totalorder %s30, 0
    %p382 = por %p380, %p381
    %s384 = sadd.s32 %s383, 1
    %p387 = scmp.eq.s32.totalorder %s24, 1
    %p388 = scmp.ne.s32.totalorder %s383, %s385
    %p389 = scmp.eq.s32.totalorder %s24, 0
    %p390 = por %p388, %p389
    %p391 = scmp.ne.s32.totalorder %s383, %s385
    %p392 = scmp.eq.s32.totalorder %s29, 1
    %p393 = por %p391, %p392
    %p394 = scmp.ne.s32.totalorder %s385, %s386
    %p395 = scmp.eq.s32.totalorder %s29, 0
    %p396 = por %p394, %p395
    %p397 = scmp.ne.s32.totalorder %s385, %s386
    %p398 = scmp.eq.s32.totalorder %s30, 1
    %p399 = por %p397, %p398
    %p401 = scmp.ne.s32.totalorder %s386, %s400
    %p402 = scmp.eq.s32.totalorder %s30, 0
    %p403 = por %p401, %p402
    %s405 = sadd.s32 %s404, 1
    %p408 = scmp.eq.s32.totalorder %s24, 1
    %p409 = scmp.ne.s32.totalorder %s404, %s406
    %p410 = scmp.eq.s32.totalorder %s24, 0
    %p411 = por %p409, %p410
    %p412 = scmp.ne.s32.totalorder %s404, %s406
    %p413 = scmp.eq.s32.totalorder %s29, 1
    %p414 = por %p412, %p413
    %p415 = scmp.ne.s32.totalorder %s406, %s407
    %p416 = scmp.eq.s32.totalorder %s29, 0
    %p417 = por %p415, %p416
    %p418 = scmp.ne.s32.totalorder %s406, %s407
    %p419 = scmp.eq.s32.totalorder %s30, 1
    %p420 = por %p418, %p419
    %p422 = scmp.ne.s32.totalorder %s407, %s421
    %p423 = scmp.eq.s32.totalorder %s30, 0
    %p424 = por %p422, %p423
    %s425 = ssub.s32 %s24, %s31
    %p426 = scmp.eq.s32.totalorder %s425, 0
    %s428 = sadd.s32 %s427, 1
    %s429 = scalar_select %p426, %s427, %s428
    %p432 = pneg %p426
    %p433 = scmp.eq.s32.totalorder %s24, 1
    %p434 = por %p432, %p433
    %p435 = scmp.ne.s32.totalorder %s427, %s430
    %p436 = scmp.eq.s32.totalorder %s24, 0
    %p437 = por %p435, %p436
    %p438 = scmp.ne.s32.totalorder %s427, %s430
    %p439 = scmp.eq.s32.totalorder %s29, 1
    %p440 = por %p438, %p439
    %p441 = scmp.ne.s32.totalorder %s430, %s431
    %p442 = scmp.eq.s32.totalorder %s29, 0
    %p443 = por %p441, %p442
    %p444 = scmp.ne.s32.totalorder %s430, %s431
    %p445 = scmp.eq.s32.totalorder %s30, 1
    %p446 = por %p444, %p445
    %p448 = scmp.ne.s32.totalorder %s431, %s447
    %p449 = scmp.eq.s32.totalorder %s30, 0
    %p450 = por %p448, %p449
    %p451 = scmp.le.s32.totalorder 1, %s24
    %p452 = scmp.lt.s32.totalorder %s24, 3
    %p453 = pnand %p451, %p452
    %p454 = pneg %p453
    // Predicated region
    $region9: #{transformer_decoder.3} parent=5 // pred_check
      _
    $region10: #{transformer_decoder.3} parent=5 // pred_check_branch
      %456 = sbr.rel (%p453) target = $region12
    $region11: #{transformer_decoder.3} parent=5 // pred_region
      %s457 = ssub.s32 %s24, 1
      // Predicated region
      $region13: #{transformer_decoder.3} parent=11 // pred_check
        %p458 = pneg %p97
      $region14: #{transformer_decoder.3} parent=11 // pred_check_branch
        %460 = sbr.rel (%p458) target = $region16
      $region15: #{transformer_decoder.3} parent=11 // pred_region
        _
      $region16: #{transformer_decoder.3} parent=11 // pred_fallthru
        _
      // Predicated region
      $region17: #{transformer_decoder.3} parent=11 // pred_check
        %p461 = pneg %p144
      $region18: #{transformer_decoder.3} parent=11 // pred_check_branch
        %463 = sbr.rel (%p461) target = $region20
      $region19: #{transformer_decoder.3} parent=11 // pred_region
        _
      $region20: #{transformer_decoder.3} parent=11 // pred_fallthru
        _
      // Predicated region
      $region21: #{transformer_decoder.3} parent=11 // pred_check
        %p464 = pneg %p165
      $region22: #{transformer_decoder.3} parent=11 // pred_check_branch
        %466 = sbr.rel (%p464) target = $region24
      $region23: #{transformer_decoder.3} parent=11 // pred_region
        _
      $region24: #{transformer_decoder.3} parent=11 // pred_fallthru
        _
      // Predicated region
      $region25: #{transformer_decoder.3} parent=11 // pred_check
        %p467 = pneg %p186
      $region26: #{transformer_decoder.3} parent=11 // pred_check_branch
        %469 = sbr.rel (%p467) target = $region28
      $region27: #{transformer_decoder.3} parent=11 // pred_region
        _
      $region28: #{transformer_decoder.3} parent=11 // pred_fallthru
        _
      // Predicated region
      $region29: #{transformer_decoder.3} parent=11 // pred_check
        %p470 = pneg %p207
      $region30: #{transformer_decoder.3} parent=11 // pred_check_branch
        %472 = sbr.rel (%p470) target = $region32
      $region31: #{transformer_decoder.3} parent=11 // pred_region
        _
      $region32: #{transformer_decoder.3} parent=11 // pred_fallthru
        _
      // Predicated region
      $region33: #{transformer_decoder.3} parent=11 // pred_check
        %p473 = pneg %p228
      $region34: #{transformer_decoder.3} parent=11 // pred_check_branch
        %475 = sbr.rel (%p473) target = $region36
      $region35: #{transformer_decoder.3} parent=11 // pred_region
        _
      $region36: #{transformer_decoder.3} parent=11 // pred_fallthru
        _
      // Predicated region
      $region37: #{transformer_decoder.3} parent=11 // pred_check
        %p476 = pneg %p249
      $region38: #{transformer_decoder.3} parent=11 // pred_check_branch
        %478 = sbr.rel (%p476) target = $region40
      $region39: #{transformer_decoder.3} parent=11 // pred_region
        _
      $region40: #{transformer_decoder.3} parent=11 // pred_fallthru
        _
      // Predicated region
      $region41: #{transformer_decoder.3} parent=11 // pred_check
        %p479 = pneg %p270
      $region42: #{transformer_decoder.3} parent=11 // pred_check_branch
        %481 = sbr.rel (%p479) target = $region44
      $region43: #{transformer_decoder.3} parent=11 // pred_region
        _
      $region44: #{transformer_decoder.3} parent=11 // pred_fallthru
        _
      // Predicated region
      $region45: #{transformer_decoder.3} parent=11 // pred_check
        %p482 = pneg %p291
      $region46: #{transformer_decoder.3} parent=11 // pred_check_branch
        %484 = sbr.rel (%p482) target = $region48
      $region47: #{transformer_decoder.3} parent=11 // pred_region
        _
      $region48: #{transformer_decoder.3} parent=11 // pred_fallthru
        _
      // Predicated region
      $region49: #{transformer_decoder.3} parent=11 // pred_check
        %p485 = pneg %p312
      $region50: #{transformer_decoder.3} parent=11 // pred_check_branch
        %487 = sbr.rel (%p485) target = $region52
      $region51: #{transformer_decoder.3} parent=11 // pred_region
        _
      $region52: #{transformer_decoder.3} parent=11 // pred_fallthru
        _
      // Predicated region
      $region53: #{transformer_decoder.3} parent=11 // pred_check
        %p488 = pneg %p333
      $region54: #{transformer_decoder.3} parent=11 // pred_check_branch
        %490 = sbr.rel (%p488) target = $region56
      $region55: #{transformer_decoder.3} parent=11 // pred_region
        _
      $region56: #{transformer_decoder.3} parent=11 // pred_fallthru
        _
      // Predicated region
      $region57: #{transformer_decoder.3} parent=11 // pred_check
        %p491 = pneg %p354
      $region58: #{transformer_decoder.3} parent=11 // pred_check_branch
        %493 = sbr.rel (%p491) target = $region60
      $region59: #{transformer_decoder.3} parent=11 // pred_region
        _
      $region60: #{transformer_decoder.3} parent=11 // pred_fallthru
        _
      // Predicated region
      $region61: #{transformer_decoder.3} parent=11 // pred_check
        %p494 = pneg %p375
      $region62: #{transformer_decoder.3} parent=11 // pred_check_branch
        %496 = sbr.rel (%p494) target = $region64
      $region63: #{transformer_decoder.3} parent=11 // pred_region
        _
      $region64: #{transformer_decoder.3} parent=11 // pred_fallthru
        _
      // Predicated region
      $region65: #{transformer_decoder.3} parent=11 // pred_check
        %p497 = pneg %p396
      $region66: #{transformer_decoder.3} parent=11 // pred_check_branch
        %499 = sbr.rel (%p497) target = $region68
      $region67: #{transformer_decoder.3} parent=11 // pred_region
        _
      $region68: #{transformer_decoder.3} parent=11 // pred_fallthru
        _
      // Predicated region
      $region69: #{transformer_decoder.3} parent=11 // pred_check
        %p500 = pneg %p417
      $region70: #{transformer_decoder.3} parent=11 // pred_check_branch
        %502 = sbr.rel (%p500) target = $region72
      $region71: #{transformer_decoder.3} parent=11 // pred_region
        _
      $region72: #{transformer_decoder.3} parent=11 // pred_fallthru
        _
    $region12: #{transformer_decoder.3} parent=5 // pred_fallthru
      _
    %p503 = scmp.lt.s32.totalorder %s24, 2
    // Predicated region
    $region73: #{transformer_decoder.3} parent=5 // pred_check
      %p504 = pneg %p503
    $region74: #{transformer_decoder.3} parent=5 // pred_check_branch
      %506 = sbr.rel (%p504) target = $region76
    $region75: #{transformer_decoder.3} parent=5 // pred_region
      // Predicated region
      $region77: #{transformer_decoder.3} parent=75 // pred_check
        %p507 = pneg %p44
      $region78: #{transformer_decoder.3} parent=75 // pred_check_branch
        %509 = sbr.rel (%p507) target = $region80
      $region79: #{transformer_decoder.3} parent=75 // pred_region
        %p510 = scmp.lt.s32.totalorder %s24, 1
        %s511 = scalar_select %p510, %s24, 1
        %s512 = smul.addr %s511, 8
        %s513 = scalar_lea.vmem %s0, %s512
      $region80: #{transformer_decoder.3} parent=75 // pred_fallthru
        _
      // Predicated region
      $region81: #{transformer_decoder.3} parent=75 // pred_check
        %p514 = pneg %p70
      $region82: #{transformer_decoder.3} parent=75 // pred_check_branch
        %516 = sbr.rel (%p514) target = $region84
      $region83: #{transformer_decoder.3} parent=75 // pred_region
        %p517 = scmp.lt.s32.totalorder %s24, 1
        %s518 = scalar_select %p517, %s24, 1
        %s519 = smul.addr %s518, 8
        %s520 = scalar_lea.vmem %s1, %s519
      $region84: #{transformer_decoder.3} parent=75 // pred_fallthru
        _
      // Predicated region
      $region85: #{transformer_decoder.3} parent=75 // pred_check
        %p521 = pneg %p117
      $region86: #{transformer_decoder.3} parent=75 // pred_check_branch
        %523 = sbr.rel (%p521) target = $region88
      $region87: #{transformer_decoder.3} parent=75 // pred_region
        %p524 = scmp.lt.s32.totalorder %s24, 1
        %s525 = scalar_select %p524, %s24, 1
        %s526 = scalar_lea.vmem %s3, %s525
      $region88: #{transformer_decoder.3} parent=75 // pred_fallthru
        _
    $region76: #{transformer_decoder.3} parent=5 // pred_fallthru
      _
    %p527 = scmp.le.s32.totalorder 1, %s24
    %p528 = scmp.lt.s32.totalorder %s24, 3
    %p529 = pnand %p527, %p528
    %p530 = pneg %p529
    // Predicated region
    $region89: #{transformer_decoder.3} parent=5 // pred_check
      _
    $region90: #{transformer_decoder.3} parent=5 // pred_check_branch
      %532 = sbr.rel (%p529) target = $region92
    $region91: #{transformer_decoder.3} parent=5 // pred_region
      %s533 = ssub.s32 %s24, 1
      %p534 = scmp.lt.s32.totalorder %s29, 1
      %s535 = scalar_select %p534, %s29, 1
      %s536 = smul.addr %s535, 8
      %s537 = scalar_lea.vmem %s0, %s536
      %p538 = pneg %p50
      %p539 = pneg %p47
      %p540 = scmp.lt.s32.totalorder %s29, 1
      %s541 = scalar_select %p540, %s29, 1
      %s542 = smul.addr %s541, 8
      %s543 = scalar_lea.vmem %s1, %s542
      %p544 = pneg %p76
      %p545 = pneg %p73
      %p546 = pneg %p97
      %p547 = pneg %p94
      %p548 = scmp.lt.s32.totalorder %s29, 1
      %s549 = scalar_select %p548, %s29, 1
      %s550 = scalar_lea.vmem %s3, %s549
      %p551 = pneg %p123
      %p552 = pneg %p120
      %p553 = pneg %p144
      %p554 = pneg %p141
      %p555 = pneg %p165
      %p556 = pneg %p162
      %p557 = pneg %p186
      %p558 = pneg %p183
      %p559 = pneg %p207
      %p560 = pneg %p204
      %p561 = pneg %p228
      %p562 = pneg %p225
      %p563 = pneg %p249
      %p564 = pneg %p246
      %p565 = pneg %p270
      %p566 = pneg %p267
      %p567 = pneg %p291
      %p568 = pneg %p288
      %p569 = pneg %p312
      %p570 = pneg %p309
      %p571 = pneg %p333
      %p572 = pneg %p330
      %p573 = pneg %p354
      %p574 = pneg %p351
      %p575 = pneg %p375
      %p576 = pneg %p372
      %p577 = pneg %p396
      %p578 = pneg %p393
      %p579 = pneg %p417
      %p580 = pneg %p414
      %p581 = pneg %p443
      %p582 = pneg %p440
      %p583 = scmp.lt.s32.totalorder %s29, 1
      %s584 = scalar_select %p583, %s29, 1
      %s585 = smul.addr %s584, 8
      %s586 = scalar_lea.vmem %s18, %s585
      %p587 = scmp.lt.s32.totalorder %s29, 1
      %s588 = scalar_select %p587, %s29, 1
      %s589 = smul.addr %s588, 8
      %s590 = scalar_lea.vmem %s0, %s589
      %p591 = scmp.lt.s32.totalorder %s29, 1
      %s592 = scalar_select %p591, %s29, 1
      %s593 = smul.addr %s592, 8
      %s594 = scalar_lea.vmem %s1, %s593
      %p595 = scmp.lt.s32.totalorder %s29, 1
      %s596 = scalar_select %p595, %s29, 1
      %s597 = scalar_lea.vmem %s3, %s596
      %p598 = scmp.lt.s32.totalorder %s29, 1
      %s599 = scalar_select %p598, %s29, 1
      %s600 = smul.addr %s599, 8
      %s601 = scalar_lea.vmem %s18, %s600
      %v603 = vld [vmem:[%s590] sm:$0xff]
      %v604 = vld [vmem:[%s594] sm:$0xff]
      %v605 = vpack.c.bf16 %v603, %v603
      %v606 = vld [vmem:[%s4] sm:$0xf]
      %v607 = vld [vmem:[%s4 + $0x4] sm:$0xf]
      %v608 = vld [vmem:[%s4 + $0x8] sm:$0xf]
      %v609 = vld [vmem:[%s4 + $0xc] sm:$0xf]
      %v614 = vunpack.c.l.b16 %v606
      %v615 = vunpack.c.l.b16 %v607
      %v616 = vunpack.c.l.b16 %v608
      %v617 = vunpack.c.l.b16 %v609
      %v618 = vpack.c.b16 %v615, %v614
      %v619 = vpack.c.b16 %v617, %v616
      %vm622 = vcmask 261120
      %v624 = vsel %vm622, %v605, 0
      %626 = vmatprep.subr.bf16.mxu0 0
      %627 = vmatpush1.bf16.msra.mxu0 0
      %628 = vmatprep.subr.bf16.mxu0 0
      %629 = vmatpush1.bf16.msra.mxu0 0
      %630 = vmatprep.subr.bf16.mxu0 0
      %631 = vmatpush1.bf16.msra.mxu0 0
      %632 = vmatprep.subr.bf16.mxu0 0
      %633 = vmatpush1.bf16.msra.mxu0 0
      %634 = vmatprep.subr.bf16.mxu0 0
      %635 = vmatpush1.bf16.msra.mxu0 0
      %636 = vmatprep.subr.bf16.mxu0 0
      %637 = vmatpush1.bf16.msra.mxu0 0
      %638 = vmatprep.subr.bf16.mxu0 0
      %639 = vmatpush1.bf16.msra.mxu0 %v619
      %640 = vmatprep.subr.bf16.mxu0 0
      %641 = vmatpush1.bf16.msra.mxu0 %v618
      %642 = vmatprep.subr.bf16.mxu0 0
      %643 = vmatpush2.bf16.msra.mxu0 0
      %644 = vmatprep.subr.bf16.mxu0 0
      %645 = vmatpush2.bf16.msra.mxu0 0
      %646 = vmatprep.subr.bf16.mxu0 0
      %647 = vmatpush2.bf16.msra.mxu0 0
      %648 = vmatprep.subr.bf16.mxu0 0
      %649 = vmatpush2.bf16.msra.mxu0 0
      %650 = vmatprep.subr.bf16.mxu0 0
      %651 = vmatpush2.bf16.msra.mxu0 0
      %652 = vmatprep.subr.bf16.mxu0 0
      %653 = vmatpush2.bf16.msra.mxu0 0
      %654 = vmatprep.subr.bf16.mxu0 0
      %655 = vmatpush2.bf16.msra.mxu0 0
      %656 = vmatprep.subr.bf16.mxu0 0
      %657 = vmatpush2.bf16.msra.mxu0 0
      %658 = vmatprep.mubr.bf16.mxu0 0
      %659 = vmatmul.mubr.bf16.gmra.mxu0 %v624
      %v660 = vpop.f32.mrf.mxu0
      %v661 = vadd.f32 0.0, %v660
      %v662 = vpop.f32.mrf.mxu0
      %v663 = vpop.f32.mrf.mxu0
      %v664 = vpop.f32.mrf.mxu0
      %665 = vdwg.mxu0
      %v666 = vmul.f32 %v661, 0.35355338
      %v667 = vld [vmem:[%s2] sm:$0xff]
      %v668 = vpack.c.bf16 %v666, %v666
      %670 = vrot.lane.b32.xlu0 %v661, 96
      %v671 = vpop.permute.xlu0 %670
      %673 = vxpose.xlu0.b32.start [1/16] %v671, 128
      %674 = vxpose.xlu0.b32.cont [2/16] 0.0, 128
      %675 = vxpose.xlu0.b32.cont [3/16] 0.0, 128
      %676 = vxpose.xlu0.b32.cont [4/16] 0.0, 128
      %677 = vxpose.xlu0.b32.cont [5/16] 0.0, 128
      %678 = vxpose.xlu0.b32.cont [6/16] 0.0, 128
      %679 = vxpose.xlu0.b32.cont [7/16] 0.0, 128
      %680 = vxpose.xlu0.b32.cont [8/16] 0.0, 128
      %681 = vxpose.xlu0.b32.cont [9/16] 0.0, 128
      %682 = vxpose.xlu0.b32.cont [10/16] 0.0, 128
      %683 = vxpose.xlu0.b32.cont [11/16] 0.0, 128
      %684 = vxpose.xlu0.b32.cont [12/16] 0.0, 128
      %685 = vxpose.xlu0.b32.cont [13/16] 0.0, 128
      %686 = vxpose.xlu0.b32.cont [14/16] 0.0, 128
      %687 = vxpose.xlu0.b32.cont [15/16] 0.0, 128
      %688 = vxpose.xlu0.b32.end [16/16] 0.0, 128
      %v689 = vpop.trf.xlu0
      %v690 = vpop.trf.xlu0
      %v691 = vpop.trf.xlu0
      %v692 = vpop.trf.xlu0
      %v693 = vpop.trf.xlu0
      %v694 = vpop.trf.xlu0
      %v695 = vpop.trf.xlu0
      %v696 = vpop.trf.xlu0
      %v697 = vpop.trf.xlu0
      %v698 = vpop.trf.xlu0
      %v699 = vpop.trf.xlu0
      %v700 = vpop.trf.xlu0
      %v701 = vpop.trf.xlu0
      %v702 = vpop.trf.xlu0
      %v703 = vpop.trf.xlu0
      %v704 = vpop.trf.xlu0
      %v705 = vpack.c.bf16 %v689, %v689
      %vm706 = vcmask 64512
      %v708 = vsel %vm706, %v668, 0
      %vm710 = vcmask 1043456
      %v712 = vsel %vm710, %v705, 0
      %714 = vmatprep.subr.bf16.mxu0 0
      %715 = vmatpush1.bf16.msra.mxu0 0
      %716 = vmatprep.subr.bf16.mxu0 0
      %717 = vmatpush1.bf16.msra.mxu0 0
      %718 = vmatprep.subr.bf16.mxu0 0
      %719 = vmatpush1.bf16.msra.mxu0 0
      %720 = vmatprep.subr.bf16.mxu0 0
      %721 = vmatpush1.bf16.msra.mxu0 0
      %722 = vmatprep.subr.bf16.mxu0 0
      %723 = vmatpush1.bf16.msra.mxu0 0
      %724 = vmatprep.subr.bf16.mxu0 0
      %725 = vmatpush1.bf16.msra.mxu0 0
      %726 = vmatprep.subr.bf16.mxu0 0
      %727 = vmatpush1.bf16.msra.mxu0 0
      %728 = vmatprep.subr.bf16.mxu0 0
      %729 = vmatpush1.bf16.msra.mxu0 %v712
      %730 = vmatprep.subr.bf16.mxu0 0
      %731 = vmatpush2.bf16.msra.mxu0 0
      %732 = vmatprep.subr.bf16.mxu0 0
      %733 = vmatpush2.bf16.msra.mxu0 0
      %734 = vmatprep.subr.bf16.mxu0 0
      %735 = vmatpush2.bf16.msra.mxu0 0
      %736 = vmatprep.subr.bf16.mxu0 0
      %737 = vmatpush2.bf16.msra.mxu0 0
      %738 = vmatprep.subr.bf16.mxu0 0
      %739 = vmatpush2.bf16.msra.mxu0 0
      %740 = vmatprep.subr.bf16.mxu0 0
      %741 = vmatpush2.bf16.msra.mxu0 0
      %742 = vmatprep.subr.bf16.mxu0 0
      %743 = vmatpush2.bf16.msra.mxu0 0
      %744 = vmatprep.subr.bf16.mxu0 0
      %745 = vmatpush2.bf16.msra.mxu0 0
      %746 = vmatprep.mubr.bf16.mxu0 0
      %747 = vmatmul.mubr.bf16.gmra.mxu0 %v708
      %v748 = vpop.f32.mrf.mxu0
      %v749 = vadd.f32 %v667, %v748
      %v750 = vpop.f32.mrf.mxu0
      %v751 = vpop.f32.mrf.mxu0
      %v752 = vpop.f32.mrf.mxu0
      %753 = vdwg.mxu0
      %754 = vrot.lane.b32.xlu0 %v661, 88
      %v755 = vpop.permute.xlu0 %754
      %757 = vxpose.xlu0.b32.start [1/16] %v755, 128
      %758 = vxpose.xlu0.b32.cont [2/16] 0.0, 128
      %759 = vxpose.xlu0.b32.cont [3/16] 0.0, 128
      %760 = vxpose.xlu0.b32.cont [4/16] 0.0, 128
      %761 = vxpose.xlu0.b32.cont [5/16] 0.0, 128
      %762 = vxpose.xlu0.b32.cont [6/16] 0.0, 128
      %763 = vxpose.xlu0.b32.cont [7/16] 0.0, 128
      %764 = vxpose.xlu0.b32.cont [8/16] 0.0, 128
      %765 = vxpose.xlu0.b32.cont [9/16] 0.0, 128
      %766 = vxpose.xlu0.b32.cont [10/16] 0.0, 128
      %767 = vxpose.xlu0.b32.cont [11/16] 0.0, 128
      %768 = vxpose.xlu0.b32.cont [12/16] 0.0, 128
      %769 = vxpose.xlu0.b32.cont [13/16] 0.0, 128
      %770 = vxpose.xlu0.b32.cont [14/16] 0.0, 128
      %771 = vxpose.xlu0.b32.cont [15/16] 0.0, 128
      %772 = vxpose.xlu0.b32.end [16/16] 0.0, 128
      %v773 = vpop.trf.xlu0
      %v774 = vpop.trf.xlu0
      %v775 = vpop.trf.xlu0
      %v776 = vpop.trf.xlu0
      %v777 = vpop.trf.xlu0
      %v778 = vpop.trf.xlu0
      %v779 = vpop.trf.xlu0
      %v780 = vpop.trf.xlu0
      %v781 = vpop.trf.xlu0
      %v782 = vpop.trf.xlu0
      %v783 = vpop.trf.xlu0
      %v784 = vpop.trf.xlu0
      %v785 = vpop.trf.xlu0
      %v786 = vpop.trf.xlu0
      %v787 = vpop.trf.xlu0
      %v788 = vpop.trf.xlu0
      %v789 = vpack.c.bf16 %v773, %v773
      %791 = vrot.lane.b32.xlu0 %v668, 120
      %v792 = vpop.permute.xlu0 %791
      %v794 = vsel %vm706, %v792, 0
      %v797 = vsel %vm710, %v789, 0
      %799 = vmatprep.subr.bf16.mxu0 0
      %800 = vmatpush1.bf16.msra.mxu0 0
      %801 = vmatprep.subr.bf16.mxu0 0
      %802 = vmatpush1.bf16.msra.mxu0 0
      %803 = vmatprep.subr.bf16.mxu0 0
      %804 = vmatpush1.bf16.msra.mxu0 0
      %805 = vmatprep.subr.bf16.mxu0 0
      %806 = vmatpush1.bf16.msra.mxu0 0
      %807 = vmatprep.subr.bf16.mxu0 0
      %808 = vmatpush1.bf16.msra.mxu0 0
      %809 = vmatprep.subr.bf16.mxu0 0
      %810 = vmatpush1.bf16.msra.mxu0 0
      %811 = vmatprep.subr.bf16.mxu0 0
      %812 = vmatpush1.bf16.msra.mxu0 0
      %813 = vmatprep.subr.bf16.mxu0 0
      %814 = vmatpush1.bf16.msra.mxu0 %v797
      %815 = vmatprep.subr.bf16.mxu0 0
      %816 = vmatpush2.bf16.msra.mxu0 0
      %817 = vmatprep.subr.bf16.mxu0 0
      %818 = vmatpush2.bf16.msra.mxu0 0
      %819 = vmatprep.subr.bf16.mxu0 0
      %820 = vmatpush2.bf16.msra.mxu0 0
      %821 = vmatprep.subr.bf16.mxu0 0
      %822 = vmatpush2.bf16.msra.mxu0 0
      %823 = vmatprep.subr.bf16.mxu0 0
      %824 = vmatpush2.bf16.msra.mxu0 0
      %825 = vmatprep.subr.bf16.mxu0 0
      %826 = vmatpush2.bf16.msra.mxu0 0
      %827 = vmatprep.subr.bf16.mxu0 0
      %828 = vmatpush2.bf16.msra.mxu0 0
      %829 = vmatprep.subr.bf16.mxu0 0
      %830 = vmatpush2.bf16.msra.mxu0 0
      %831 = vmatprep.mubr.bf16.mxu0 0
      %832 = vmatmul.mubr.bf16.gmra.mxu0 %v794
      %v833 = vpop.f32.mrf.mxu0
      %v834 = vadd.f32 %v667, %v833
      %v835 = vpop.f32.mrf.mxu0
      %v836 = vpop.f32.mrf.mxu0
      %v837 = vpop.f32.mrf.mxu0
      %838 = vdwg.mxu0
      %839 = vrot.lane.b32.xlu0 %v661, 80
      %v840 = vpop.permute.xlu0 %839
      %842 = vxpose.xlu0.b32.start [1/16] %v840, 128
      %843 = vxpose.xlu0.b32.cont [2/16] 0.0, 128
      %844 = vxpose.xlu0.b32.cont [3/16] 0.0, 128
      %845 = vxpose.xlu0.b32.cont [4/16] 0.0, 128
      %846 = vxpose.xlu0.b32.cont [5/16] 0.0, 128
      %847 = vxpose.xlu0.b32.cont [6/16] 0.0, 128
      %848 = vxpose.xlu0.b32.cont [7/16] 0.0, 128
      %849 = vxpose.xlu0.b32.cont [8/16] 0.0, 128
      %850 = vxpose.xlu0.b32.cont [9/16] 0.0, 128
      %851 = vxpose.xlu0.b32.cont [10/16] 0.0, 128
      %852 = vxpose.xlu0.b32.cont [11/16] 0.0, 128
      %853 = vxpose.xlu0.b32.cont [12/16] 0.0, 128
      %854 = vxpose.xlu0.b32.cont [13/16] 0.0, 128
      %855 = vxpose.xlu0.b32.cont [14/16] 0.0, 128
      %856 = vxpose.xlu0.b32.cont [15/16] 0.0, 128
      %857 = vxpose.xlu0.b32.end [16/16] 0.0, 128
      %v858 = vpop.trf.xlu0
      %v859 = vpop.trf.xlu0
      %v860 = vpop.trf.xlu0
      %v861 = vpop.trf.xlu0
      %v862 = vpop.trf.xlu0
      %v863 = vpop.trf.xlu0
      %v864 = vpop.trf.xlu0
      %v865 = vpop.trf.xlu0
      %v866 = vpop.trf.xlu0
      %v867 = vpop.trf.xlu0
      %v868 = vpop.trf.xlu0
      %v869 = vpop.trf.xlu0
      %v870 = vpop.trf.xlu0
      %v871 = vpop.trf.xlu0
      %v872 = vpop.trf.xlu0
      %v873 = vpop.trf.xlu0
      %v874 = vpack.c.bf16 %v858, %v858
      %875 = vrot.lane.b32.xlu0 %v668, 112
      %v876 = vpop.permute.xlu0 %875
      %v878 = vsel %vm706, %v876, 0
      %v881 = vsel %vm710, %v874, 0
      %883 = vmatprep.subr.bf16.mxu0 0
      %884 = vmatpush1.bf16.msra.mxu0 0
      %885 = vmatprep.subr.bf16.mxu0 0
      %886 = vmatpush1.bf16.msra.mxu0 0
      %887 = vmatprep.subr.bf16.mxu0 0
      %888 = vmatpush1.bf16.msra.mxu0 0
      %889 = vmatprep.subr.bf16.mxu0 0
      %890 = vmatpush1.bf16.msra.mxu0 0
      %891 = vmatprep.subr.bf16.mxu0 0
      %892 = vmatpush1.bf16.msra.mxu0 0
      %893 = vmatprep.subr.bf16.mxu0 0
      %894 = vmatpush1.bf16.msra.mxu0 0
      %895 = vmatprep.subr.bf16.mxu0 0
      %896 = vmatpush1.bf16.msra.mxu0 0
      %897 = vmatprep.subr.bf16.mxu0 0
      %898 = vmatpush1.bf16.msra.mxu0 %v881
      %899 = vmatprep.subr.bf16.mxu0 0
      %900 = vmatpush2.bf16.msra.mxu0 0
      %901 = vmatprep.subr.bf16.mxu0 0
      %902 = vmatpush2.bf16.msra.mxu0 0
      %903 = vmatprep.subr.bf16.mxu0 0
      %904 = vmatpush2.bf16.msra.mxu0 0
      %905 = vmatprep.subr.bf16.mxu0 0
      %906 = vmatpush2.bf16.msra.mxu0 0
      %907 = vmatprep.subr.bf16.mxu0 0
      %908 = vmatpush2.bf16.msra.mxu0 0
      %909 = vmatprep.subr.bf16.mxu0 0
      %910 = vmatpush2.bf16.msra.mxu0 0
      %911 = vmatprep.subr.bf16.mxu0 0
      %912 = vmatpush2.bf16.msra.mxu0 0
      %913 = vmatprep.subr.bf16.mxu0 0
      %914 = vmatpush2.bf16.msra.mxu0 0
      %915 = vmatprep.mubr.bf16.mxu0 0
      %916 = vmatmul.mubr.bf16.gmra.mxu0 %v878
      %v917 = vpop.f32.mrf.mxu0
      %v918 = vadd.f32 %v667, %v917
      %v919 = vpop.f32.mrf.mxu0
      %v920 = vpop.f32.mrf.mxu0
      %v921 = vpop.f32.mrf.mxu0
      %922 = vdwg.mxu0
      %923 = vrot.lane.b32.xlu0 %v661, 72
      %v924 = vpop.permute.xlu0 %923
      %926 = vxpose.xlu0.b32.start [1/16] %v924, 128
      %927 = vxpose.xlu0.b32.cont [2/16] 0.0, 128
      %928 = vxpose.xlu0.b32.cont [3/16] 0.0, 128
      %929 = vxpose.xlu0.b32.cont [4/16] 0.0, 128
      %930 = vxpose.xlu0.b32.cont [5/16] 0.0, 128
      %931 = vxpose.xlu0.b32.cont [6/16] 0.0, 128
      %932 = vxpose.xlu0.b32.cont [7/16] 0.0, 128
      %933 = vxpose.xlu0.b32.cont [8/16] 0.0, 128
      %934 = vxpose.xlu0.b32.cont [9/16] 0.0, 128
      %935 = vxpose.xlu0.b32.cont [10/16] 0.0, 128
      %936 = vxpose.xlu0.b32.cont [11/16] 0.0, 128
      %937 = vxpose.xlu0.b32.cont [12/16] 0.0, 128
      %938 = vxpose.xlu0.b32.cont [13/16] 0.0, 128
      %939 = vxpose.xlu0.b32.cont [14/16] 0.0, 128
      %940 = vxpose.xlu0.b32.cont [15/16] 0.0, 128
      %941 = vxpose.xlu0.b32.end [16/16] 0.0, 128
      %v942 = vpop.trf.xlu0
      %v943 = vpop.trf.xlu0
      %v944 = vpop.trf.xlu0
      %v945 = vpop.trf.xlu0
      %v946 = vpop.trf.xlu0
      %v947 = vpop.trf.xlu0
      %v948 = vpop.trf.xlu0
      %v949 = vpop.trf.xlu0
      %v950 = vpop.trf.xlu0
      %v951 = vpop.trf.xlu0
      %v952 = vpop.trf.xlu0
      %v953 = vpop.trf.xlu0
      %v954 = vpop.trf.xlu0
      %v955 = vpop.trf.xlu0
      %v956 = vpop.trf.xlu0
      %v957 = vpop.trf.xlu0
      %v958 = vpack.c.bf16 %v942, %v942
      %959 = vrot.lane.b32.xlu0 %v668, 104
      %v960 = vpop.permute.xlu0 %959
      %v962 = vsel %vm706, %v960, 0
      %v965 = vsel %vm710, %v958, 0
      %967 = vmatprep.subr.bf16.mxu0 0
      %968 = vmatpush1.bf16.msra.mxu0 0
      %969 = vmatprep.subr.bf16.mxu0 0
      %970 = vmatpush1.bf16.msra.mxu0 0
      %971 = vmatprep.subr.bf16.mxu0 0
      %972 = vmatpush1.bf16.msra.mxu0 0
      %973 = vmatprep.subr.bf16.mxu0 0
      %974 = vmatpush1.bf16.msra.mxu0 0
      %975 = vmatprep.subr.bf16.mxu0 0
      %976 = vmatpush1.bf16.msra.mxu0 0
      %977 = vmatprep.subr.bf16.mxu0 0
      %978 = vmatpush1.bf16.msra.mxu0 0
      %979 = vmatprep.subr.bf16.mxu0 0
      %980 = vmatpush1.bf16.msra.mxu0 0
      %981 = vmatprep.subr.bf16.mxu0 0
      %982 = vmatpush1.bf16.msra.mxu0 %v965
      %983 = vmatprep.subr.bf16.mxu0 0
      %984 = vmatpush2.bf16.msra.mxu0 0
      %985 = vmatprep.subr.bf16.mxu0 0
      %986 = vmatpush2.bf16.msra.mxu0 0
      %987 = vmatprep.subr.bf16.mxu0 0
      %988 = vmatpush2.bf16.msra.mxu0 0
      %989 = vmatprep.subr.bf16.mxu0 0
      %990 = vmatpush2.bf16.msra.mxu0 0
      %991 = vmatprep.subr.bf16.mxu0 0
      %992 = vmatpush2.bf16.msra.mxu0 0
      %993 = vmatprep.subr.bf16.mxu0 0
      %994 = vmatpush2.bf16.msra.mxu0 0
      %995 = vmatprep.subr.bf16.mxu0 0
      %996 = vmatpush2.bf16.msra.mxu0 0
      %997 = vmatprep.subr.bf16.mxu0 0
      %998 = vmatpush2.bf16.msra.mxu0 0
      %999 = vmatprep.mubr.bf16.mxu0 0
      %1000 = vmatmul.mubr.bf16.gmra.mxu0 %v962
      %v1001 = vpop.f32.mrf.mxu0
      %v1002 = vadd.f32 %v667, %v1001
      %v1003 = vpop.f32.mrf.mxu0
      %v1004 = vpop.f32.mrf.mxu0
      %v1005 = vpop.f32.mrf.mxu0
      %1006 = vdwg.mxu0
      %v1007 = vsel %vm706, %v749, -inf
      %1008 = vmax.xlane.f32.xlu0 %v1007
      %v1009 = vpop.xlane.xlu0 %1008
      %v1010 = vsel %vm706, %v834, -inf
      %1011 = vmax.xlane.f32.xlu0 %v1010
      %v1012 = vpop.xlane.xlu0 %1011
      %v1013 = vsel %vm706, %v918, -inf
      %1014 = vmax.xlane.f32.xlu0 %v1013
      %v1015 = vpop.xlane.xlu0 %1014
      %v1016 = vsel %vm706, %v1002, -inf
      %1017 = vmax.xlane.f32.xlu0 %v1016
      %v1018 = vpop.xlane.xlu0 %1017
      %v1019 = vsub.f32 %v749, %v1009
      %v1020 = vsub.f32 %v834, %v1012
      %v1021 = vsub.f32 %v918, %v1015
      %v1022 = vsub.f32 %v1002, %v1018
      %v1023 = vmul.f32 %v1019, 1.442695
      %v1024 = vpow.pop %v1023
      %v1025 = vmul.f32 %v1020, 1.442695
      %v1026 = vpow.pop %v1025
      %v1027 = vmul.f32 %v1021, 1.442695
      %v1028 = vpow.pop %v1027
      %v1029 = vmul.f32 %v1022, 1.442695
      %v1030 = vpow.pop %v1029
      %v1031 = vsel %vm706, %v1024, 0.0
      %1032 = vadd.xlane.f32.xlu0 %v1031
      %v1033 = vpop.xlane.xlu0 %1032
      %v1034 = vsel %vm706, %v1026, 0.0
      %1035 = vadd.xlane.f32.xlu0 %v1034
      %v1036 = vpop.xlane.xlu0 %1035
      %v1037 = vsel %vm706, %v1028, 0.0
      %1038 = vadd.xlane.f32.xlu0 %v1037
      %v1039 = vpop.xlane.xlu0 %1038
      %v1040 = vsel %vm706, %v1030, 0.0
      %1041 = vadd.xlane.f32.xlu0 %v1040
      %v1042 = vpop.xlane.xlu0 %1041
      %v1043 = vrcp.pop %v1033
      %v1044 = vrcp.pop %v1036
      %v1045 = vrcp.pop %v1039
      %v1046 = vrcp.pop %v1042
      %v1047 = vmul.f32 %v1024, %v1043
      %v1048 = vmul.f32 %v1026, %v1044
      %v1049 = vmul.f32 %v1028, %v1045
      %v1050 = vmul.f32 %v1030, %v1046
      %v1051 = vpack.c.bf16 %v1047, %v1047
      %v1052 = vpack.c.bf16 %v661, %v661
      %1054 = vrot.lane.b32.xlu0 %v1052, 64
      %v1055 = vpop.permute.xlu0 %1054
      %v1057 = vsel %vm706, %v1051, 0
      %v1060 = vsel %vm710, %v1055, 0
      %1062 = vmatprep.subr.bf16.mxu0 0
      %1063 = vmatpush1.bf16.msra.mxu0 0
      %1064 = vmatprep.subr.bf16.mxu0 0
      %1065 = vmatpush1.bf16.msra.mxu0 0
      %1066 = vmatprep.subr.bf16.mxu0 0
      %1067 = vmatpush1.bf16.msra.mxu0 0
      %1068 = vmatprep.subr.bf16.mxu0 0
      %1069 = vmatpush1.bf16.msra.mxu0 0
      %1070 = vmatprep.subr.bf16.mxu0 0
      %1071 = vmatpush1.bf16.msra.mxu0 0
      %1072 = vmatprep.subr.bf16.mxu0 0
      %1073 = vmatpush1.bf16.msra.mxu0 0
      %1074 = vmatprep.subr.bf16.mxu0 0
      %1075 = vmatpush1.bf16.msra.mxu0 0
      %1076 = vmatprep.subr.bf16.mxu0 0
      %1077 = vmatpush1.bf16.msra.mxu0 %v1060
      %1078 = vmatprep.subr.bf16.mxu0 0
      %1079 = vmatpush2.bf16.msra.mxu0 0
      %1080 = vmatprep.subr.bf16.mxu0 0
      %1081 = vmatpush2.bf16.msra.mxu0 0
      %1082 = vmatprep.subr.bf16.mxu0 0
      %1083 = vmatpush2.bf16.msra.mxu0 0
      %1084 = vmatprep.subr.bf16.mxu0 0
      %1085 = vmatpush2.bf16.msra.mxu0 0
      %1086 = vmatprep.subr.bf16.mxu0 0
      %1087 = vmatpush2.bf16.msra.mxu0 0
      %1088 = vmatprep.subr.bf16.mxu0 0
      %1089 = vmatpush2.bf16.msra.mxu0 0
      %1090 = vmatprep.subr.bf16.mxu0 0
      %1091 = vmatpush2.bf16.msra.mxu0 0
      %1092 = vmatprep.subr.bf16.mxu0 0
      %1093 = vmatpush2.bf16.msra.mxu0 0
      %1094 = vmatprep.mubr.bf16.mxu0 0
      %1095 = vmatmul.mubr.bf16.gmra.mxu0 %v1057
      %v1096 = vpop.f32.mrf.mxu0
      %v1097 = vadd.f32 0.0, %v1096
      %v1098 = vpop.f32.mrf.mxu0
      %v1099 = vpop.f32.mrf.mxu0
      %v1100 = vpop.f32.mrf.mxu0
      %1101 = vdwg.mxu0
      %v1102 = vpack.c.bf16 %v1048, %v1048
      %1103 = vrot.lane.b32.xlu0 %v1052, 56
      %v1104 = vpop.permute.xlu0 %1103
      %v1106 = vsel %vm706, %v1102, 0
      %v1109 = vsel %vm710, %v1104, 0
      %1111 = vmatprep.subr.bf16.mxu0 0
      %1112 = vmatpush1.bf16.msra.mxu0 0
      %1113 = vmatprep.subr.bf16.mxu0 0
      %1114 = vmatpush1.bf16.msra.mxu0 0
      %1115 = vmatprep.subr.bf16.mxu0 0
      %1116 = vmatpush1.bf16.msra.mxu0 0
      %1117 = vmatprep.subr.bf16.mxu0 0
      %1118 = vmatpush1.bf16.msra.mxu0 0
      %1119 = vmatprep.subr.bf16.mxu0 0
      %1120 = vmatpush1.bf16.msra.mxu0 0
      %1121 = vmatprep.subr.bf16.mxu0 0
      %1122 = vmatpush1.bf16.msra.mxu0 0
      %1123 = vmatprep.subr.bf16.mxu0 0
      %1124 = vmatpush1.bf16.msra.mxu0 0
      %1125 = vmatprep.subr.bf16.mxu0 0
      %1126 = vmatpush1.bf16.msra.mxu0 %v1109
      %1127 = vmatprep.subr.bf16.mxu0 0
      %1128 = vmatpush2.bf16.msra.mxu0 0
      %1129 = vmatprep.subr.bf16.mxu0 0
      %1130 = vmatpush2.bf16.msra.mxu0 0
      %1131 = vmatprep.subr.bf16.mxu0 0
      %1132 = vmatpush2.bf16.msra.mxu0 0
      %1133 = vmatprep.subr.bf16.mxu0 0
      %1134 = vmatpush2.bf16.msra.mxu0 0
      %1135 = vmatprep.subr.bf16.mxu0 0
      %1136 = vmatpush2.bf16.msra.mxu0 0
      %1137 = vmatprep.subr.bf16.mxu0 0
      %1138 = vmatpush2.bf16.msra.mxu0 0
      %1139 = vmatprep.subr.bf16.mxu0 0
      %1140 = vmatpush2.bf16.msra.mxu0 0
      %1141 = vmatprep.subr.bf16.mxu0 0
      %1142 = vmatpush2.bf16.msra.mxu0 0
      %1143 = vmatprep.mubr.bf16.mxu0 0
      %1144 = vmatmul.mubr.bf16.gmra.mxu0 %v1106
      %v1145 = vpop.f32.mrf.mxu0
      %v1146 = vadd.f32 0.0, %v1145
      %v1147 = vpop.f32.mrf.mxu0
      %v1148 = vpop.f32.mrf.mxu0
      %v1149 = vpop.f32.mrf.mxu0
      %1150 = vdwg.mxu0
      %v1151 = vpack.c.bf16 %v1049, %v1049
      %1152 = vrot.lane.b32.xlu0 %v1052, 48
      %v1153 = vpop.permute.xlu0 %1152
      %v1155 = vsel %vm706, %v1151, 0
      %v1158 = vsel %vm710, %v1153, 0
      %1160 = vmatprep.subr.bf16.mxu0 0
      %1161 = vmatpush1.bf16.msra.mxu0 0
      %1162 = vmatprep.subr.bf16.mxu0 0
      %1163 = vmatpush1.bf16.msra.mxu0 0
      %1164 = vmatprep.subr.bf16.mxu0 0
      %1165 = vmatpush1.bf16.msra.mxu0 0
      %1166 = vmatprep.subr.bf16.mxu0 0
      %1167 = vmatpush1.bf16.msra.mxu0 0
      %1168 = vmatprep.subr.bf16.mxu0 0
      %1169 = vmatpush1.bf16.msra.mxu0 0
      %1170 = vmatprep.subr.bf16.mxu0 0
      %1171 = vmatpush1.bf16.msra.mxu0 0
      %1172 = vmatprep.subr.bf16.mxu0 0
      %1173 = vmatpush1.bf16.msra.mxu0 0
      %1174 = vmatprep.subr.bf16.mxu0 0
      %1175 = vmatpush1.bf16.msra.mxu0 %v1158
      %1176 = vmatprep.subr.bf16.mxu0 0
      %1177 = vmatpush2.bf16.msra.mxu0 0
      %1178 = vmatprep.subr.bf16.mxu0 0
      %1179 = vmatpush2.bf16.msra.mxu0 0
      %1180 = vmatprep.subr.bf16.mxu0 0
      %1181 = vmatpush2.bf16.msra.mxu0 0
      %1182 = vmatprep.subr.bf16.mxu0 0
      %1183 = vmatpush2.bf16.msra.mxu0 0
      %1184 = vmatprep.subr.bf16.mxu0 0
      %1185 = vmatpush2.bf16.msra.mxu0 0
      %1186 = vmatprep.subr.bf16.mxu0 0
      %1187 = vmatpush2.bf16.msra.mxu0 0
      %1188 = vmatprep.subr.bf16.mxu0 0
      %1189 = vmatpush2.bf16.msra.mxu0 0
      %1190 = vmatprep.subr.bf16.mxu0 0
      %1191 = vmatpush2.bf16.msra.mxu0 0
      %1192 = vmatprep.mubr.bf16.mxu0 0
      %1193 = vmatmul.mubr.bf16.gmra.mxu0 %v1155
      %v1194 = vpop.f32.mrf.mxu0
      %v1195 = vadd.f32 0.0, %v1194
      %v1196 = vpop.f32.mrf.mxu0
      %v1197 = vpop.f32.mrf.mxu0
      %v1198 = vpop.f32.mrf.mxu0
      %1199 = vdwg.mxu0
      %v1200 = vpack.c.bf16 %v1050, %v1050
      %1201 = vrot.lane.b32.xlu0 %v1052, 40
      %v1202 = vpop.permute.xlu0 %1201
      %v1204 = vsel %vm706, %v1200, 0
      %v1207 = vsel %vm710, %v1202, 0
      %1209 = vmatprep.subr.bf16.mxu0 0
      %1210 = vmatpush1.bf16.msra.mxu0 0
      %1211 = vmatprep.subr.bf16.mxu0 0
      %1212 = vmatpush1.bf16.msra.mxu0 0
      %1213 = vmatprep.subr.bf16.mxu0 0
      %1214 = vmatpush1.bf16.msra.mxu0 0
      %1215 = vmatprep.subr.bf16.mxu0 0
      %1216 = vmatpush1.bf16.msra.mxu0 0
      %1217 = vmatprep.subr.bf16.mxu0 0
      %1218 = vmatpush1.bf16.msra.mxu0 0
      %1219 = vmatprep.subr.bf16.mxu0 0
      %1220 = vmatpush1.bf16.msra.mxu0 0
      %1221 = vmatprep.subr.bf16.mxu0 0
      %1222 = vmatpush1.bf16.msra.mxu0 0
      %1223 = vmatprep.subr.bf16.mxu0 0
      %1224 = vmatpush1.bf16.msra.mxu0 %v1207
      %1225 = vmatprep.subr.bf16.mxu0 0
      %1226 = vmatpush2.bf16.msra.mxu0 0
      %1227 = vmatprep.subr.bf16.mxu0 0
      %1228 = vmatpush2.bf16.msra.mxu0 0
      %1229 = vmatprep.subr.bf16.mxu0 0
      %1230 = vmatpush2.bf16.msra.mxu0 0
      %1231 = vmatprep.subr.bf16.mxu0 0
      %1232 = vmatpush2.bf16.msra.mxu0 0
      %1233 = vmatprep.subr.bf16.mxu0 0
      %1234 = vmatpush2.bf16.msra.mxu0 0
      %1235 = vmatprep.subr.bf16.mxu0 0
      %1236 = vmatpush2.bf16.msra.mxu0 0
      %1237 = vmatprep.subr.bf16.mxu0 0
      %1238 = vmatpush2.bf16.msra.mxu0 0
      %1239 = vmatprep.subr.bf16.mxu0 0
      %1240 = vmatpush2.bf16.msra.mxu0 0
      %1241 = vmatprep.mubr.bf16.mxu0 0
      %1242 = vmatmul.mubr.bf16.gmra.mxu0 %v1204
      %v1243 = vpop.f32.mrf.mxu0
      %v1244 = vadd.f32 0.0, %v1243
      %v1245 = vpop.f32.mrf.mxu0
      %v1246 = vpop.f32.mrf.mxu0
      %v1247 = vpop.f32.mrf.mxu0
      %1248 = vdwg.mxu0
      %1250 = vrot.lane.b32.xlu0 %v1146, 8
      %v1251 = vpop.permute.xlu0 %1250
      %1254 = vrot.lane.b32.xlu0 %v1195, 16
      %v1255 = vpop.permute.xlu0 %1254
      %1258 = vrot.lane.b32.xlu0 %v1244, 24
      %v1259 = vpop.permute.xlu0 %1258
      %v1261 = vsel %vm706, %v1097, %v1251
      %vm1262 = vcmask 130048
      %v1263 = vsel %vm1262, %v1261, %v1255
      %vm1264 = vcmask 195584
      %v1265 = vsel %vm1264, %v1263, %v1259
      %v1266 = vpack.c.bf16 %v1265, %v1265
      %v1267 = vld [vmem:[%s5] sm:$0xf]
      %v1268 = vld [vmem:[%s5 + $0x4] sm:$0xf]
      %v1269 = vld [vmem:[%s5 + $0x8] sm:$0xf]
      %v1270 = vld [vmem:[%s5 + $0xc] sm:$0xf]
      %v1275 = vunpack.c.l.b16 %v1267
      %v1276 = vunpack.c.l.b16 %v1268
      %v1277 = vunpack.c.l.b16 %v1269
      %v1278 = vunpack.c.l.b16 %v1270
      %v1279 = vpack.c.b16 %v1276, %v1275
      %v1280 = vpack.c.b16 %v1278, %v1277
      %v1284 = vsel %vm622, %v1266, 0
      %1286 = vmatprep.subr.bf16.mxu0 0
      %1287 = vmatpush1.bf16.msra.mxu0 0
      %1288 = vmatprep.subr.bf16.mxu0 0
      %1289 = vmatpush1.bf16.msra.mxu0 0
      %1290 = vmatprep.subr.bf16.mxu0 0
      %1291 = vmatpush1.bf16.msra.mxu0 0
      %1292 = vmatprep.subr.bf16.mxu0 0
      %1293 = vmatpush1.bf16.msra.mxu0 0
      %1294 = vmatprep.subr.bf16.mxu0 0
      %1295 = vmatpush1.bf16.msra.mxu0 0
      %1296 = vmatprep.subr.bf16.mxu0 0
      %1297 = vmatpush1.bf16.msra.mxu0 0
      %1298 = vmatprep.subr.bf16.mxu0 0
      %1299 = vmatpush1.bf16.msra.mxu0 %v1280
      %1300 = vmatprep.subr.bf16.mxu0 0
      %1301 = vmatpush1.bf16.msra.mxu0 %v1279
      %1302 = vmatprep.subr.bf16.mxu0 0
      %1303 = vmatpush2.bf16.msra.mxu0 0
      %1304 = vmatprep.subr.bf16.mxu0 0
      %1305 = vmatpush2.bf16.msra.mxu0 0
      %1306 = vmatprep.subr.bf16.mxu0 0
      %1307 = vmatpush2.bf16.msra.mxu0 0
      %1308 = vmatprep.subr.bf16.mxu0 0
      %1309 = vmatpush2.bf16.msra.mxu0 0
      %1310 = vmatprep.subr.bf16.mxu0 0
      %1311 = vmatpush2.bf16.msra.mxu0 0
      %1312 = vmatprep.subr.bf16.mxu0 0
      %1313 = vmatpush2.bf16.msra.mxu0 0
      %1314 = vmatprep.subr.bf16.mxu0 0
      %1315 = vmatpush2.bf16.msra.mxu0 0
      %1316 = vmatprep.subr.bf16.mxu0 0
      %1317 = vmatpush2.bf16.msra.mxu0 0
      %1318 = vmatprep.mubr.bf16.mxu0 0
      %1319 = vmatmul.mubr.bf16.gmra.mxu0 %v1284
      %v1320 = vpop.f32.mrf.mxu0
      %v1321 = vadd.f32 0.0, %v1320
      %v1322 = vpop.f32.mrf.mxu0
      %v1323 = vpop.f32.mrf.mxu0
      %v1324 = vpop.f32.mrf.mxu0
      %1325 = vdwg.mxu0
      %v1326 = vadd.f32 %v603, %v1321
      %v1327 = vld [vmem:[%s6] sm:$0x1]
      %v1328 = vld [vmem:[%s7] sm:$0x1]
      %v1329 = vsel %vm622, %v1326, 0.0
      %1330 = vadd.xlane.f32.xlu0 %v1329
      %v1331 = vpop.xlane.xlu0 %1330
      %v1332 = vrcp.pop 32.0
      %v1333 = vmul.f32 %v1331, %v1332
      %v1334 = vsub.f32 %v1326, %v1333
      %v1335 = vmul.f32 %v1334, %v1334
      %v1336 = vsel %vm622, %v1335, 0.0
      %1337 = vadd.xlane.f32.xlu0 %v1336
      %v1338 = vpop.xlane.xlu0 %1337
      %v1339 = vmul.f32 %v1338, %v1332
      %v1340 = vadd.f32 %v1339, 1e-05
      %v1341 = vrsqrt.pop %v1340
      %v1342 = vmul.f32 %v1334, %v1341
      %v1344 = vlaneseq
      %v1345 = vshrl.u32 %v1344, 7
      %v1346 = vsub.s32 0, %v1345
      %v1347 = vrot.slane %v1327, %v1346
      %v1349 = vmul.f32 %v1342, %v1347
      %v1351 = vlaneseq
      %v1352 = vshrl.u32 %v1351, 7
      %v1353 = vsub.s32 0, %v1352
      %v1354 = vrot.slane %v1328, %v1353
      %v1356 = vadd.f32 %v1349, %v1354
      %v1357 = vld [vmem:[%s8] sm:$0xf]
      %v1358 = vld [vmem:[%s8 + $0x4] sm:$0xf]
      %v1359 = vld [vmem:[%s8 + $0x8] sm:$0xf]
      %v1360 = vld [vmem:[%s8 + $0xc] sm:$0xf]
      %v1361 = vpack.c.bf16 %v1356, %v1356
      %v1362 = vpack.c.bf16 %v604, %v604
      %v1367 = vunpack.c.l.b16 %v1357
      %v1368 = vunpack.c.l.b16 %v1358
      %v1369 = vunpack.c.l.b16 %v1359
      %v1370 = vunpack.c.l.b16 %v1360
      %v1371 = vpack.c.b16 %v1368, %v1367
      %v1372 = vpack.c.b16 %v1370, %v1369
      %v1376 = vsel %vm622, %v1361, 0
      %1378 = vmatprep.subr.bf16.mxu0 0
      %1379 = vmatpush1.bf16.msra.mxu0 0
      %1380 = vmatprep.subr.bf16.mxu0 0
      %1381 = vmatpush1.bf16.msra.mxu0 0
      %1382 = vmatprep.subr.bf16.mxu0 0
      %1383 = vmatpush1.bf16.msra.mxu0 0
      %1384 = vmatprep.subr.bf16.mxu0 0
      %1385 = vmatpush1.bf16.msra.mxu0 0
      %1386 = vmatprep.subr.bf16.mxu0 0
      %1387 = vmatpush1.bf16.msra.mxu0 0
      %1388 = vmatprep.subr.bf16.mxu0 0
      %1389 = vmatpush1.bf16.msra.mxu0 0
      %1390 = vmatprep.subr.bf16.mxu0 0
      %1391 = vmatpush1.bf16.msra.mxu0 %v1372
      %1392 = vmatprep.subr.bf16.mxu0 0
      %1393 = vmatpush1.bf16.msra.mxu0 %v1371
      %1394 = vmatprep.subr.bf16.mxu0 0
      %1395 = vmatpush2.bf16.msra.mxu0 0
      %1396 = vmatprep.subr.bf16.mxu0 0
      %1397 = vmatpush2.bf16.msra.mxu0 0
      %1398 = vmatprep.subr.bf16.mxu0 0
      %1399 = vmatpush2.bf16.msra.mxu0 0
      %1400 = vmatprep.subr.bf16.mxu0 0
      %1401 = vmatpush2.bf16.msra.mxu0 0
      %1402 = vmatprep.subr.bf16.mxu0 0
      %1403 = vmatpush2.bf16.msra.mxu0 0
      %1404 = vmatprep.subr.bf16.mxu0 0
      %1405 = vmatpush2.bf16.msra.mxu0 0
      %1406 = vmatprep.subr.bf16.mxu0 0
      %1407 = vmatpush2.bf16.msra.mxu0 0
      %1408 = vmatprep.subr.bf16.mxu0 0
      %1409 = vmatpush2.bf16.msra.mxu0 0
      %1410 = vmatprep.mubr.bf16.mxu0 0
      %1411 = vmatmul.mubr.bf16.gmra.mxu0 %v1376
      %v1412 = vpop.f32.mrf.mxu0
      %v1413 = vadd.f32 0.0, %v1412
      %v1414 = vpop.f32.mrf.mxu0
      %v1415 = vpop.f32.mrf.mxu0
      %v1416 = vpop.f32.mrf.mxu0
      %1417 = vdwg.mxu0
      %v1418 = vmul.f32 %v1413, 0.35355338
      %1419 = vrot.lane.b32.xlu0 %v1371, 96
      %v1420 = vpop.permute.xlu0 %1419
      %1421 = vrot.lane.b32.xlu0 %v1372, 96
      %v1422 = vpop.permute.xlu0 %1421
      %v1426 = vsel %vm622, %v1362, 0
      %1428 = vmatprep.subr.bf16.mxu0 0
      %1429 = vmatpush1.bf16.msra.mxu0 0
      %1430 = vmatprep.subr.bf16.mxu0 0
      %1431 = vmatpush1.bf16.msra.mxu0 0
      %1432 = vmatprep.subr.bf16.mxu0 0
      %1433 = vmatpush1.bf16.msra.mxu0 0
      %1434 = vmatprep.subr.bf16.mxu0 0
      %1435 = vmatpush1.bf16.msra.mxu0 0
      %1436 = vmatprep.subr.bf16.mxu0 0
      %1437 = vmatpush1.bf16.msra.mxu0 0
      %1438 = vmatprep.subr.bf16.mxu0 0
      %1439 = vmatpush1.bf16.msra.mxu0 0
      %1440 = vmatprep.subr.bf16.mxu0 0
      %1441 = vmatpush1.bf16.msra.mxu0 %v1422
      %1442 = vmatprep.subr.bf16.mxu0 0
      %1443 = vmatpush1.bf16.msra.mxu0 %v1420
      %1444 = vmatprep.subr.bf16.mxu0 0
      %1445 = vmatpush2.bf16.msra.mxu0 0
      %1446 = vmatprep.subr.bf16.mxu0 0
      %1447 = vmatpush2.bf16.msra.mxu0 0
      %1448 = vmatprep.subr.bf16.mxu0 0
      %1449 = vmatpush2.bf16.msra.mxu0 0
      %1450 = vmatprep.subr.bf16.mxu0 0
      %1451 = vmatpush2.bf16.msra.mxu0 0
      %1452 = vmatprep.subr.bf16.mxu0 0
      %1453 = vmatpush2.bf16.msra.mxu0 0
      %1454 = vmatprep.subr.bf16.mxu0 0
      %1455 = vmatpush2.bf16.msra.mxu0 0
      %1456 = vmatprep.subr.bf16.mxu0 0
      %1457 = vmatpush2.bf16.msra.mxu0 0
      %1458 = vmatprep.subr.bf16.mxu0 0
      %1459 = vmatpush2.bf16.msra.mxu0 0
      %1460 = vmatprep.mubr.bf16.mxu0 0
      %1461 = vmatmul.mubr.bf16.gmra.mxu0 %v1426
      %v1462 = vpop.f32.mrf.mxu0
      %v1463 = vadd.f32 0.0, %v1462
      %v1464 = vpop.f32.mrf.mxu0
      %v1465 = vpop.f32.mrf.mxu0
      %v1466 = vpop.f32.mrf.mxu0
      %1467 = vdwg.mxu0
      %v1468 = vld [vmem:[%s597] sm:$0x1]
      %v1469 = vpack.c.bf16 %v1418, %v1418
      %1470 = vxpose.xlu0.b32.start [1/16] %v1463, 128
      %1471 = vxpose.xlu0.b32.cont [2/16] 0.0, 128
      %1472 = vxpose.xlu0.b32.cont [3/16] 0.0, 128
      %1473 = vxpose.xlu0.b32.cont [4/16] 0.0, 128
      %1474 = vxpose.xlu0.b32.cont [5/16] 0.0, 128
      %1475 = vxpose.xlu0.b32.cont [6/16] 0.0, 128
      %1476 = vxpose.xlu0.b32.cont [7/16] 0.0, 128
      %1477 = vxpose.xlu0.b32.cont [8/16] 0.0, 128
      %1478 = vxpose.xlu0.b32.cont [9/16] 0.0, 128
      %1479 = vxpose.xlu0.b32.cont [10/16] 0.0, 128
      %1480 = vxpose.xlu0.b32.cont [11/16] 0.0, 128
      %1481 = vxpose.xlu0.b32.cont [12/16] 0.0, 128
      %1482 = vxpose.xlu0.b32.cont [13/16] 0.0, 128
      %1483 = vxpose.xlu0.b32.cont [14/16] 0.0, 128
      %1484 = vxpose.xlu0.b32.cont [15/16] 0.0, 128
      %1485 = vxpose.xlu0.b32.end [16/16] 0.0, 128
      %v1486 = vpop.trf.xlu0
      %v1487 = vpop.trf.xlu0
      %v1488 = vpop.trf.xlu0
      %v1489 = vpop.trf.xlu0
      %v1490 = vpop.trf.xlu0
      %v1491 = vpop.trf.xlu0
      %v1492 = vpop.trf.xlu0
      %v1493 = vpop.trf.xlu0
      %v1494 = vpop.trf.xlu0
      %v1495 = vpop.trf.xlu0
      %v1496 = vpop.trf.xlu0
      %v1497 = vpop.trf.xlu0
      %v1498 = vpop.trf.xlu0
      %v1499 = vpop.trf.xlu0
      %v1500 = vpop.trf.xlu0
      %v1501 = vpop.trf.xlu0
      %v1502 = vpack.c.bf16 %v1486, %v1486
      %v1504 = vlaneseq
      %v1505 = vshrl.u32 %v1504, 7
      %v1506 = vsub.s32 0, %v1505
      %v1507 = vrot.slane %v1468, %v1506
      %v1510 = vsel %vm706, %v1469, 0
      %v1513 = vsel %vm710, %v1502, 0
      %1515 = vmatprep.subr.bf16.mxu0 0
      %1516 = vmatpush1.bf16.msra.mxu0 0
      %1517 = vmatprep.subr.bf16.mxu0 0
      %1518 = vmatpush1.bf16.msra.mxu0 0
      %1519 = vmatprep.subr.bf16.mxu0 0
      %1520 = vmatpush1.bf16.msra.mxu0 0
      %1521 = vmatprep.subr.bf16.mxu0 0
      %1522 = vmatpush1.bf16.msra.mxu0 0
      %1523 = vmatprep.subr.bf16.mxu0 0
      %1524 = vmatpush1.bf16.msra.mxu0 0
      %1525 = vmatprep.subr.bf16.mxu0 0
      %1526 = vmatpush1.bf16.msra.mxu0 0
      %1527 = vmatprep.subr.bf16.mxu0 0
      %1528 = vmatpush1.bf16.msra.mxu0 0
      %1529 = vmatprep.subr.bf16.mxu0 0
      %1530 = vmatpush1.bf16.msra.mxu0 %v1513
      %1531 = vmatprep.subr.bf16.mxu0 0
      %1532 = vmatpush2.bf16.msra.mxu0 0
      %1533 = vmatprep.subr.bf16.mxu0 0
      %1534 = vmatpush2.bf16.msra.mxu0 0
      %1535 = vmatprep.subr.bf16.mxu0 0
      %1536 = vmatpush2.bf16.msra.mxu0 0
      %1537 = vmatprep.subr.bf16.mxu0 0
      %1538 = vmatpush2.bf16.msra.mxu0 0
      %1539 = vmatprep.subr.bf16.mxu0 0
      %1540 = vmatpush2.bf16.msra.mxu0 0
      %1541 = vmatprep.subr.bf16.mxu0 0
      %1542 = vmatpush2.bf16.msra.mxu0 0
      %1543 = vmatprep.subr.bf16.mxu0 0
      %1544 = vmatpush2.bf16.msra.mxu0 0
      %1545 = vmatprep.subr.bf16.mxu0 0
      %1546 = vmatpush2.bf16.msra.mxu0 0
      %1547 = vmatprep.mubr.bf16.mxu0 0
      %1548 = vmatmul.mubr.bf16.gmra.mxu0 %v1510
      %v1549 = vpop.f32.mrf.mxu0
      %v1550 = vadd.f32 %v1507, %v1549
      %v1551 = vpop.f32.mrf.mxu0
      %v1552 = vpop.f32.mrf.mxu0
      %v1553 = vpop.f32.mrf.mxu0
      %1554 = vdwg.mxu0
      %1556 = vrot.lane.b32.xlu0 %v1463, 120
      %v1557 = vpop.permute.xlu0 %1556
      %1559 = vxpose.xlu0.b32.start [1/16] %v1557, 128
      %1560 = vxpose.xlu0.b32.cont [2/16] 0.0, 128
      %1561 = vxpose.xlu0.b32.cont [3/16] 0.0, 128
      %1562 = vxpose.xlu0.b32.cont [4/16] 0.0, 128
      %1563 = vxpose.xlu0.b32.cont [5/16] 0.0, 128
      %1564 = vxpose.xlu0.b32.cont [6/16] 0.0, 128
      %1565 = vxpose.xlu0.b32.cont [7/16] 0.0, 128
      %1566 = vxpose.xlu0.b32.cont [8/16] 0.0, 128
      %1567 = vxpose.xlu0.b32.cont [9/16] 0.0, 128
      %1568 = vxpose.xlu0.b32.cont [10/16] 0.0, 128
      %1569 = vxpose.xlu0.b32.cont [11/16] 0.0, 128
      %1570 = vxpose.xlu0.b32.cont [12/16] 0.0, 128
      %1571 = vxpose.xlu0.b32.cont [13/16] 0.0, 128
      %1572 = vxpose.xlu0.b32.cont [14/16] 0.0, 128
      %1573 = vxpose.xlu0.b32.cont [15/16] 0.0, 128
      %1574 = vxpose.xlu0.b32.end [16/16] 0.0, 128
      %v1575 = vpop.trf.xlu0
      %v1576 = vpop.trf.xlu0
      %v1577 = vpop.trf.xlu0
      %v1578 = vpop.trf.xlu0
      %v1579 = vpop.trf.xlu0
      %v1580 = vpop.trf.xlu0
      %v1581 = vpop.trf.xlu0
      %v1582 = vpop.trf.xlu0
      %v1583 = vpop.trf.xlu0
      %v1584 = vpop.trf.xlu0
      %v1585 = vpop.trf.xlu0
      %v1586 = vpop.trf.xlu0
      %v1587 = vpop.trf.xlu0
      %v1588 = vpop.trf.xlu0
      %v1589 = vpop.trf.xlu0
      %v1590 = vpop.trf.xlu0
      %v1591 = vpack.c.bf16 %v1575, %v1575
      %1593 = vrot.lane.b32.xlu0 %v1469, 120
      %v1594 = vpop.permute.xlu0 %1593
      %v1596 = vsel %vm706, %v1594, 0
      %v1599 = vsel %vm710, %v1591, 0
      %1601 = vmatprep.subr.bf16.mxu0 0
      %1602 = vmatpush1.bf16.msra.mxu0 0
      %1603 = vmatprep.subr.bf16.mxu0 0
      %1604 = vmatpush1.bf16.msra.mxu0 0
      %1605 = vmatprep.subr.bf16.mxu0 0
      %1606 = vmatpush1.bf16.msra.mxu0 0
      %1607 = vmatprep.subr.bf16.mxu0 0
      %1608 = vmatpush1.bf16.msra.mxu0 0
      %1609 = vmatprep.subr.bf16.mxu0 0
      %1610 = vmatpush1.bf16.msra.mxu0 0
      %1611 = vmatprep.subr.bf16.mxu0 0
      %1612 = vmatpush1.bf16.msra.mxu0 0
      %1613 = vmatprep.subr.bf16.mxu0 0
      %1614 = vmatpush1.bf16.msra.mxu0 0
      %1615 = vmatprep.subr.bf16.mxu0 0
      %1616 = vmatpush1.bf16.msra.mxu0 %v1599
      %1617 = vmatprep.subr.bf16.mxu0 0
      %1618 = vmatpush2.bf16.msra.mxu0 0
      %1619 = vmatprep.subr.bf16.mxu0 0
      %1620 = vmatpush2.bf16.msra.mxu0 0
      %1621 = vmatprep.subr.bf16.mxu0 0
      %1622 = vmatpush2.bf16.msra.mxu0 0
      %1623 = vmatprep.subr.bf16.mxu0 0
      %1624 = vmatpush2.bf16.msra.mxu0 0
      %1625 = vmatprep.subr.bf16.mxu0 0
      %1626 = vmatpush2.bf16.msra.mxu0 0
      %1627 = vmatprep.subr.bf16.mxu0 0
      %1628 = vmatpush2.bf16.msra.mxu0 0
      %1629 = vmatprep.subr.bf16.mxu0 0
      %1630 = vmatpush2.bf16.msra.mxu0 0
      %1631 = vmatprep.subr.bf16.mxu0 0
      %1632 = vmatpush2.bf16.msra.mxu0 0
      %1633 = vmatprep.mubr.bf16.mxu0 0
      %1634 = vmatmul.mubr.bf16.gmra.mxu0 %v1596
      %v1635 = vpop.f32.mrf.mxu0
      %v1636 = vadd.f32 %v1507, %v1635
      %v1637 = vpop.f32.mrf.mxu0
      %v1638 = vpop.f32.mrf.mxu0
      %v1639 = vpop.f32.mrf.mxu0
      %1640 = vdwg.mxu0
      %1641 = vrot.lane.b32.xlu0 %v1463, 112
      %v1642 = vpop.permute.xlu0 %1641
      %1644 = vxpose.xlu0.b32.start [1/16] %v1642, 128
      %1645 = vxpose.xlu0.b32.cont [2/16] 0.0, 128
      %1646 = vxpose.xlu0.b32.cont [3/16] 0.0, 128
      %1647 = vxpose.xlu0.b32.cont [4/16] 0.0, 128
      %1648 = vxpose.xlu0.b32.cont [5/16] 0.0, 128
      %1649 = vxpose.xlu0.b32.cont [6/16] 0.0, 128
      %1650 = vxpose.xlu0.b32.cont [7/16] 0.0, 128
      %1651 = vxpose.xlu0.b32.cont [8/16] 0.0, 128
      %1652 = vxpose.xlu0.b32.cont [9/16] 0.0, 128
      %1653 = vxpose.xlu0.b32.cont [10/16] 0.0, 128
      %1654 = vxpose.xlu0.b32.cont [11/16] 0.0, 128
      %1655 = vxpose.xlu0.b32.cont [12/16] 0.0, 128
      %1656 = vxpose.xlu0.b32.cont [13/16] 0.0, 128
      %1657 = vxpose.xlu0.b32.cont [14/16] 0.0, 128
      %1658 = vxpose.xlu0.b32.cont [15/16] 0.0, 128
      %1659 = vxpose.xlu0.b32.end [16/16] 0.0, 128
      %v1660 = vpop.trf.xlu0
      %v1661 = vpop.trf.xlu0
      %v1662 = vpop.trf.xlu0
      %v1663 = vpop.trf.xlu0
      %v1664 = vpop.trf.xlu0
      %v1665 = vpop.trf.xlu0
      %v1666 = vpop.trf.xlu0
      %v1667 = vpop.trf.xlu0
      %v1668 = vpop.trf.xlu0
      %v1669 = vpop.trf.xlu0
      %v1670 = vpop.trf.xlu0
      %v1671 = vpop.trf.xlu0
      %v1672 = vpop.trf.xlu0
      %v1673 = vpop.trf.xlu0
      %v1674 = vpop.trf.xlu0
      %v1675 = vpop.trf.xlu0
      %v1676 = vpack.c.bf16 %v1660, %v1660
      %1677 = vrot.lane.b32.xlu0 %v1469, 112
      %v1678 = vpop.permute.xlu0 %1677
      %v1680 = vsel %vm706, %v1678, 0
      %v1683 = vsel %vm710, %v1676, 0
      %1685 = vmatprep.subr.bf16.mxu0 0
      %1686 = vmatpush1.bf16.msra.mxu0 0
      %1687 = vmatprep.subr.bf16.mxu0 0
      %1688 = vmatpush1.bf16.msra.mxu0 0
      %1689 = vmatprep.subr.bf16.mxu0 0
      %1690 = vmatpush1.bf16.msra.mxu0 0
      %1691 = vmatprep.subr.bf16.mxu0 0
      %1692 = vmatpush1.bf16.msra.mxu0 0
      %1693 = vmatprep.subr.bf16.mxu0 0
      %1694 = vmatpush1.bf16.msra.mxu0 0
      %1695 = vmatprep.subr.bf16.mxu0 0
      %1696 = vmatpush1.bf16.msra.mxu0 0
      %1697 = vmatprep.subr.bf16.mxu0 0
      %1698 = vmatpush1.bf16.msra.mxu0 0
      %1699 = vmatprep.subr.bf16.mxu0 0
      %1700 = vmatpush1.bf16.msra.mxu0 %v1683
      %1701 = vmatprep.subr.bf16.mxu0 0
      %1702 = vmatpush2.bf16.msra.mxu0 0
      %1703 = vmatprep.subr.bf16.mxu0 0
      %1704 = vmatpush2.bf16.msra.mxu0 0
      %1705 = vmatprep.subr.bf16.mxu0 0
      %1706 = vmatpush2.bf16.msra.mxu0 0
      %1707 = vmatprep.subr.bf16.mxu0 0
      %1708 = vmatpush2.bf16.msra.mxu0 0
      %1709 = vmatprep.subr.bf16.mxu0 0
      %1710 = vmatpush2.bf16.msra.mxu0 0
      %1711 = vmatprep.subr.bf16.mxu0 0
      %1712 = vmatpush2.bf16.msra.mxu0 0
      %1713 = vmatprep.subr.bf16.mxu0 0
      %1714 = vmatpush2.bf16.msra.mxu0 0
      %1715 = vmatprep.subr.bf16.mxu0 0
      %1716 = vmatpush2.bf16.msra.mxu0 0
      %1717 = vmatprep.mubr.bf16.mxu0 0
      %1718 = vmatmul.mubr.bf16.gmra.mxu0 %v1680
      %v1719 = vpop.f32.mrf.mxu0
      %v1720 = vadd.f32 %v1507, %v1719
      %v1721 = vpop.f32.mrf.mxu0
      %v1722 = vpop.f32.mrf.mxu0
      %v1723 = vpop.f32.mrf.mxu0
      %1724 = vdwg.mxu0
      %1725 = vrot.lane.b32.xlu0 %v1463, 104
      %v1726 = vpop.permute.xlu0 %1725
      %1728 = vxpose.xlu0.b32.start [1/16] %v1726, 128
      %1729 = vxpose.xlu0.b32.cont [2/16] 0.0, 128
      %1730 = vxpose.xlu0.b32.cont [3/16] 0.0, 128
      %1731 = vxpose.xlu0.b32.cont [4/16] 0.0, 128
      %1732 = vxpose.xlu0.b32.cont [5/16] 0.0, 128
      %1733 = vxpose.xlu0.b32.cont [6/16] 0.0, 128
      %1734 = vxpose.xlu0.b32.cont [7/16] 0.0, 128
      %1735 = vxpose.xlu0.b32.cont [8/16] 0.0, 128
      %1736 = vxpose.xlu0.b32.cont [9/16] 0.0, 128
      %1737 = vxpose.xlu0.b32.cont [10/16] 0.0, 128
      %1738 = vxpose.xlu0.b32.cont [11/16] 0.0, 128
      %1739 = vxpose.xlu0.b32.cont [12/16] 0.0, 128
      %1740 = vxpose.xlu0.b32.cont [13/16] 0.0, 128
      %1741 = vxpose.xlu0.b32.cont [14/16] 0.0, 128
      %1742 = vxpose.xlu0.b32.cont [15/16] 0.0, 128
      %1743 = vxpose.xlu0.b32.end [16/16] 0.0, 128
      %v1744 = vpop.trf.xlu0
      %v1745 = vpop.trf.xlu0
      %v1746 = vpop.trf.xlu0
      %v1747 = vpop.trf.xlu0
      %v1748 = vpop.trf.xlu0
      %v1749 = vpop.trf.xlu0
      %v1750 = vpop.trf.xlu0
      %v1751 = vpop.trf.xlu0
      %v1752 = vpop.trf.xlu0
      %v1753 = vpop.trf.xlu0
      %v1754 = vpop.trf.xlu0
      %v1755 = vpop.trf.xlu0
      %v1756 = vpop.trf.xlu0
      %v1757 = vpop.trf.xlu0
      %v1758 = vpop.trf.xlu0
      %v1759 = vpop.trf.xlu0
      %v1760 = vpack.c.bf16 %v1744, %v1744
      %1761 = vrot.lane.b32.xlu0 %v1469, 104
      %v1762 = vpop.permute.xlu0 %1761
      %v1764 = vsel %vm706, %v1762, 0
      %v1767 = vsel %vm710, %v1760, 0
      %1769 = vmatprep.subr.bf16.mxu0 0
      %1770 = vmatpush1.bf16.msra.mxu0 0
      %1771 = vmatprep.subr.bf16.mxu0 0
      %1772 = vmatpush1.bf16.msra.mxu0 0
      %1773 = vmatprep.subr.bf16.mxu0 0
      %1774 = vmatpush1.bf16.msra.mxu0 0
      %1775 = vmatprep.subr.bf16.mxu0 0
      %1776 = vmatpush1.bf16.msra.mxu0 0
      %1777 = vmatprep.subr.bf16.mxu0 0
      %1778 = vmatpush1.bf16.msra.mxu0 0
      %1779 = vmatprep.subr.bf16.mxu0 0
      %1780 = vmatpush1.bf16.msra.mxu0 0
      %1781 = vmatprep.subr.bf16.mxu0 0
      %1782 = vmatpush1.bf16.msra.mxu0 0
      %1783 = vmatprep.subr.bf16.mxu0 0
      %1784 = vmatpush1.bf16.msra.mxu0 %v1767
      %1785 = vmatprep.subr.bf16.mxu0 0
      %1786 = vmatpush2.bf16.msra.mxu0 0
      %1787 = vmatprep.subr.bf16.mxu0 0
      %1788 = vmatpush2.bf16.msra.mxu0 0
      %1789 = vmatprep.subr.bf16.mxu0 0
      %1790 = vmatpush2.bf16.msra.mxu0 0
      %1791 = vmatprep.subr.bf16.mxu0 0
      %1792 = vmatpush2.bf16.msra.mxu0 0
      %1793 = vmatprep.subr.bf16.mxu0 0
      %1794 = vmatpush2.bf16.msra.mxu0 0
      %1795 = vmatprep.subr.bf16.mxu0 0
      %1796 = vmatpush2.bf16.msra.mxu0 0
      %1797 = vmatprep.subr.bf16.mxu0 0
      %1798 = vmatpush2.bf16.msra.mxu0 0
      %1799 = vmatprep.subr.bf16.mxu0 0
      %1800 = vmatpush2.bf16.msra.mxu0 0
      %1801 = vmatprep.mubr.bf16.mxu0 0
      %1802 = vmatmul.mubr.bf16.gmra.mxu0 %v1764
      %v1803 = vpop.f32.mrf.mxu0
      %v1804 = vadd.f32 %v1507, %v1803
      %v1805 = vpop.f32.mrf.mxu0
      %v1806 = vpop.f32.mrf.mxu0
      %v1807 = vpop.f32.mrf.mxu0
      %1808 = vdwg.mxu0
      %v1809 = vsel %vm706, %v1550, -inf
      %1810 = vmax.xlane.f32.xlu0 %v1809
      %v1811 = vpop.xlane.xlu0 %1810
      %v1812 = vsel %vm706, %v1636, -inf
      %1813 = vmax.xlane.f32.xlu0 %v1812
      %v1814 = vpop.xlane.xlu0 %1813
      %v1815 = vsel %vm706, %v1720, -inf
      %1816 = vmax.xlane.f32.xlu0 %v1815
      %v1817 = vpop.xlane.xlu0 %1816
      %v1818 = vsel %vm706, %v1804, -inf
      %1819 = vmax.xlane.f32.xlu0 %v1818
      %v1820 = vpop.xlane.xlu0 %1819
      %v1821 = vsub.f32 %v1550, %v1811
      %v1822 = vsub.f32 %v1636, %v1814
      %v1823 = vsub.f32 %v1720, %v1817
      %v1824 = vsub.f32 %v1804, %v1820
      %v1825 = vmul.f32 %v1821, 1.442695
      %v1826 = vpow.pop %v1825
      %v1827 = vmul.f32 %v1822, 1.442695
      %v1828 = vpow.pop %v1827
      %v1829 = vmul.f32 %v1823, 1.442695
      %v1830 = vpow.pop %v1829
      %v1831 = vmul.f32 %v1824, 1.442695
      %v1832 = vpow.pop %v1831
      %v1833 = vsel %vm706, %v1826, 0.0
      %1834 = vadd.xlane.f32.xlu0 %v1833
      %v1835 = vpop.xlane.xlu0 %1834
      %v1836 = vsel %vm706, %v1828, 0.0
      %1837 = vadd.xlane.f32.xlu0 %v1836
      %v1838 = vpop.xlane.xlu0 %1837
      %v1839 = vsel %vm706, %v1830, 0.0
      %1840 = vadd.xlane.f32.xlu0 %v1839
      %v1841 = vpop.xlane.xlu0 %1840
      %v1842 = vsel %vm706, %v1832, 0.0
      %1843 = vadd.xlane.f32.xlu0 %v1842
      %v1844 = vpop.xlane.xlu0 %1843
      %v1845 = vrcp.pop %v1835
      %v1846 = vrcp.pop %v1838
      %v1847 = vrcp.pop %v1841
      %v1848 = vrcp.pop %v1844
      %v1849 = vmul.f32 %v1826, %v1845
      %v1850 = vmul.f32 %v1828, %v1846
      %v1851 = vmul.f32 %v1830, %v1847
      %v1852 = vmul.f32 %v1832, %v1848
      %v1853 = vpack.c.bf16 %v1849, %v1849
      %v1854 = vpack.c.bf16 %v1463, %v1463
      %1856 = vrot.lane.b32.xlu0 %v1854, 96
      %v1857 = vpop.permute.xlu0 %1856
      %v1859 = vsel %vm706, %v1853, 0
      %v1862 = vsel %vm710, %v1857, 0
      %1864 = vmatprep.subr.bf16.mxu0 0
      %1865 = vmatpush1.bf16.msra.mxu0 0
      %1866 = vmatprep.subr.bf16.mxu0 0
      %1867 = vmatpush1.bf16.msra.mxu0 0
      %1868 = vmatprep.subr.bf16.mxu0 0
      %1869 = vmatpush1.bf16.msra.mxu0 0
      %1870 = vmatprep.subr.bf16.mxu0 0
      %1871 = vmatpush1.bf16.msra.mxu0 0
      %1872 = vmatprep.subr.bf16.mxu0 0
      %1873 = vmatpush1.bf16.msra.mxu0 0
      %1874 = vmatprep.subr.bf16.mxu0 0
      %1875 = vmatpush1.bf16.msra.mxu0 0
      %1876 = vmatprep.subr.bf16.mxu0 0
      %1877 = vmatpush1.bf16.msra.mxu0 0
      %1878 = vmatprep.subr.bf16.mxu0 0
      %1879 = vmatpush1.bf16.msra.mxu0 %v1862
      %1880 = vmatprep.subr.bf16.mxu0 0
      %1881 = vmatpush2.bf16.msra.mxu0 0
      %1882 = vmatprep.subr.bf16.mxu0 0
      %1883 = vmatpush2.bf16.msra.mxu0 0
      %1884 = vmatprep.subr.bf16.mxu0 0
      %1885 = vmatpush2.bf16.msra.mxu0 0
      %1886 = vmatprep.subr.bf16.mxu0 0
      %1887 = vmatpush2.bf16.msra.mxu0 0
      %1888 = vmatprep.subr.bf16.mxu0 0
      %1889 = vmatpush2.bf16.msra.mxu0 0
      %1890 = vmatprep.subr.bf16.mxu0 0
      %1891 = vmatpush2.bf16.msra.mxu0 0
      %1892 = vmatprep.subr.bf16.mxu0 0
      %1893 = vmatpush2.bf16.msra.mxu0 0
      %1894 = vmatprep.subr.bf16.mxu0 0
      %1895 = vmatpush2.bf16.msra.mxu0 0
      %1896 = vmatprep.mubr.bf16.mxu0 0
      %1897 = vmatmul.mubr.bf16.gmra.mxu0 %v1859
      %v1898 = vpop.f32.mrf.mxu0
      %v1899 = vadd.f32 0.0, %v1898
      %v1900 = vpop.f32.mrf.mxu0
      %v1901 = vpop.f32.mrf.mxu0
      %v1902 = vpop.f32.mrf.mxu0
      %1903 = vdwg.mxu0
      %v1904 = vpack.c.bf16 %v1850, %v1850
      %1905 = vrot.lane.b32.xlu0 %v1854, 88
      %v1906 = vpop.permute.xlu0 %1905
      %v1908 = vsel %vm706, %v1904, 0
      %v1911 = vsel %vm710, %v1906, 0
      %1913 = vmatprep.subr.bf16.mxu0 0
      %1914 = vmatpush1.bf16.msra.mxu0 0
      %1915 = vmatprep.subr.bf16.mxu0 0
      %1916 = vmatpush1.bf16.msra.mxu0 0
      %1917 = vmatprep.subr.bf16.mxu0 0
      %1918 = vmatpush1.bf16.msra.mxu0 0
      %1919 = vmatprep.subr.bf16.mxu0 0
      %1920 = vmatpush1.bf16.msra.mxu0 0
      %1921 = vmatprep.subr.bf16.mxu0 0
      %1922 = vmatpush1.bf16.msra.mxu0 0
      %1923 = vmatprep.subr.bf16.mxu0 0
      %1924 = vmatpush1.bf16.msra.mxu0 0
      %1925 = vmatprep.subr.bf16.mxu0 0
      %1926 = vmatpush1.bf16.msra.mxu0 0
      %1927 = vmatprep.subr.bf16.mxu0 0
      %1928 = vmatpush1.bf16.msra.mxu0 %v1911
      %1929 = vmatprep.subr.bf16.mxu0 0
      %1930 = vmatpush2.bf16.msra.mxu0 0
      %1931 = vmatprep.subr.bf16.mxu0 0
      %1932 = vmatpush2.bf16.msra.mxu0 0
      %1933 = vmatprep.subr.bf16.mxu0 0
      %1934 = vmatpush2.bf16.msra.mxu0 0
      %1935 = vmatprep.subr.bf16.mxu0 0
      %1936 = vmatpush2.bf16.msra.mxu0 0
      %1937 = vmatprep.subr.bf16.mxu0 0
      %1938 = vmatpush2.bf16.msra.mxu0 0
      %1939 = vmatprep.subr.bf16.mxu0 0
      %1940 = vmatpush2.bf16.msra.mxu0 0
      %1941 = vmatprep.subr.bf16.mxu0 0
      %1942 = vmatpush2.bf16.msra.mxu0 0
      %1943 = vmatprep.subr.bf16.mxu0 0
      %1944 = vmatpush2.bf16.msra.mxu0 0
      %1945 = vmatprep.mubr.bf16.mxu0 0
      %1946 = vmatmul.mubr.bf16.gmra.mxu0 %v1908
      %v1947 = vpop.f32.mrf.mxu0
      %v1948 = vadd.f32 0.0, %v1947
      %v1949 = vpop.f32.mrf.mxu0
      %v1950 = vpop.f32.mrf.mxu0
      %v1951 = vpop.f32.mrf.mxu0
      %1952 = vdwg.mxu0
      %v1953 = vpack.c.bf16 %v1851, %v1851
      %1954 = vrot.lane.b32.xlu0 %v1854, 80
      %v1955 = vpop.permute.xlu0 %1954
      %v1957 = vsel %vm706, %v1953, 0
      %v1960 = vsel %vm710, %v1955, 0
      %1962 = vmatprep.subr.bf16.mxu0 0
      %1963 = vmatpush1.bf16.msra.mxu0 0
      %1964 = vmatprep.subr.bf16.mxu0 0
      %1965 = vmatpush1.bf16.msra.mxu0 0
      %1966 = vmatprep.subr.bf16.mxu0 0
      %1967 = vmatpush1.bf16.msra.mxu0 0
      %1968 = vmatprep.subr.bf16.mxu0 0
      %1969 = vmatpush1.bf16.msra.mxu0 0
      %1970 = vmatprep.subr.bf16.mxu0 0
      %1971 = vmatpush1.bf16.msra.mxu0 0
      %1972 = vmatprep.subr.bf16.mxu0 0
      %1973 = vmatpush1.bf16.msra.mxu0 0
      %1974 = vmatprep.subr.bf16.mxu0 0
      %1975 = vmatpush1.bf16.msra.mxu0 0
      %1976 = vmatprep.subr.bf16.mxu0 0
      %1977 = vmatpush1.bf16.msra.mxu0 %v1960
      %1978 = vmatprep.subr.bf16.mxu0 0
      %1979 = vmatpush2.bf16.msra.mxu0 0
      %1980 = vmatprep.subr.bf16.mxu0 0
      %1981 = vmatpush2.bf16.msra.mxu0 0
      %1982 = vmatprep.subr.bf16.mxu0 0
      %1983 = vmatpush2.bf16.msra.mxu0 0
      %1984 = vmatprep.subr.bf16.mxu0 0
      %1985 = vmatpush2.bf16.msra.mxu0 0
      %1986 = vmatprep.subr.bf16.mxu0 0
      %1987 = vmatpush2.bf16.msra.mxu0 0
      %1988 = vmatprep.subr.bf16.mxu0 0
      %1989 = vmatpush2.bf16.msra.mxu0 0
      %1990 = vmatprep.subr.bf16.mxu0 0
      %1991 = vmatpush2.bf16.msra.mxu0 0
      %1992 = vmatprep.subr.bf16.mxu0 0
      %1993 = vmatpush2.bf16.msra.mxu0 0
      %1994 = vmatprep.mubr.bf16.mxu0 0
      %1995 = vmatmul.mubr.bf16.gmra.mxu0 %v1957
      %v1996 = vpop.f32.mrf.mxu0
      %v1997 = vadd.f32 0.0, %v1996
      %v1998 = vpop.f32.mrf.mxu0
      %v1999 = vpop.f32.mrf.mxu0
      %v2000 = vpop.f32.mrf.mxu0
      %2001 = vdwg.mxu0
      %v2002 = vpack.c.bf16 %v1852, %v1852
      %2003 = vrot.lane.b32.xlu0 %v1854, 72
      %v2004 = vpop.permute.xlu0 %2003
      %v2006 = vsel %vm706, %v2002, 0
      %v2009 = vsel %vm710, %v2004, 0
      %2011 = vmatprep.subr.bf16.mxu0 0
      %2012 = vmatpush1.bf16.msra.mxu0 0
      %2013 = vmatprep.subr.bf16.mxu0 0
      %2014 = vmatpush1.bf16.msra.mxu0 0
      %2015 = vmatprep.subr.bf16.mxu0 0
      %2016 = vmatpush1.bf16.msra.mxu0 0
      %2017 = vmatprep.subr.bf16.mxu0 0
      %2018 = vmatpush1.bf16.msra.mxu0 0
      %2019 = vmatprep.subr.bf16.mxu0 0
      %2020 = vmatpush1.bf16.msra.mxu0 0
      %2021 = vmatprep.subr.bf16.mxu0 0
      %2022 = vmatpush1.bf16.msra.mxu0 0
      %2023 = vmatprep.subr.bf16.mxu0 0
      %2024 = vmatpush1.bf16.msra.mxu0 0
      %2025 = vmatprep.subr.bf16.mxu0 0
      %2026 = vmatpush1.bf16.msra.mxu0 %v2009
      %2027 = vmatprep.subr.bf16.mxu0 0
      %2028 = vmatpush2.bf16.msra.mxu0 0
      %2029 = vmatprep.subr.bf16.mxu0 0
      %2030 = vmatpush2.bf16.msra.mxu0 0
      %2031 = vmatprep.subr.bf16.mxu0 0
      %2032 = vmatpush2.bf16.msra.mxu0 0
      %2033 = vmatprep.subr.bf16.mxu0 0
      %2034 = vmatpush2.bf16.msra.mxu0 0
      %2035 = vmatprep.subr.bf16.mxu0 0
      %2036 = vmatpush2.bf16.msra.mxu0 0
      %2037 = vmatprep.subr.bf16.mxu0 0
      %2038 = vmatpush2.bf16.msra.mxu0 0
      %2039 = vmatprep.subr.bf16.mxu0 0
      %2040 = vmatpush2.bf16.msra.mxu0 0
      %2041 = vmatprep.subr.bf16.mxu0 0
      %2042 = vmatpush2.bf16.msra.mxu0 0
      %2043 = vmatprep.mubr.bf16.mxu0 0
      %2044 = vmatmul.mubr.bf16.gmra.mxu0 %v2006
      %v2045 = vpop.f32.mrf.mxu0
      %v2046 = vadd.f32 0.0, %v2045
      %v2047 = vpop.f32.mrf.mxu0
      %v2048 = vpop.f32.mrf.mxu0
      %v2049 = vpop.f32.mrf.mxu0
      %2050 = vdwg.mxu0
      %2052 = vrot.lane.b32.xlu0 %v1948, 8
      %v2053 = vpop.permute.xlu0 %2052
      %2056 = vrot.lane.b32.xlu0 %v1997, 16
      %v2057 = vpop.permute.xlu0 %2056
      %2060 = vrot.lane.b32.xlu0 %v2046, 24
      %v2061 = vpop.permute.xlu0 %2060
      %v2063 = vsel %vm706, %v1899, %v2053
      %v2064 = vsel %vm1262, %v2063, %v2057
      %v2065 = vsel %vm1264, %v2064, %v2061
      %v2066 = vpack.c.bf16 %v2065, %v2065
      %v2067 = vld [vmem:[%s9] sm:$0xf]
      %v2068 = vld [vmem:[%s9 + $0x4] sm:$0xf]
      %v2069 = vld [vmem:[%s9 + $0x8] sm:$0xf]
      %v2070 = vld [vmem:[%s9 + $0xc] sm:$0xf]
      %v2075 = vunpack.c.l.b16 %v2067
      %v2076 = vunpack.c.l.b16 %v2068
      %v2077 = vunpack.c.l.b16 %v2069
      %v2078 = vunpack.c.l.b16 %v2070
      %v2079 = vpack.c.b16 %v2076, %v2075
      %v2080 = vpack.c.b16 %v2078, %v2077
      %v2084 = vsel %vm622, %v2066, 0
      %2086 = vmatprep.subr.bf16.mxu0 0
      %2087 = vmatpush1.bf16.msra.mxu0 0
      %2088 = vmatprep.subr.bf16.mxu0 0
      %2089 = vmatpush1.bf16.msra.mxu0 0
      %2090 = vmatprep.subr.bf16.mxu0 0
      %2091 = vmatpush1.bf16.msra.mxu0 0
      %2092 = vmatprep.subr.bf16.mxu0 0
      %2093 = vmatpush1.bf16.msra.mxu0 0
      %2094 = vmatprep.subr.bf16.mxu0 0
      %2095 = vmatpush1.bf16.msra.mxu0 0
      %2096 = vmatprep.subr.bf16.mxu0 0
      %2097 = vmatpush1.bf16.msra.mxu0 0
      %2098 = vmatprep.subr.bf16.mxu0 0
      %2099 = vmatpush1.bf16.msra.mxu0 %v2080
      %2100 = vmatprep.subr.bf16.mxu0 0
      %2101 = vmatpush1.bf16.msra.mxu0 %v2079
      %2102 = vmatprep.subr.bf16.mxu0 0
      %2103 = vmatpush2.bf16.msra.mxu0 0
      %2104 = vmatprep.subr.bf16.mxu0 0
      %2105 = vmatpush2.bf16.msra.mxu0 0
      %2106 = vmatprep.subr.bf16.mxu0 0
      %2107 = vmatpush2.bf16.msra.mxu0 0
      %2108 = vmatprep.subr.bf16.mxu0 0
      %2109 = vmatpush2.bf16.msra.mxu0 0
      %2110 = vmatprep.subr.bf16.mxu0 0
      %2111 = vmatpush2.bf16.msra.mxu0 0
      %2112 = vmatprep.subr.bf16.mxu0 0
      %2113 = vmatpush2.bf16.msra.mxu0 0
      %2114 = vmatprep.subr.bf16.mxu0 0
      %2115 = vmatpush2.bf16.msra.mxu0 0
      %2116 = vmatprep.subr.bf16.mxu0 0
      %2117 = vmatpush2.bf16.msra.mxu0 0
      %2118 = vmatprep.mubr.bf16.mxu0 0
      %2119 = vmatmul.mubr.bf16.gmra.mxu0 %v2084
      %v2120 = vpop.f32.mrf.mxu0
      %v2121 = vadd.f32 0.0, %v2120
      %v2122 = vpop.f32.mrf.mxu0
      %v2123 = vpop.f32.mrf.mxu0
      %v2124 = vpop.f32.mrf.mxu0
      %2125 = vdwg.mxu0
      %v2126 = vadd.f32 %v1356, %v2121
      %v2127 = vld [vmem:[%s10] sm:$0x1]
      %v2128 = vld [vmem:[%s11] sm:$0x1]
      %v2129 = vsel %vm622, %v2126, 0.0
      %2130 = vadd.xlane.f32.xlu0 %v2129
      %v2131 = vpop.xlane.xlu0 %2130
      %v2132 = vmul.f32 %v2131, %v1332
      %v2133 = vsub.f32 %v2126, %v2132
      %v2134 = vmul.f32 %v2133, %v2133
      %v2135 = vsel %vm622, %v2134, 0.0
      %2136 = vadd.xlane.f32.xlu0 %v2135
      %v2137 = vpop.xlane.xlu0 %2136
      %v2138 = vmul.f32 %v2137, %v1332
      %v2139 = vadd.f32 %v2138, 1e-05
      %v2140 = vrsqrt.pop %v2139
      %v2141 = vmul.f32 %v2133, %v2140
      %v2143 = vlaneseq
      %v2144 = vshrl.u32 %v2143, 7
      %v2145 = vsub.s32 0, %v2144
      %v2146 = vrot.slane %v2127, %v2145
      %v2148 = vmul.f32 %v2141, %v2146
      %v2150 = vlaneseq
      %v2151 = vshrl.u32 %v2150, 7
      %v2152 = vsub.s32 0, %v2151
      %v2153 = vrot.slane %v2128, %v2152
      %v2155 = vadd.f32 %v2148, %v2153
      %v2156 = vpack.c.bf16 %v2155, %v2155
      %v2157 = vld [vmem:[%s12] sm:$0xf]
      %v2158 = vld [vmem:[%s12 + $0x4] sm:$0xf]
      %v2159 = vld [vmem:[%s12 + $0x8] sm:$0xf]
      %v2160 = vld [vmem:[%s12 + $0xc] sm:$0xf]
      %v2161 = vld [vmem:[%s13] sm:$0x1]
      %v2163 = vlaneseq
      %v2164 = vshrl.u32 %v2163, 7
      %v2165 = vsub.s32 0, %v2164
      %v2166 = vrot.slane %v2161, %v2165
      %v2172 = vunpack.c.l.b16 %v2157
      %v2173 = vunpack.c.l.b16 %v2158
      %v2174 = vunpack.c.l.b16 %v2159
      %v2175 = vunpack.c.l.b16 %v2160
      %v2176 = vpack.c.b16 %v2173, %v2172
      %v2177 = vpack.c.b16 %v2175, %v2174
      %v2181 = vsel %vm622, %v2156, 0
      %2183 = vmatprep.subr.bf16.mxu0 0
      %2184 = vmatpush1.bf16.msra.mxu0 0
      %2185 = vmatprep.subr.bf16.mxu0 0
      %2186 = vmatpush1.bf16.msra.mxu0 0
      %2187 = vmatprep.subr.bf16.mxu0 0
      %2188 = vmatpush1.bf16.msra.mxu0 0
      %2189 = vmatprep.subr.bf16.mxu0 0
      %2190 = vmatpush1.bf16.msra.mxu0 0
      %2191 = vmatprep.subr.bf16.mxu0 0
      %2192 = vmatpush1.bf16.msra.mxu0 0
      %2193 = vmatprep.subr.bf16.mxu0 0
      %2194 = vmatpush1.bf16.msra.mxu0 0
      %2195 = vmatprep.subr.bf16.mxu0 0
      %2196 = vmatpush1.bf16.msra.mxu0 %v2177
      %2197 = vmatprep.subr.bf16.mxu0 0
      %2198 = vmatpush1.bf16.msra.mxu0 %v2176
      %2199 = vmatprep.subr.bf16.mxu0 0
      %2200 = vmatpush2.bf16.msra.mxu0 0
      %2201 = vmatprep.subr.bf16.mxu0 0
      %2202 = vmatpush2.bf16.msra.mxu0 0
      %2203 = vmatprep.subr.bf16.mxu0 0
      %2204 = vmatpush2.bf16.msra.mxu0 0
      %2205 = vmatprep.subr.bf16.mxu0 0
      %2206 = vmatpush2.bf16.msra.mxu0 0
      %2207 = vmatprep.subr.bf16.mxu0 0
      %2208 = vmatpush2.bf16.msra.mxu0 0
      %2209 = vmatprep.subr.bf16.mxu0 0
      %2210 = vmatpush2.bf16.msra.mxu0 0
      %2211 = vmatprep.subr.bf16.mxu0 0
      %2212 = vmatpush2.bf16.msra.mxu0 0
      %2213 = vmatprep.subr.bf16.mxu0 0
      %2214 = vmatpush2.bf16.msra.mxu0 0
      %2215 = vmatprep.mubr.bf16.mxu0 0
      %2216 = vmatmul.mubr.bf16.gmra.mxu0 %v2181
      %v2217 = vpop.f32.mrf.mxu0
      %v2218 = vadd.f32 %v2166, %v2217
      %v2219 = vpop.f32.mrf.mxu0
      %v2220 = vpop.f32.mrf.mxu0
      %v2221 = vpop.f32.mrf.mxu0
      %2222 = vdwg.mxu0
      %v2223 = vmax.f32 %v2218, 0.0
      %v2224 = vpack.c.bf16 %v2223, %v2223
      %v2225 = vld [vmem:[%s14] sm:$0xf]
      %v2226 = vld [vmem:[%s14 + $0x4] sm:$0xf]
      %v2227 = vld [vmem:[%s14 + $0x8] sm:$0xf]
      %v2228 = vld [vmem:[%s14 + $0xc] sm:$0xf]
      %v2229 = vld [vmem:[%s14 + $0x10] sm:$0xf]
      %v2230 = vld [vmem:[%s14 + $0x14] sm:$0xf]
      %v2231 = vld [vmem:[%s14 + $0x18] sm:$0xf]
      %v2232 = vld [vmem:[%s14 + $0x1c] sm:$0xf]
      %v2233 = vld [vmem:[%s15] sm:$0x1]
      %v2235 = vlaneseq
      %v2236 = vshrl.u32 %v2235, 7
      %v2237 = vsub.s32 0, %v2236
      %v2238 = vrot.slane %v2233, %v2237
      %v2248 = vunpack.c.l.b16 %v2225
      %v2249 = vunpack.c.l.b16 %v2226
      %v2250 = vunpack.c.l.b16 %v2227
      %v2251 = vunpack.c.l.b16 %v2228
      %v2252 = vunpack.c.l.b16 %v2229
      %v2253 = vunpack.c.l.b16 %v2230
      %v2254 = vunpack.c.l.b16 %v2231
      %v2255 = vunpack.c.l.b16 %v2232
      %v2256 = vpack.c.b16 %v2249, %v2248
      %v2257 = vpack.c.b16 %v2251, %v2250
      %v2258 = vpack.c.b16 %v2253, %v2252
      %v2259 = vpack.c.b16 %v2255, %v2254
      %vm2264 = vcmask 523264
      %v2266 = vsel %vm2264, %v2224, 0
      %2268 = vmatprep.subr.bf16.mxu0 0
      %2269 = vmatpush1.bf16.msra.mxu0 0
      %2270 = vmatprep.subr.bf16.mxu0 0
      %2271 = vmatpush1.bf16.msra.mxu0 0
      %2272 = vmatprep.subr.bf16.mxu0 0
      %2273 = vmatpush1.bf16.msra.mxu0 0
      %2274 = vmatprep.subr.bf16.mxu0 0
      %2275 = vmatpush1.bf16.msra.mxu0 0
      %2276 = vmatprep.subr.bf16.mxu0 0
      %2277 = vmatpush1.bf16.msra.mxu0 %v2259
      %2278 = vmatprep.subr.bf16.mxu0 0
      %2279 = vmatpush1.bf16.msra.mxu0 %v2258
      %2280 = vmatprep.subr.bf16.mxu0 0
      %2281 = vmatpush1.bf16.msra.mxu0 %v2257
      %2282 = vmatprep.subr.bf16.mxu0 0
      %2283 = vmatpush1.bf16.msra.mxu0 %v2256
      %2284 = vmatprep.subr.bf16.mxu0 0
      %2285 = vmatpush2.bf16.msra.mxu0 0
      %2286 = vmatprep.subr.bf16.mxu0 0
      %2287 = vmatpush2.bf16.msra.mxu0 0
      %2288 = vmatprep.subr.bf16.mxu0 0
      %2289 = vmatpush2.bf16.msra.mxu0 0
      %2290 = vmatprep.subr.bf16.mxu0 0
      %2291 = vmatpush2.bf16.msra.mxu0 0
      %2292 = vmatprep.subr.bf16.mxu0 0
      %2293 = vmatpush2.bf16.msra.mxu0 0
      %2294 = vmatprep.subr.bf16.mxu0 0
      %2295 = vmatpush2.bf16.msra.mxu0 0
      %2296 = vmatprep.subr.bf16.mxu0 0
      %2297 = vmatpush2.bf16.msra.mxu0 0
      %2298 = vmatprep.subr.bf16.mxu0 0
      %2299 = vmatpush2.bf16.msra.mxu0 0
      %2300 = vmatprep.mubr.bf16.mxu0 0
      %2301 = vmatmul.mubr.bf16.gmra.mxu0 %v2266
      %v2302 = vpop.f32.mrf.mxu0
      %v2303 = vadd.f32 %v2238, %v2302
      %v2304 = vpop.f32.mrf.mxu0
      %v2305 = vpop.f32.mrf.mxu0
      %v2306 = vpop.f32.mrf.mxu0
      %2307 = vdwg.mxu0
      %v2308 = vadd.f32 %v2155, %v2303
      %v2309 = vld [vmem:[%s16] sm:$0x1]
      %v2310 = vld [vmem:[%s17] sm:$0x1]
      %v2311 = vsel %vm622, %v2308, 0.0
      %2312 = vadd.xlane.f32.xlu0 %v2311
      %v2313 = vpop.xlane.xlu0 %2312
      %v2314 = vmul.f32 %v2313, %v1332
      %v2315 = vsub.f32 %v2308, %v2314
      %v2316 = vmul.f32 %v2315, %v2315
      %v2317 = vsel %vm622, %v2316, 0.0
      %2318 = vadd.xlane.f32.xlu0 %v2317
      %v2319 = vpop.xlane.xlu0 %2318
      %v2320 = vmul.f32 %v2319, %v1332
      %v2321 = vadd.f32 %v2320, 1e-05
      %v2322 = vrsqrt.pop %v2321
      %v2323 = vmul.f32 %v2315, %v2322
      %v2325 = vlaneseq
      %v2326 = vshrl.u32 %v2325, 7
      %v2327 = vsub.s32 0, %v2326
      %v2328 = vrot.slane %v2309, %v2327
      %v2330 = vmul.f32 %v2323, %v2328
      %v2332 = vlaneseq
      %v2333 = vshrl.u32 %v2332, 7
      %v2334 = vsub.s32 0, %v2333
      %v2335 = vrot.slane %v2310, %v2334
      %v2337 = vadd.f32 %v2330, %v2335
      %2338 = vst.msk [vmem:[%s601] sm:$0xff] %vm622, %v2337
      %p2339 = scmp.lt.s32.totalorder %s29, 1
      %s2340 = scalar_select %p2339, %s29, 1
      %s2341 = smul.addr %s2340, 8
      %s2342 = scalar_lea.vmem %s18, %s2341
      // Predicated region
      $region93: #{transformer_decoder.3} parent=91 // pred_check
        %p2343 = pneg %p440
      $region94: #{transformer_decoder.3} parent=91 // pred_check_branch
        %2345 = sbr.rel (%p2343) target = $region96
      $region95: #{transformer_decoder.3} parent=91 // pred_region
        _
      $region96: #{transformer_decoder.3} parent=91 // pred_fallthru
        _
    $region92: #{transformer_decoder.3} parent=5 // pred_fallthru
      _
    %p2346 = scmp.le.s32.totalorder 2, %s24
    // Predicated region
    $region97: #{transformer_decoder.3} parent=5 // pred_check
      %p2347 = pneg %p2346
    $region98: #{transformer_decoder.3} parent=5 // pred_check_branch
      %2349 = sbr.rel (%p2347) target = $region100
    $region99: #{transformer_decoder.3} parent=5 // pred_region
      %s2350 = ssub.s32 %s24, 2
      // Predicated region
      $region101: #{transformer_decoder.3} parent=99 // pred_check
        %p2351 = pneg %p446
      $region102: #{transformer_decoder.3} parent=99 // pred_check_branch
        %2353 = sbr.rel (%p2351) target = $region104
      $region103: #{transformer_decoder.3} parent=99 // pred_region
        %p2354 = scmp.lt.s32.totalorder %s30, 1
        %s2355 = scalar_select %p2354, %s30, 1
        %s2356 = smul.addr %s2355, 8
        %s2357 = scalar_lea.vmem %s18, %s2356
      $region104: #{transformer_decoder.3} parent=99 // pred_fallthru
        _
    $region100: #{transformer_decoder.3} parent=5 // pred_fallthru
      _
  $region6: #{transformer_decoder.3} parent=0 // loop_footer
    %s28 = sadd.s32 1, %s24
  $region7: #{transformer_decoder.3} parent=0 // loop_footer_branch
    %23 = sbr.rel target = $region3
  $region8: #{transformer_decoder.3} parent=0 // loop_exit
    _

</llo_original>
